<compile_context>
chip_gen: v7x
topology: tpu7x:2x2x1
jax: 0.10.0
libtpu: 0.0.40
codegen_flags: <defaults>
</compile_context>

<pallas_src>
import jax
import jax.numpy as jnp
from jax.experimental import pallas as pl
from jax.experimental.pallas import tpu as pltpu

# ----------------------------- synthetic BERT config -----------------------------
VOCAB = 64
MAX_POS = 32
TYPE_VOCAB = 2
HIDDEN = 32
N_HEADS = 4
HEAD_DIM = HIDDEN // N_HEADS
INTERMEDIATE = 64
N_LAYERS = 2
LN_EPS = 1e-12
NEG_BIAS = -1e30   # additive mask value for cross-sequence attention entries


# ----------------------------- in-kernel helpers -----------------------------
def _layernorm(x, gamma, beta):
    mean = jnp.mean(x, axis=-1, keepdims=True)
    var = jnp.mean((x - mean) * (x - mean), axis=-1, keepdims=True)
    return (x - mean) * jax.lax.rsqrt(var + LN_EPS) * gamma + beta


def _gelu(x):
    # BERT GELU (tanh approximation); tanh runs on the EUP.
    return 0.5 * x * (1.0 + jnp.tanh(0.7978845608028654 * (x + 0.044715 * x * x * x)))


# ----------------------------- fused encoder kernel -----------------------------
def _bert_kernel(
    emb_ref,                       # (B*S, H)    word+pos+type sums, whole batch
    bias_ref,                      # (B*S, B*S)  additive attention bias (block-diag batch mask)
    emb_g_ref, emb_b_ref,          # (1, H)      embedding LayerNorm params
    wqkv_ref, bqkv_ref,            # (L, H, 3H), (L, 1, 3H)   scale folded into Q columns
    wo_ref, bo_ref,                # (L, H, H),  (L, 1, H)
    ln1_g_ref, ln1_b_ref,          # (L, 1, H)
    w1_ref, b1_ref,                # (L, H, I),  (L, 1, I)
    w2_ref, b2_ref,                # (L, I, H),  (L, 1, H)
    ln2_g_ref, ln2_b_ref,          # (L, 1, H)
    pool_w_ref, pool_b_ref,        # (H, H), (1, H)
    out_ref,                       # (B, H)      pooled sentence embeddings
    ctx_ref,                       # VMEM scratch (B*S, H): attention context slab
):
    BS, H = emb_ref.shape
    B = out_ref.shape[0]
    S = BS // B
    n_layers = wqkv_ref.shape[0]

    bias = bias_ref[...]

    # ---- embedding LayerNorm on the whole (B*S, H) slab ----
    h = _layernorm(emb_ref[...], emb_g_ref[...], emb_b_ref[...])

    # ---- transformer layers, fully unrolled, weights resident in VMEM ----
    for l in range(n_layers):
        # Fused QKV projection on the full batch slab.
        qkv = jnp.dot(h, wqkv_ref[l], preferred_element_type=jnp.float32) + bqkv_ref[l]

        # Per-head attention over the whole slab; cross-sequence score entries
        # are killed by the additive block-diagonal bias.  Each head's context
        # goes straight into the VMEM scratch at static lane offsets.
        for hd in range(N_HEADS):
            q_h = qkv[:, hd * HEAD_DIM:(hd + 1) * HEAD_DIM]
            k_h = qkv[:, H + hd * HEAD_DIM:H + (hd + 1) * HEAD_DIM]
            v_h = qkv[:, 2 * H + hd * HEAD_DIM:2 * H + (hd + 1) * HEAD_DIM]
            s = jax.lax.dot_general(q_h, k_h, (((1,), (1,)), ((), ())),
                                    preferred_element_type=jnp.float32) + bias
            m = jnp.max(s, axis=-1, keepdims=True)
            p = jnp.exp(s - m)
            # approx reciprocal uses the EUP; switch to approx=False if exact
            # softmax normalization parity with a framework reference is needed.
            p = p * pl.reciprocal(jnp.sum(p, axis=-1, keepdims=True), approx=True)
            ctx_ref[:, hd * HEAD_DIM:(hd + 1) * HEAD_DIM] = jnp.dot(
                p, v_h, preferred_element_type=jnp.float32)

        attn = jnp.dot(ctx_ref[...], wo_ref[l],
                       preferred_element_type=jnp.float32) + bo_ref[l]
        h1 = _layernorm(attn + h, ln1_g_ref[l], ln1_b_ref[l])

        # ---- feed-forward on the full slab ----
        ff = _gelu(jnp.dot(h1, w1_ref[l], preferred_element_type=jnp.float32) + b1_ref[l])
        ff = jnp.dot(ff, w2_ref[l], preferred_element_type=jnp.float32) + b2_ref[l]
        h = _layernorm(ff + h1, ln2_g_ref[l], ln2_b_ref[l])

    # ---- pooler: all B CLS rows (token position 0 of each sequence), one matmul ----
    cls = jnp.concatenate([h[b * S:b * S + 1, :] for b in range(B)], axis=0)   # (B, H)
    out_ref[...] = jnp.tanh(
        jnp.dot(cls, pool_w_ref[...], preferred_element_type=jnp.float32)
        + pool_b_ref[...])


# ----------------------------- parameters -----------------------------
def init_params(key):
    def w(k, shape):
        return jax.random.normal(k, shape, jnp.float32) * 0.02

    keys = jax.random.split(key, 4 + N_LAYERS)
    wqkv, bqkv, wo, bo = [], [], [], []
    ln1_g, ln1_b, w1, b1, w2, b2, ln2_g, ln2_b = [], [], [], [], [], [], [], []
    scale = HEAD_DIM ** -0.5
    for li in range(N_LAYERS):
        lk = jax.random.split(keys[4 + li], 6)
        # Attention scale folded into the Q projection (q bias is zero).
        wq_ = w(lk[0], (HIDDEN, HIDDEN)) * scale
        wk_ = w(lk[1], (HIDDEN, HIDDEN))
        wv_ = w(lk[2], (HIDDEN, HIDDEN))
        wqkv.append(jnp.concatenate([wq_, wk_, wv_], axis=1))          # [H, 3H]
        bqkv.append(jnp.zeros((1, 3 * HIDDEN), jnp.float32))
        wo.append(w(lk[3], (HIDDEN, HIDDEN)))
        bo.append(jnp.zeros((1, HIDDEN), jnp.float32))
        ln1_g.append(jnp.ones((1, HIDDEN), jnp.float32))
        ln1_b.append(jnp.zeros((1, HIDDEN), jnp.float32))
        w1.append(w(lk[4], (HIDDEN, INTERMEDIATE)))
        b1.append(jnp.zeros((1, INTERMEDIATE), jnp.float32))
        w2.append(w(lk[5], (INTERMEDIATE, HIDDEN)))
        b2.append(jnp.zeros((1, HIDDEN), jnp.float32))
        ln2_g.append(jnp.ones((1, HIDDEN), jnp.float32))
        ln2_b.append(jnp.zeros((1, HIDDEN), jnp.float32))

    return {
        "word_emb": w(keys[0], (VOCAB, HIDDEN)),
        "pos_emb": w(keys[1], (MAX_POS, HIDDEN)),
        "type_emb": w(keys[2], (TYPE_VOCAB, HIDDEN)),
        "emb_ln_g": jnp.ones((1, HIDDEN), jnp.float32),
        "emb_ln_b": jnp.zeros((1, HIDDEN), jnp.float32),
        "pool_w": w(keys[3], (HIDDEN, HIDDEN)),
        "pool_b": jnp.zeros((1, HIDDEN), jnp.float32),
        # stacked per-layer parameters: leading dim = N_LAYERS
        "wqkv": jnp.stack(wqkv), "bqkv": jnp.stack(bqkv),
        "wo": jnp.stack(wo), "bo": jnp.stack(bo),
        "ln1_g": jnp.stack(ln1_g), "ln1_b": jnp.stack(ln1_b),
        "w1": jnp.stack(w1), "b1": jnp.stack(b1),
        "w2": jnp.stack(w2), "b2": jnp.stack(b2),
        "ln2_g": jnp.stack(ln2_g), "ln2_b": jnp.stack(ln2_b),
    }


# ----------------------------- forward pass -----------------------------
def bert_forward(params, input_ids, token_type_ids):
    """Returns the pooled sentence embedding (embeddingOverall): [B, HIDDEN]."""
    B, S = input_ids.shape

    # Embedding lookups (gathers) stay in XLA; everything else is in-kernel.
    word = jnp.take(params["word_emb"], input_ids, axis=0)             # [B, S, H]
    pos = params["pos_emb"][None, :S, :]                               # [1, S, H]
    typ = jnp.take(params["type_emb"], token_type_ids, axis=0)         # [B, S, H]
    emb = (word + pos + typ).reshape(B * S, HIDDEN)

    # Block-diagonal additive attention bias: tokens only attend within their
    # own sequence.  A real padding mask would be folded in here too.
    seq_id = jnp.repeat(jnp.arange(B, dtype=jnp.int32), S)             # [B*S]
    attn_bias = jnp.where(seq_id[:, None] == seq_id[None, :],
                          0.0, NEG_BIAS).astype(jnp.float32)           # [B*S, B*S]

    vmem = pl.BlockSpec(memory_space=pltpu.MemorySpace.VMEM)
    pooled = pl.pallas_call(
        _bert_kernel,
        out_shape=jax.ShapeDtypeStruct((B, HIDDEN), jnp.float32),
        in_specs=[vmem] * 18,
        out_specs=vmem,
        scratch_shapes=[pltpu.VMEM((B * S, HIDDEN), jnp.float32)],
    )(
        emb, attn_bias,
        params["emb_ln_g"], params["emb_ln_b"],
        params["wqkv"], params["bqkv"], params["wo"], params["bo"],
        params["ln1_g"], params["ln1_b"],
        params["w1"], params["b1"], params["w2"], params["b2"],
        params["ln2_g"], params["ln2_b"],
        params["pool_w"], params["pool_b"],
    )
    return pooled


# ----------------------------- main -----------------------------
if __name__ == "__main__":
    key = jax.random.PRNGKey(0)
    pkey, dkey = jax.random.split(key)

    params = init_params(pkey)

    B, S = 2, 8
    input_ids = jax.random.randint(dkey, (B, S), 0, VOCAB, dtype=jnp.int32)
    token_type_ids = jnp.zeros((B, S), dtype=jnp.int32)

    fwd = jax.jit(bert_forward)
    pooled = jax.block_until_ready(fwd(params, input_ids, token_type_ids))

    assert pooled.shape == (B, HIDDEN)
    assert bool(jnp.all(jnp.isfinite(pooled)))
    print("KERNEL_OK")
</pallas_src>

<mosaic_0001>
module attributes {stable_mosaic.version = 11 : i64} {
  func.func @_bert_kernel(%arg0: memref<16x32xf32, #tpu.memory_space<vmem>>, %arg1: memref<16x16xf32, #tpu.memory_space<vmem>>, %arg2: memref<1x32xf32, #tpu.memory_space<vmem>>, %arg3: memref<1x32xf32, #tpu.memory_space<vmem>>, %arg4: memref<2x32x96xf32, #tpu.memory_space<vmem>>, %arg5: memref<2x1x96xf32, #tpu.memory_space<vmem>>, %arg6: memref<2x32x32xf32, #tpu.memory_space<vmem>>, %arg7: memref<2x1x32xf32, #tpu.memory_space<vmem>>, %arg8: memref<2x1x32xf32, #tpu.memory_space<vmem>>, %arg9: memref<2x1x32xf32, #tpu.memory_space<vmem>>, %arg10: memref<2x32x64xf32, #tpu.memory_space<vmem>>, %arg11: memref<2x1x64xf32, #tpu.memory_space<vmem>>, %arg12: memref<2x64x32xf32, #tpu.memory_space<vmem>>, %arg13: memref<2x1x32xf32, #tpu.memory_space<vmem>>, %arg14: memref<2x1x32xf32, #tpu.memory_space<vmem>>, %arg15: memref<2x1x32xf32, #tpu.memory_space<vmem>>, %arg16: memref<32x32xf32, #tpu.memory_space<vmem>>, %arg17: memref<1x32xf32, #tpu.memory_space<vmem>>, %arg18: memref<2x32xf32, #tpu.memory_space<vmem>>, %arg19: memref<16x32xf32, #tpu.memory_space<vmem>>) attributes {dimension_semantics = [], scalar_prefetch = 0 : i64, scratch_operands = 1 : i64, tpu.core_type = #tpu.core_type<tc>} {
    %c0 = arith.constant 0 : index
    %c0_0 = arith.constant 0 : index
    %0 = vector.load %arg1[%c0, %c0_0] : memref<16x16xf32, #tpu.memory_space<vmem>>, vector<16x16xf32>
    %c0_1 = arith.constant 0 : index
    %c0_2 = arith.constant 0 : index
    %1 = vector.load %arg0[%c0_1, %c0_2] : memref<16x32xf32, #tpu.memory_space<vmem>>, vector<16x32xf32>
    %c0_3 = arith.constant 0 : index
    %c0_4 = arith.constant 0 : index
    %2 = vector.load %arg2[%c0_3, %c0_4] : memref<1x32xf32, #tpu.memory_space<vmem>>, vector<1x32xf32>
    %c0_5 = arith.constant 0 : index
    %c0_6 = arith.constant 0 : index
    %3 = vector.load %arg3[%c0_5, %c0_6] : memref<1x32xf32, #tpu.memory_space<vmem>>, vector<1x32xf32>
    %cst = arith.constant dense<0.000000e+00> : vector<16xf32>
    %4 = vector.multi_reduction <add>, %1, %cst [1] : vector<16x32xf32> to vector<16xf32>
    %5 = vector.shape_cast %4 : vector<16xf32> to vector<16x1xf32>
    %cst_7 = arith.constant 3.200000e+01 : f32
    %6 = vector.broadcast %cst_7 : f32 to vector<16x1xf32>
    %7 = arith.divf %5, %6 : vector<16x1xf32>
    %8 = vector.broadcast %7 : vector<16x1xf32> to vector<16x32xf32>
    %9 = arith.subf %1, %8 : vector<16x32xf32>
    %10 = vector.broadcast %7 : vector<16x1xf32> to vector<16x32xf32>
    %11 = arith.subf %1, %10 : vector<16x32xf32>
    %12 = arith.mulf %9, %11 : vector<16x32xf32>
    %cst_8 = arith.constant dense<0.000000e+00> : vector<16xf32>
    %13 = vector.multi_reduction <add>, %12, %cst_8 [1] : vector<16x32xf32> to vector<16xf32>
    %14 = vector.shape_cast %13 : vector<16xf32> to vector<16x1xf32>
    %cst_9 = arith.constant 3.200000e+01 : f32
    %15 = vector.broadcast %cst_9 : f32 to vector<16x1xf32>
    %16 = arith.divf %14, %15 : vector<16x1xf32>
    %17 = vector.broadcast %7 : vector<16x1xf32> to vector<16x32xf32>
    %18 = arith.subf %1, %17 : vector<16x32xf32>
    %cst_10 = arith.constant 9.99999996E-13 : f32
    %19 = vector.broadcast %cst_10 : f32 to vector<16x1xf32>
    %20 = arith.addf %16, %19 : vector<16x1xf32>
    %21 = math.rsqrt %20 : vector<16x1xf32>
    %22 = vector.broadcast %21 : vector<16x1xf32> to vector<16x32xf32>
    %23 = arith.mulf %18, %22 : vector<16x32xf32>
    %24 = vector.broadcast %2 : vector<1x32xf32> to vector<16x32xf32>
    %25 = arith.mulf %23, %24 : vector<16x32xf32>
    %26 = vector.broadcast %3 : vector<1x32xf32> to vector<16x32xf32>
    %27 = arith.addf %25, %26 : vector<16x32xf32>
    %c0_11 = arith.constant 0 : index
    %c0_12 = arith.constant 0 : index
    %c0_13 = arith.constant 0 : index
    %28 = vector.load %arg4[%c0_11, %c0_12, %c0_13] : memref<2x32x96xf32, #tpu.memory_space<vmem>>, vector<1x32x96xf32>
    %29 = vector.shape_cast %28 : vector<1x32x96xf32> to vector<32x96xf32>
    %cst_14 = arith.constant dense<0.000000e+00> : vector<16x96xf32>
    %30 = tpu.matmul %27, %29, %cst_14 {dimension_numbers = #tpu.dot_dimension_numbers<[1], [0], [0], [1], [0, 0, 1, 1], [], []>} : vector<16x32xf32>, vector<32x96xf32>, vector<16x96xf32> -> vector<16x96xf32>
    %c0_15 = arith.constant 0 : index
    %c0_16 = arith.constant 0 : index
    %c0_17 = arith.constant 0 : index
    %31 = vector.load %arg5[%c0_15, %c0_16, %c0_17] : memref<2x1x96xf32, #tpu.memory_space<vmem>>, vector<1x1x96xf32>
    %32 = vector.shape_cast %31 : vector<1x1x96xf32> to vector<1x96xf32>
    %33 = vector.broadcast %32 : vector<1x96xf32> to vector<16x96xf32>
    %34 = arith.addf %30, %33 : vector<16x96xf32>
    %35 = vector.extract_strided_slice %34 {offsets = [0, 0], sizes = [16, 8], strides = [1, 1]} : vector<16x96xf32> to vector<16x8xf32>
    %36 = vector.extract_strided_slice %34 {offsets = [0, 32], sizes = [16, 8], strides = [1, 1]} : vector<16x96xf32> to vector<16x8xf32>
    %37 = vector.extract_strided_slice %34 {offsets = [0, 64], sizes = [16, 8], strides = [1, 1]} : vector<16x96xf32> to vector<16x8xf32>
    %cst_18 = arith.constant dense<0.000000e+00> : vector<16x16xf32>
    %38 = tpu.matmul %35, %36, %cst_18 {dimension_numbers = #tpu.dot_dimension_numbers<[1], [1], [0], [0], [0, 0, 1, 0], [], []>} : vector<16x8xf32>, vector<16x8xf32>, vector<16x16xf32> -> vector<16x16xf32>
    %39 = arith.addf %38, %0 : vector<16x16xf32>
    %cst_19 = arith.constant dense<0xFF800000> : vector<16xf32>
    %40 = vector.multi_reduction <maximumf>, %39, %cst_19 [1] : vector<16x16xf32> to vector<16xf32>
    %41 = vector.shape_cast %40 : vector<16xf32> to vector<16x1xf32>
    %42 = vector.broadcast %41 : vector<16x1xf32> to vector<16x16xf32>
    %43 = arith.subf %39, %42 : vector<16x16xf32>
    %44 = math.exp %43 : vector<16x16xf32>
    %cst_20 = arith.constant dense<0.000000e+00> : vector<16xf32>
    %45 = vector.multi_reduction <add>, %44, %cst_20 [1] : vector<16x16xf32> to vector<16xf32>
    %46 = vector.shape_cast %45 : vector<16xf32> to vector<16x1xf32>
    %47 = tpu.reciprocal %46 {approx = true} : vector<16x1xf32> -> vector<16x1xf32>
    %48 = vector.broadcast %47 : vector<16x1xf32> to vector<16x16xf32>
    %49 = arith.mulf %44, %48 : vector<16x16xf32>
    %cst_21 = arith.constant dense<0.000000e+00> : vector<16x8xf32>
    %50 = tpu.matmul %49, %37, %cst_21 {dimension_numbers = #tpu.dot_dimension_numbers<[1], [0], [0], [1], [0, 0, 1, 1], [], []>} : vector<16x16xf32>, vector<16x8xf32>, vector<16x8xf32> -> vector<16x8xf32>
    %c0_22 = arith.constant 0 : index
    %c0_23 = arith.constant 0 : index
    %51 = vector.load %arg19[%c0_22, %c0_23] : memref<16x32xf32, #tpu.memory_space<vmem>>, vector<16x8xf32>
    tpu.vector_store %arg19[%c0_22, %c0_23], %50 {strides = array<i32>} : memref<16x32xf32, #tpu.memory_space<vmem>>, vector<16x8xf32>,
    %52 = vector.extract_strided_slice %34 {offsets = [0, 8], sizes = [16, 8], strides = [1, 1]} : vector<16x96xf32> to vector<16x8xf32>
    %53 = vector.extract_strided_slice %34 {offsets = [0, 40], sizes = [16, 8], strides = [1, 1]} : vector<16x96xf32> to vector<16x8xf32>
    %54 = vector.extract_strided_slice %34 {offsets = [0, 72], sizes = [16, 8], strides = [1, 1]} : vector<16x96xf32> to vector<16x8xf32>
    %cst_24 = arith.constant dense<0.000000e+00> : vector<16x16xf32>
    %55 = tpu.matmul %52, %53, %cst_24 {dimension_numbers = #tpu.dot_dimension_numbers<[1], [1], [0], [0], [0, 0, 1, 0], [], []>} : vector<16x8xf32>, vector<16x8xf32>, vector<16x16xf32> -> vector<16x16xf32>
    %56 = arith.addf %55, %0 : vector<16x16xf32>
    %cst_25 = arith.constant dense<0xFF800000> : vector<16xf32>
    %57 = vector.multi_reduction <maximumf>, %56, %cst_25 [1] : vector<16x16xf32> to vector<16xf32>
    %58 = vector.shape_cast %57 : vector<16xf32> to vector<16x1xf32>
    %59 = vector.broadcast %58 : vector<16x1xf32> to vector<16x16xf32>
    %60 = arith.subf %56, %59 : vector<16x16xf32>
    %61 = math.exp %60 : vector<16x16xf32>
    %cst_26 = arith.constant dense<0.000000e+00> : vector<16xf32>
    %62 = vector.multi_reduction <add>, %61, %cst_26 [1] : vector<16x16xf32> to vector<16xf32>
    %63 = vector.shape_cast %62 : vector<16xf32> to vector<16x1xf32>
    %64 = tpu.reciprocal %63 {approx = true} : vector<16x1xf32> -> vector<16x1xf32>
    %65 = vector.broadcast %64 : vector<16x1xf32> to vector<16x16xf32>
    %66 = arith.mulf %61, %65 : vector<16x16xf32>
    %cst_27 = arith.constant dense<0.000000e+00> : vector<16x8xf32>
    %67 = tpu.matmul %66, %54, %cst_27 {dimension_numbers = #tpu.dot_dimension_numbers<[1], [0], [0], [1], [0, 0, 1, 1], [], []>} : vector<16x16xf32>, vector<16x8xf32>, vector<16x8xf32> -> vector<16x8xf32>
    %c0_28 = arith.constant 0 : index
    %c8 = arith.constant 8 : index
    %68 = vector.load %arg19[%c0_28, %c8] : memref<16x32xf32, #tpu.memory_space<vmem>>, vector<16x8xf32>
    tpu.vector_store %arg19[%c0_28, %c8], %67 {strides = array<i32>} : memref<16x32xf32, #tpu.memory_space<vmem>>, vector<16x8xf32>,
    %69 = vector.extract_strided_slice %34 {offsets = [0, 16], sizes = [16, 8], strides = [1, 1]} : vector<16x96xf32> to vector<16x8xf32>
    %70 = vector.extract_strided_slice %34 {offsets = [0, 48], sizes = [16, 8], strides = [1, 1]} : vector<16x96xf32> to vector<16x8xf32>
    %71 = vector.extract_strided_slice %34 {offsets = [0, 80], sizes = [16, 8], strides = [1, 1]} : vector<16x96xf32> to vector<16x8xf32>
    %cst_29 = arith.constant dense<0.000000e+00> : vector<16x16xf32>
    %72 = tpu.matmul %69, %70, %cst_29 {dimension_numbers = #tpu.dot_dimension_numbers<[1], [1], [0], [0], [0, 0, 1, 0], [], []>} : vector<16x8xf32>, vector<16x8xf32>, vector<16x16xf32> -> vector<16x16xf32>
    %73 = arith.addf %72, %0 : vector<16x16xf32>
    %cst_30 = arith.constant dense<0xFF800000> : vector<16xf32>
    %74 = vector.multi_reduction <maximumf>, %73, %cst_30 [1] : vector<16x16xf32> to vector<16xf32>
    %75 = vector.shape_cast %74 : vector<16xf32> to vector<16x1xf32>
    %76 = vector.broadcast %75 : vector<16x1xf32> to vector<16x16xf32>
    %77 = arith.subf %73, %76 : vector<16x16xf32>
    %78 = math.exp %77 : vector<16x16xf32>
    %cst_31 = arith.constant dense<0.000000e+00> : vector<16xf32>
    %79 = vector.multi_reduction <add>, %78, %cst_31 [1] : vector<16x16xf32> to vector<16xf32>
    %80 = vector.shape_cast %79 : vector<16xf32> to vector<16x1xf32>
    %81 = tpu.reciprocal %80 {approx = true} : vector<16x1xf32> -> vector<16x1xf32>
    %82 = vector.broadcast %81 : vector<16x1xf32> to vector<16x16xf32>
    %83 = arith.mulf %78, %82 : vector<16x16xf32>
    %cst_32 = arith.constant dense<0.000000e+00> : vector<16x8xf32>
    %84 = tpu.matmul %83, %71, %cst_32 {dimension_numbers = #tpu.dot_dimension_numbers<[1], [0], [0], [1], [0, 0, 1, 1], [], []>} : vector<16x16xf32>, vector<16x8xf32>, vector<16x8xf32> -> vector<16x8xf32>
    %c0_33 = arith.constant 0 : index
    %c16 = arith.constant 16 : index
    %85 = vector.load %arg19[%c0_33, %c16] : memref<16x32xf32, #tpu.memory_space<vmem>>, vector<16x8xf32>
    tpu.vector_store %arg19[%c0_33, %c16], %84 {strides = array<i32>} : memref<16x32xf32, #tpu.memory_space<vmem>>, vector<16x8xf32>,
    %86 = vector.extract_strided_slice %34 {offsets = [0, 24], sizes = [16, 8], strides = [1, 1]} : vector<16x96xf32> to vector<16x8xf32>
    %87 = vector.extract_strided_slice %34 {offsets = [0, 56], sizes = [16, 8], strides = [1, 1]} : vector<16x96xf32> to vector<16x8xf32>
    %88 = vector.extract_strided_slice %34 {offsets = [0, 88], sizes = [16, 8], strides = [1, 1]} : vector<16x96xf32> to vector<16x8xf32>
    %cst_34 = arith.constant dense<0.000000e+00> : vector<16x16xf32>
    %89 = tpu.matmul %86, %87, %cst_34 {dimension_numbers = #tpu.dot_dimension_numbers<[1], [1], [0], [0], [0, 0, 1, 0], [], []>} : vector<16x8xf32>, vector<16x8xf32>, vector<16x16xf32> -> vector<16x16xf32>
    %90 = arith.addf %89, %0 : vector<16x16xf32>
    %cst_35 = arith.constant dense<0xFF800000> : vector<16xf32>
    %91 = vector.multi_reduction <maximumf>, %90, %cst_35 [1] : vector<16x16xf32> to vector<16xf32>
    %92 = vector.shape_cast %91 : vector<16xf32> to vector<16x1xf32>
    %93 = vector.broadcast %92 : vector<16x1xf32> to vector<16x16xf32>
    %94 = arith.subf %90, %93 : vector<16x16xf32>
    %95 = math.exp %94 : vector<16x16xf32>
    %cst_36 = arith.constant dense<0.000000e+00> : vector<16xf32>
    %96 = vector.multi_reduction <add>, %95, %cst_36 [1] : vector<16x16xf32> to vector<16xf32>
    %97 = vector.shape_cast %96 : vector<16xf32> to vector<16x1xf32>
    %98 = tpu.reciprocal %97 {approx = true} : vector<16x1xf32> -> vector<16x1xf32>
    %99 = vector.broadcast %98 : vector<16x1xf32> to vector<16x16xf32>
    %100 = arith.mulf %95, %99 : vector<16x16xf32>
    %cst_37 = arith.constant dense<0.000000e+00> : vector<16x8xf32>
    %101 = tpu.matmul %100, %88, %cst_37 {dimension_numbers = #tpu.dot_dimension_numbers<[1], [0], [0], [1], [0, 0, 1, 1], [], []>} : vector<16x16xf32>, vector<16x8xf32>, vector<16x8xf32> -> vector<16x8xf32>
    %c0_38 = arith.constant 0 : index
    %c24 = arith.constant 24 : index
    %102 = vector.load %arg19[%c0_38, %c24] : memref<16x32xf32, #tpu.memory_space<vmem>>, vector<16x8xf32>
    tpu.vector_store %arg19[%c0_38, %c24], %101 {strides = array<i32>} : memref<16x32xf32, #tpu.memory_space<vmem>>, vector<16x8xf32>,
    %c0_39 = arith.constant 0 : index
    %c0_40 = arith.constant 0 : index
    %103 = vector.load %arg19[%c0_39, %c0_40] : memref<16x32xf32, #tpu.memory_space<vmem>>, vector<16x32xf32>
    %c0_41 = arith.constant 0 : index
    %c0_42 = arith.constant 0 : index
    %c0_43 = arith.constant 0 : index
    %104 = vector.load %arg6[%c0_41, %c0_42, %c0_43] : memref<2x32x32xf32, #tpu.memory_space<vmem>>, vector<1x32x32xf32>
    %105 = vector.shape_cast %104 : vector<1x32x32xf32> to vector<32x32xf32>
    %cst_44 = arith.constant dense<0.000000e+00> : vector<16x32xf32>
    %106 = tpu.matmul %103, %105, %cst_44 {dimension_numbers = #tpu.dot_dimension_numbers<[1], [0], [0], [1], [0, 0, 1, 1], [], []>} : vector<16x32xf32>, vector<32x32xf32>, vector<16x32xf32> -> vector<16x32xf32>
    %c0_45 = arith.constant 0 : index
    %c0_46 = arith.constant 0 : index
    %c0_47 = arith.constant 0 : index
    %107 = vector.load %arg7[%c0_45, %c0_46, %c0_47] : memref<2x1x32xf32, #tpu.memory_space<vmem>>, vector<1x1x32xf32>
    %108 = vector.shape_cast %107 : vector<1x1x32xf32> to vector<1x32xf32>
    %109 = vector.broadcast %108 : vector<1x32xf32> to vector<16x32xf32>
    %110 = arith.addf %106, %109 : vector<16x32xf32>
    %111 = arith.addf %110, %27 : vector<16x32xf32>
    %c0_48 = arith.constant 0 : index
    %c0_49 = arith.constant 0 : index
    %c0_50 = arith.constant 0 : index
    %112 = vector.load %arg8[%c0_48, %c0_49, %c0_50] : memref<2x1x32xf32, #tpu.memory_space<vmem>>, vector<1x1x32xf32>
    %113 = vector.shape_cast %112 : vector<1x1x32xf32> to vector<1x32xf32>
    %c0_51 = arith.constant 0 : index
    %c0_52 = arith.constant 0 : index
    %c0_53 = arith.constant 0 : index
    %114 = vector.load %arg9[%c0_51, %c0_52, %c0_53] : memref<2x1x32xf32, #tpu.memory_space<vmem>>, vector<1x1x32xf32>
    %115 = vector.shape_cast %114 : vector<1x1x32xf32> to vector<1x32xf32>
    %cst_54 = arith.constant dense<0.000000e+00> : vector<16xf32>
    %116 = vector.multi_reduction <add>, %111, %cst_54 [1] : vector<16x32xf32> to vector<16xf32>
    %117 = vector.shape_cast %116 : vector<16xf32> to vector<16x1xf32>
    %cst_55 = arith.constant 3.200000e+01 : f32
    %118 = vector.broadcast %cst_55 : f32 to vector<16x1xf32>
    %119 = arith.divf %117, %118 : vector<16x1xf32>
    %120 = vector.broadcast %119 : vector<16x1xf32> to vector<16x32xf32>
    %121 = arith.subf %111, %120 : vector<16x32xf32>
    %122 = vector.broadcast %119 : vector<16x1xf32> to vector<16x32xf32>
    %123 = arith.subf %111, %122 : vector<16x32xf32>
    %124 = arith.mulf %121, %123 : vector<16x32xf32>
    %cst_56 = arith.constant dense<0.000000e+00> : vector<16xf32>
    %125 = vector.multi_reduction <add>, %124, %cst_56 [1] : vector<16x32xf32> to vector<16xf32>
    %126 = vector.shape_cast %125 : vector<16xf32> to vector<16x1xf32>
    %cst_57 = arith.constant 3.200000e+01 : f32
    %127 = vector.broadcast %cst_57 : f32 to vector<16x1xf32>
    %128 = arith.divf %126, %127 : vector<16x1xf32>
    %129 = vector.broadcast %119 : vector<16x1xf32> to vector<16x32xf32>
    %130 = arith.subf %111, %129 : vector<16x32xf32>
    %cst_58 = arith.constant 9.99999996E-13 : f32
    %131 = vector.broadcast %cst_58 : f32 to vector<16x1xf32>
    %132 = arith.addf %128, %131 : vector<16x1xf32>
    %133 = math.rsqrt %132 : vector<16x1xf32>
    %134 = vector.broadcast %133 : vector<16x1xf32> to vector<16x32xf32>
    %135 = arith.mulf %130, %134 : vector<16x32xf32>
    %136 = vector.broadcast %113 : vector<1x32xf32> to vector<16x32xf32>
    %137 = arith.mulf %135, %136 : vector<16x32xf32>
    %138 = vector.broadcast %115 : vector<1x32xf32> to vector<16x32xf32>
    %139 = arith.addf %137, %138 : vector<16x32xf32>
    %c0_59 = arith.constant 0 : index
    %c0_60 = arith.constant 0 : index
    %c0_61 = arith.constant 0 : index
    %140 = vector.load %arg10[%c0_59, %c0_60, %c0_61] : memref<2x32x64xf32, #tpu.memory_space<vmem>>, vector<1x32x64xf32>
    %141 = vector.shape_cast %140 : vector<1x32x64xf32> to vector<32x64xf32>
    %cst_62 = arith.constant dense<0.000000e+00> : vector<16x64xf32>
    %142 = tpu.matmul %139, %141, %cst_62 {dimension_numbers = #tpu.dot_dimension_numbers<[1], [0], [0], [1], [0, 0, 1, 1], [], []>} : vector<16x32xf32>, vector<32x64xf32>, vector<16x64xf32> -> vector<16x64xf32>
    %c0_63 = arith.constant 0 : index
    %c0_64 = arith.constant 0 : index
    %c0_65 = arith.constant 0 : index
    %143 = vector.load %arg11[%c0_63, %c0_64, %c0_65] : memref<2x1x64xf32, #tpu.memory_space<vmem>>, vector<1x1x64xf32>
    %144 = vector.shape_cast %143 : vector<1x1x64xf32> to vector<1x64xf32>
    %145 = vector.broadcast %144 : vector<1x64xf32> to vector<16x64xf32>
    %146 = arith.addf %142, %145 : vector<16x64xf32>
    %cst_66 = arith.constant 5.000000e-01 : f32
    %147 = vector.broadcast %cst_66 : f32 to vector<16x64xf32>
    %148 = arith.mulf %147, %146 : vector<16x64xf32>
    %cst_67 = arith.constant 4.471500e-02 : f32
    %149 = vector.broadcast %cst_67 : f32 to vector<16x64xf32>
    %150 = arith.mulf %149, %146 : vector<16x64xf32>
    %151 = arith.mulf %150, %146 : vector<16x64xf32>
    %152 = arith.mulf %151, %146 : vector<16x64xf32>
    %153 = arith.addf %146, %152 : vector<16x64xf32>
    %cst_68 = arith.constant 0.797884583 : f32
    %154 = vector.broadcast %cst_68 : f32 to vector<16x64xf32>
    %155 = arith.mulf %154, %153 : vector<16x64xf32>
    %156 = math.tanh %155 : vector<16x64xf32>
    %cst_69 = arith.constant 1.000000e+00 : f32
    %157 = vector.broadcast %cst_69 : f32 to vector<16x64xf32>
    %158 = arith.addf %157, %156 : vector<16x64xf32>
    %159 = arith.mulf %148, %158 : vector<16x64xf32>
    %c0_70 = arith.constant 0 : index
    %c0_71 = arith.constant 0 : index
    %c0_72 = arith.constant 0 : index
    %160 = vector.load %arg12[%c0_70, %c0_71, %c0_72] : memref<2x64x32xf32, #tpu.memory_space<vmem>>, vector<1x64x32xf32>
    %161 = vector.shape_cast %160 : vector<1x64x32xf32> to vector<64x32xf32>
    %cst_73 = arith.constant dense<0.000000e+00> : vector<16x32xf32>
    %162 = tpu.matmul %159, %161, %cst_73 {dimension_numbers = #tpu.dot_dimension_numbers<[1], [0], [0], [1], [0, 0, 1, 1], [], []>} : vector<16x64xf32>, vector<64x32xf32>, vector<16x32xf32> -> vector<16x32xf32>
    %c0_74 = arith.constant 0 : index
    %c0_75 = arith.constant 0 : index
    %c0_76 = arith.constant 0 : index
    %163 = vector.load %arg13[%c0_74, %c0_75, %c0_76] : memref<2x1x32xf32, #tpu.memory_space<vmem>>, vector<1x1x32xf32>
    %164 = vector.shape_cast %163 : vector<1x1x32xf32> to vector<1x32xf32>
    %165 = vector.broadcast %164 : vector<1x32xf32> to vector<16x32xf32>
    %166 = arith.addf %162, %165 : vector<16x32xf32>
    %167 = arith.addf %166, %139 : vector<16x32xf32>
    %c0_77 = arith.constant 0 : index
    %c0_78 = arith.constant 0 : index
    %c0_79 = arith.constant 0 : index
    %168 = vector.load %arg14[%c0_77, %c0_78, %c0_79] : memref<2x1x32xf32, #tpu.memory_space<vmem>>, vector<1x1x32xf32>
    %169 = vector.shape_cast %168 : vector<1x1x32xf32> to vector<1x32xf32>
    %c0_80 = arith.constant 0 : index
    %c0_81 = arith.constant 0 : index
    %c0_82 = arith.constant 0 : index
    %170 = vector.load %arg15[%c0_80, %c0_81, %c0_82] : memref<2x1x32xf32, #tpu.memory_space<vmem>>, vector<1x1x32xf32>
    %171 = vector.shape_cast %170 : vector<1x1x32xf32> to vector<1x32xf32>
    %cst_83 = arith.constant dense<0.000000e+00> : vector<16xf32>
    %172 = vector.multi_reduction <add>, %167, %cst_83 [1] : vector<16x32xf32> to vector<16xf32>
    %173 = vector.shape_cast %172 : vector<16xf32> to vector<16x1xf32>
    %cst_84 = arith.constant 3.200000e+01 : f32
    %174 = vector.broadcast %cst_84 : f32 to vector<16x1xf32>
    %175 = arith.divf %173, %174 : vector<16x1xf32>
    %176 = vector.broadcast %175 : vector<16x1xf32> to vector<16x32xf32>
    %177 = arith.subf %167, %176 : vector<16x32xf32>
    %178 = vector.broadcast %175 : vector<16x1xf32> to vector<16x32xf32>
    %179 = arith.subf %167, %178 : vector<16x32xf32>
    %180 = arith.mulf %177, %179 : vector<16x32xf32>
    %cst_85 = arith.constant dense<0.000000e+00> : vector<16xf32>
    %181 = vector.multi_reduction <add>, %180, %cst_85 [1] : vector<16x32xf32> to vector<16xf32>
    %182 = vector.shape_cast %181 : vector<16xf32> to vector<16x1xf32>
    %cst_86 = arith.constant 3.200000e+01 : f32
    %183 = vector.broadcast %cst_86 : f32 to vector<16x1xf32>
    %184 = arith.divf %182, %183 : vector<16x1xf32>
    %185 = vector.broadcast %175 : vector<16x1xf32> to vector<16x32xf32>
    %186 = arith.subf %167, %185 : vector<16x32xf32>
    %cst_87 = arith.constant 9.99999996E-13 : f32
    %187 = vector.broadcast %cst_87 : f32 to vector<16x1xf32>
    %188 = arith.addf %184, %187 : vector<16x1xf32>
    %189 = math.rsqrt %188 : vector<16x1xf32>
    %190 = vector.broadcast %189 : vector<16x1xf32> to vector<16x32xf32>
    %191 = arith.mulf %186, %190 : vector<16x32xf32>
    %192 = vector.broadcast %169 : vector<1x32xf32> to vector<16x32xf32>
    %193 = arith.mulf %191, %192 : vector<16x32xf32>
    %194 = vector.broadcast %171 : vector<1x32xf32> to vector<16x32xf32>
    %195 = arith.addf %193, %194 : vector<16x32xf32>
    %c1 = arith.constant 1 : index
    %c0_88 = arith.constant 0 : index
    %c0_89 = arith.constant 0 : index
    %196 = vector.load %arg4[%c1, %c0_88, %c0_89] : memref<2x32x96xf32, #tpu.memory_space<vmem>>, vector<1x32x96xf32>
    %197 = vector.shape_cast %196 : vector<1x32x96xf32> to vector<32x96xf32>
    %cst_90 = arith.constant dense<0.000000e+00> : vector<16x96xf32>
    %198 = tpu.matmul %195, %197, %cst_90 {dimension_numbers = #tpu.dot_dimension_numbers<[1], [0], [0], [1], [0, 0, 1, 1], [], []>} : vector<16x32xf32>, vector<32x96xf32>, vector<16x96xf32> -> vector<16x96xf32>
    %c1_91 = arith.constant 1 : index
    %c0_92 = arith.constant 0 : index
    %c0_93 = arith.constant 0 : index
    %199 = vector.load %arg5[%c1_91, %c0_92, %c0_93] : memref<2x1x96xf32, #tpu.memory_space<vmem>>, vector<1x1x96xf32>
    %200 = vector.shape_cast %199 : vector<1x1x96xf32> to vector<1x96xf32>
    %201 = vector.broadcast %200 : vector<1x96xf32> to vector<16x96xf32>
    %202 = arith.addf %198, %201 : vector<16x96xf32>
    %203 = vector.extract_strided_slice %202 {offsets = [0, 0], sizes = [16, 8], strides = [1, 1]} : vector<16x96xf32> to vector<16x8xf32>
    %204 = vector.extract_strided_slice %202 {offsets = [0, 32], sizes = [16, 8], strides = [1, 1]} : vector<16x96xf32> to vector<16x8xf32>
    %205 = vector.extract_strided_slice %202 {offsets = [0, 64], sizes = [16, 8], strides = [1, 1]} : vector<16x96xf32> to vector<16x8xf32>
    %cst_94 = arith.constant dense<0.000000e+00> : vector<16x16xf32>
    %206 = tpu.matmul %203, %204, %cst_94 {dimension_numbers = #tpu.dot_dimension_numbers<[1], [1], [0], [0], [0, 0, 1, 0], [], []>} : vector<16x8xf32>, vector<16x8xf32>, vector<16x16xf32> -> vector<16x16xf32>
    %207 = arith.addf %206, %0 : vector<16x16xf32>
    %cst_95 = arith.constant dense<0xFF800000> : vector<16xf32>
    %208 = vector.multi_reduction <maximumf>, %207, %cst_95 [1] : vector<16x16xf32> to vector<16xf32>
    %209 = vector.shape_cast %208 : vector<16xf32> to vector<16x1xf32>
    %210 = vector.broadcast %209 : vector<16x1xf32> to vector<16x16xf32>
    %211 = arith.subf %207, %210 : vector<16x16xf32>
    %212 = math.exp %211 : vector<16x16xf32>
    %cst_96 = arith.constant dense<0.000000e+00> : vector<16xf32>
    %213 = vector.multi_reduction <add>, %212, %cst_96 [1] : vector<16x16xf32> to vector<16xf32>
    %214 = vector.shape_cast %213 : vector<16xf32> to vector<16x1xf32>
    %215 = tpu.reciprocal %214 {approx = true} : vector<16x1xf32> -> vector<16x1xf32>
    %216 = vector.broadcast %215 : vector<16x1xf32> to vector<16x16xf32>
    %217 = arith.mulf %212, %216 : vector<16x16xf32>
    %cst_97 = arith.constant dense<0.000000e+00> : vector<16x8xf32>
    %218 = tpu.matmul %217, %205, %cst_97 {dimension_numbers = #tpu.dot_dimension_numbers<[1], [0], [0], [1], [0, 0, 1, 1], [], []>} : vector<16x16xf32>, vector<16x8xf32>, vector<16x8xf32> -> vector<16x8xf32>
    %c0_98 = arith.constant 0 : index
    %c0_99 = arith.constant 0 : index
    %219 = vector.load %arg19[%c0_98, %c0_99] : memref<16x32xf32, #tpu.memory_space<vmem>>, vector<16x8xf32>
    tpu.vector_store %arg19[%c0_98, %c0_99], %218 {strides = array<i32>} : memref<16x32xf32, #tpu.memory_space<vmem>>, vector<16x8xf32>,
    %220 = vector.extract_strided_slice %202 {offsets = [0, 8], sizes = [16, 8], strides = [1, 1]} : vector<16x96xf32> to vector<16x8xf32>
    %221 = vector.extract_strided_slice %202 {offsets = [0, 40], sizes = [16, 8], strides = [1, 1]} : vector<16x96xf32> to vector<16x8xf32>
    %222 = vector.extract_strided_slice %202 {offsets = [0, 72], sizes = [16, 8], strides = [1, 1]} : vector<16x96xf32> to vector<16x8xf32>
    %cst_100 = arith.constant dense<0.000000e+00> : vector<16x16xf32>
    %223 = tpu.matmul %220, %221, %cst_100 {dimension_numbers = #tpu.dot_dimension_numbers<[1], [1], [0], [0], [0, 0, 1, 0], [], []>} : vector<16x8xf32>, vector<16x8xf32>, vector<16x16xf32> -> vector<16x16xf32>
    %224 = arith.addf %223, %0 : vector<16x16xf32>
    %cst_101 = arith.constant dense<0xFF800000> : vector<16xf32>
    %225 = vector.multi_reduction <maximumf>, %224, %cst_101 [1] : vector<16x16xf32> to vector<16xf32>
    %226 = vector.shape_cast %225 : vector<16xf32> to vector<16x1xf32>
    %227 = vector.broadcast %226 : vector<16x1xf32> to vector<16x16xf32>
    %228 = arith.subf %224, %227 : vector<16x16xf32>
    %229 = math.exp %228 : vector<16x16xf32>
    %cst_102 = arith.constant dense<0.000000e+00> : vector<16xf32>
    %230 = vector.multi_reduction <add>, %229, %cst_102 [1] : vector<16x16xf32> to vector<16xf32>
    %231 = vector.shape_cast %230 : vector<16xf32> to vector<16x1xf32>
    %232 = tpu.reciprocal %231 {approx = true} : vector<16x1xf32> -> vector<16x1xf32>
    %233 = vector.broadcast %232 : vector<16x1xf32> to vector<16x16xf32>
    %234 = arith.mulf %229, %233 : vector<16x16xf32>
    %cst_103 = arith.constant dense<0.000000e+00> : vector<16x8xf32>
    %235 = tpu.matmul %234, %222, %cst_103 {dimension_numbers = #tpu.dot_dimension_numbers<[1], [0], [0], [1], [0, 0, 1, 1], [], []>} : vector<16x16xf32>, vector<16x8xf32>, vector<16x8xf32> -> vector<16x8xf32>
    %c0_104 = arith.constant 0 : index
    %c8_105 = arith.constant 8 : index
    %236 = vector.load %arg19[%c0_104, %c8_105] : memref<16x32xf32, #tpu.memory_space<vmem>>, vector<16x8xf32>
    tpu.vector_store %arg19[%c0_104, %c8_105], %235 {strides = array<i32>} : memref<16x32xf32, #tpu.memory_space<vmem>>, vector<16x8xf32>,
    %237 = vector.extract_strided_slice %202 {offsets = [0, 16], sizes = [16, 8], strides = [1, 1]} : vector<16x96xf32> to vector<16x8xf32>
    %238 = vector.extract_strided_slice %202 {offsets = [0, 48], sizes = [16, 8], strides = [1, 1]} : vector<16x96xf32> to vector<16x8xf32>
    %239 = vector.extract_strided_slice %202 {offsets = [0, 80], sizes = [16, 8], strides = [1, 1]} : vector<16x96xf32> to vector<16x8xf32>
    %cst_106 = arith.constant dense<0.000000e+00> : vector<16x16xf32>
    %240 = tpu.matmul %237, %238, %cst_106 {dimension_numbers = #tpu.dot_dimension_numbers<[1], [1], [0], [0], [0, 0, 1, 0], [], []>} : vector<16x8xf32>, vector<16x8xf32>, vector<16x16xf32> -> vector<16x16xf32>
    %241 = arith.addf %240, %0 : vector<16x16xf32>
    %cst_107 = arith.constant dense<0xFF800000> : vector<16xf32>
    %242 = vector.multi_reduction <maximumf>, %241, %cst_107 [1] : vector<16x16xf32> to vector<16xf32>
    %243 = vector.shape_cast %242 : vector<16xf32> to vector<16x1xf32>
    %244 = vector.broadcast %243 : vector<16x1xf32> to vector<16x16xf32>
    %245 = arith.subf %241, %244 : vector<16x16xf32>
    %246 = math.exp %245 : vector<16x16xf32>
    %cst_108 = arith.constant dense<0.000000e+00> : vector<16xf32>
    %247 = vector.multi_reduction <add>, %246, %cst_108 [1] : vector<16x16xf32> to vector<16xf32>
    %248 = vector.shape_cast %247 : vector<16xf32> to vector<16x1xf32>
    %249 = tpu.reciprocal %248 {approx = true} : vector<16x1xf32> -> vector<16x1xf32>
    %250 = vector.broadcast %249 : vector<16x1xf32> to vector<16x16xf32>
    %251 = arith.mulf %246, %250 : vector<16x16xf32>
    %cst_109 = arith.constant dense<0.000000e+00> : vector<16x8xf32>
    %252 = tpu.matmul %251, %239, %cst_109 {dimension_numbers = #tpu.dot_dimension_numbers<[1], [0], [0], [1], [0, 0, 1, 1], [], []>} : vector<16x16xf32>, vector<16x8xf32>, vector<16x8xf32> -> vector<16x8xf32>
    %c0_110 = arith.constant 0 : index
    %c16_111 = arith.constant 16 : index
    %253 = vector.load %arg19[%c0_110, %c16_111] : memref<16x32xf32, #tpu.memory_space<vmem>>, vector<16x8xf32>
    tpu.vector_store %arg19[%c0_110, %c16_111], %252 {strides = array<i32>} : memref<16x32xf32, #tpu.memory_space<vmem>>, vector<16x8xf32>,
    %254 = vector.extract_strided_slice %202 {offsets = [0, 24], sizes = [16, 8], strides = [1, 1]} : vector<16x96xf32> to vector<16x8xf32>
    %255 = vector.extract_strided_slice %202 {offsets = [0, 56], sizes = [16, 8], strides = [1, 1]} : vector<16x96xf32> to vector<16x8xf32>
    %256 = vector.extract_strided_slice %202 {offsets = [0, 88], sizes = [16, 8], strides = [1, 1]} : vector<16x96xf32> to vector<16x8xf32>
    %cst_112 = arith.constant dense<0.000000e+00> : vector<16x16xf32>
    %257 = tpu.matmul %254, %255, %cst_112 {dimension_numbers = #tpu.dot_dimension_numbers<[1], [1], [0], [0], [0, 0, 1, 0], [], []>} : vector<16x8xf32>, vector<16x8xf32>, vector<16x16xf32> -> vector<16x16xf32>
    %258 = arith.addf %257, %0 : vector<16x16xf32>
    %cst_113 = arith.constant dense<0xFF800000> : vector<16xf32>
    %259 = vector.multi_reduction <maximumf>, %258, %cst_113 [1] : vector<16x16xf32> to vector<16xf32>
    %260 = vector.shape_cast %259 : vector<16xf32> to vector<16x1xf32>
    %261 = vector.broadcast %260 : vector<16x1xf32> to vector<16x16xf32>
    %262 = arith.subf %258, %261 : vector<16x16xf32>
    %263 = math.exp %262 : vector<16x16xf32>
    %cst_114 = arith.constant dense<0.000000e+00> : vector<16xf32>
    %264 = vector.multi_reduction <add>, %263, %cst_114 [1] : vector<16x16xf32> to vector<16xf32>
    %265 = vector.shape_cast %264 : vector<16xf32> to vector<16x1xf32>
    %266 = tpu.reciprocal %265 {approx = true} : vector<16x1xf32> -> vector<16x1xf32>
    %267 = vector.broadcast %266 : vector<16x1xf32> to vector<16x16xf32>
    %268 = arith.mulf %263, %267 : vector<16x16xf32>
    %cst_115 = arith.constant dense<0.000000e+00> : vector<16x8xf32>
    %269 = tpu.matmul %268, %256, %cst_115 {dimension_numbers = #tpu.dot_dimension_numbers<[1], [0], [0], [1], [0, 0, 1, 1], [], []>} : vector<16x16xf32>, vector<16x8xf32>, vector<16x8xf32> -> vector<16x8xf32>
    %c0_116 = arith.constant 0 : index
    %c24_117 = arith.constant 24 : index
    %270 = vector.load %arg19[%c0_116, %c24_117] : memref<16x32xf32, #tpu.memory_space<vmem>>, vector<16x8xf32>
    tpu.vector_store %arg19[%c0_116, %c24_117], %269 {strides = array<i32>} : memref<16x32xf32, #tpu.memory_space<vmem>>, vector<16x8xf32>,
    %c0_118 = arith.constant 0 : index
    %c0_119 = arith.constant 0 : index
    %271 = vector.load %arg19[%c0_118, %c0_119] : memref<16x32xf32, #tpu.memory_space<vmem>>, vector<16x32xf32>
    %c1_120 = arith.constant 1 : index
    %c0_121 = arith.constant 0 : index
    %c0_122 = arith.constant 0 : index
    %272 = vector.load %arg6[%c1_120, %c0_121, %c0_122] : memref<2x32x32xf32, #tpu.memory_space<vmem>>, vector<1x32x32xf32>
    %273 = vector.shape_cast %272 : vector<1x32x32xf32> to vector<32x32xf32>
    %cst_123 = arith.constant dense<0.000000e+00> : vector<16x32xf32>
    %274 = tpu.matmul %271, %273, %cst_123 {dimension_numbers = #tpu.dot_dimension_numbers<[1], [0], [0], [1], [0, 0, 1, 1], [], []>} : vector<16x32xf32>, vector<32x32xf32>, vector<16x32xf32> -> vector<16x32xf32>
    %c1_124 = arith.constant 1 : index
    %c0_125 = arith.constant 0 : index
    %c0_126 = arith.constant 0 : index
    %275 = vector.load %arg7[%c1_124, %c0_125, %c0_126] : memref<2x1x32xf32, #tpu.memory_space<vmem>>, vector<1x1x32xf32>
    %276 = vector.shape_cast %275 : vector<1x1x32xf32> to vector<1x32xf32>
    %277 = vector.broadcast %276 : vector<1x32xf32> to vector<16x32xf32>
    %278 = arith.addf %274, %277 : vector<16x32xf32>
    %279 = arith.addf %278, %195 : vector<16x32xf32>
    %c1_127 = arith.constant 1 : index
    %c0_128 = arith.constant 0 : index
    %c0_129 = arith.constant 0 : index
    %280 = vector.load %arg8[%c1_127, %c0_128, %c0_129] : memref<2x1x32xf32, #tpu.memory_space<vmem>>, vector<1x1x32xf32>
    %281 = vector.shape_cast %280 : vector<1x1x32xf32> to vector<1x32xf32>
    %c1_130 = arith.constant 1 : index
    %c0_131 = arith.constant 0 : index
    %c0_132 = arith.constant 0 : index
    %282 = vector.load %arg9[%c1_130, %c0_131, %c0_132] : memref<2x1x32xf32, #tpu.memory_space<vmem>>, vector<1x1x32xf32>
    %283 = vector.shape_cast %282 : vector<1x1x32xf32> to vector<1x32xf32>
    %cst_133 = arith.constant dense<0.000000e+00> : vector<16xf32>
    %284 = vector.multi_reduction <add>, %279, %cst_133 [1] : vector<16x32xf32> to vector<16xf32>
    %285 = vector.shape_cast %284 : vector<16xf32> to vector<16x1xf32>
    %cst_134 = arith.constant 3.200000e+01 : f32
    %286 = vector.broadcast %cst_134 : f32 to vector<16x1xf32>
    %287 = arith.divf %285, %286 : vector<16x1xf32>
    %288 = vector.broadcast %287 : vector<16x1xf32> to vector<16x32xf32>
    %289 = arith.subf %279, %288 : vector<16x32xf32>
    %290 = vector.broadcast %287 : vector<16x1xf32> to vector<16x32xf32>
    %291 = arith.subf %279, %290 : vector<16x32xf32>
    %292 = arith.mulf %289, %291 : vector<16x32xf32>
    %cst_135 = arith.constant dense<0.000000e+00> : vector<16xf32>
    %293 = vector.multi_reduction <add>, %292, %cst_135 [1] : vector<16x32xf32> to vector<16xf32>
    %294 = vector.shape_cast %293 : vector<16xf32> to vector<16x1xf32>
    %cst_136 = arith.constant 3.200000e+01 : f32
    %295 = vector.broadcast %cst_136 : f32 to vector<16x1xf32>
    %296 = arith.divf %294, %295 : vector<16x1xf32>
    %297 = vector.broadcast %287 : vector<16x1xf32> to vector<16x32xf32>
    %298 = arith.subf %279, %297 : vector<16x32xf32>
    %cst_137 = arith.constant 9.99999996E-13 : f32
    %299 = vector.broadcast %cst_137 : f32 to vector<16x1xf32>
    %300 = arith.addf %296, %299 : vector<16x1xf32>
    %301 = math.rsqrt %300 : vector<16x1xf32>
    %302 = vector.broadcast %301 : vector<16x1xf32> to vector<16x32xf32>
    %303 = arith.mulf %298, %302 : vector<16x32xf32>
    %304 = vector.broadcast %281 : vector<1x32xf32> to vector<16x32xf32>
    %305 = arith.mulf %303, %304 : vector<16x32xf32>
    %306 = vector.broadcast %283 : vector<1x32xf32> to vector<16x32xf32>
    %307 = arith.addf %305, %306 : vector<16x32xf32>
    %c1_138 = arith.constant 1 : index
    %c0_139 = arith.constant 0 : index
    %c0_140 = arith.constant 0 : index
    %308 = vector.load %arg10[%c1_138, %c0_139, %c0_140] : memref<2x32x64xf32, #tpu.memory_space<vmem>>, vector<1x32x64xf32>
    %309 = vector.shape_cast %308 : vector<1x32x64xf32> to vector<32x64xf32>
    %cst_141 = arith.constant dense<0.000000e+00> : vector<16x64xf32>
    %310 = tpu.matmul %307, %309, %cst_141 {dimension_numbers = #tpu.dot_dimension_numbers<[1], [0], [0], [1], [0, 0, 1, 1], [], []>} : vector<16x32xf32>, vector<32x64xf32>, vector<16x64xf32> -> vector<16x64xf32>
    %c1_142 = arith.constant 1 : index
    %c0_143 = arith.constant 0 : index
    %c0_144 = arith.constant 0 : index
    %311 = vector.load %arg11[%c1_142, %c0_143, %c0_144] : memref<2x1x64xf32, #tpu.memory_space<vmem>>, vector<1x1x64xf32>
    %312 = vector.shape_cast %311 : vector<1x1x64xf32> to vector<1x64xf32>
    %313 = vector.broadcast %312 : vector<1x64xf32> to vector<16x64xf32>
    %314 = arith.addf %310, %313 : vector<16x64xf32>
    %cst_145 = arith.constant 5.000000e-01 : f32
    %315 = vector.broadcast %cst_145 : f32 to vector<16x64xf32>
    %316 = arith.mulf %315, %314 : vector<16x64xf32>
    %cst_146 = arith.constant 4.471500e-02 : f32
    %317 = vector.broadcast %cst_146 : f32 to vector<16x64xf32>
    %318 = arith.mulf %317, %314 : vector<16x64xf32>
    %319 = arith.mulf %318, %314 : vector<16x64xf32>
    %320 = arith.mulf %319, %314 : vector<16x64xf32>
    %321 = arith.addf %314, %320 : vector<16x64xf32>
    %cst_147 = arith.constant 0.797884583 : f32
    %322 = vector.broadcast %cst_147 : f32 to vector<16x64xf32>
    %323 = arith.mulf %322, %321 : vector<16x64xf32>
    %324 = math.tanh %323 : vector<16x64xf32>
    %cst_148 = arith.constant 1.000000e+00 : f32
    %325 = vector.broadcast %cst_148 : f32 to vector<16x64xf32>
    %326 = arith.addf %325, %324 : vector<16x64xf32>
    %327 = arith.mulf %316, %326 : vector<16x64xf32>
    %c1_149 = arith.constant 1 : index
    %c0_150 = arith.constant 0 : index
    %c0_151 = arith.constant 0 : index
    %328 = vector.load %arg12[%c1_149, %c0_150, %c0_151] : memref<2x64x32xf32, #tpu.memory_space<vmem>>, vector<1x64x32xf32>
    %329 = vector.shape_cast %328 : vector<1x64x32xf32> to vector<64x32xf32>
    %cst_152 = arith.constant dense<0.000000e+00> : vector<16x32xf32>
    %330 = tpu.matmul %327, %329, %cst_152 {dimension_numbers = #tpu.dot_dimension_numbers<[1], [0], [0], [1], [0, 0, 1, 1], [], []>} : vector<16x64xf32>, vector<64x32xf32>, vector<16x32xf32> -> vector<16x32xf32>
    %c1_153 = arith.constant 1 : index
    %c0_154 = arith.constant 0 : index
    %c0_155 = arith.constant 0 : index
    %331 = vector.load %arg13[%c1_153, %c0_154, %c0_155] : memref<2x1x32xf32, #tpu.memory_space<vmem>>, vector<1x1x32xf32>
    %332 = vector.shape_cast %331 : vector<1x1x32xf32> to vector<1x32xf32>
    %333 = vector.broadcast %332 : vector<1x32xf32> to vector<16x32xf32>
    %334 = arith.addf %330, %333 : vector<16x32xf32>
    %335 = arith.addf %334, %307 : vector<16x32xf32>
    %c1_156 = arith.constant 1 : index
    %c0_157 = arith.constant 0 : index
    %c0_158 = arith.constant 0 : index
    %336 = vector.load %arg14[%c1_156, %c0_157, %c0_158] : memref<2x1x32xf32, #tpu.memory_space<vmem>>, vector<1x1x32xf32>
    %337 = vector.shape_cast %336 : vector<1x1x32xf32> to vector<1x32xf32>
    %c1_159 = arith.constant 1 : index
    %c0_160 = arith.constant 0 : index
    %c0_161 = arith.constant 0 : index
    %338 = vector.load %arg15[%c1_159, %c0_160, %c0_161] : memref<2x1x32xf32, #tpu.memory_space<vmem>>, vector<1x1x32xf32>
    %339 = vector.shape_cast %338 : vector<1x1x32xf32> to vector<1x32xf32>
    %cst_162 = arith.constant dense<0.000000e+00> : vector<16xf32>
    %340 = vector.multi_reduction <add>, %335, %cst_162 [1] : vector<16x32xf32> to vector<16xf32>
    %341 = vector.shape_cast %340 : vector<16xf32> to vector<16x1xf32>
    %cst_163 = arith.constant 3.200000e+01 : f32
    %342 = vector.broadcast %cst_163 : f32 to vector<16x1xf32>
    %343 = arith.divf %341, %342 : vector<16x1xf32>
    %344 = vector.broadcast %343 : vector<16x1xf32> to vector<16x32xf32>
    %345 = arith.subf %335, %344 : vector<16x32xf32>
    %346 = vector.broadcast %343 : vector<16x1xf32> to vector<16x32xf32>
    %347 = arith.subf %335, %346 : vector<16x32xf32>
    %348 = arith.mulf %345, %347 : vector<16x32xf32>
    %cst_164 = arith.constant dense<0.000000e+00> : vector<16xf32>
    %349 = vector.multi_reduction <add>, %348, %cst_164 [1] : vector<16x32xf32> to vector<16xf32>
    %350 = vector.shape_cast %349 : vector<16xf32> to vector<16x1xf32>
    %cst_165 = arith.constant 3.200000e+01 : f32
    %351 = vector.broadcast %cst_165 : f32 to vector<16x1xf32>
    %352 = arith.divf %350, %351 : vector<16x1xf32>
    %353 = vector.broadcast %343 : vector<16x1xf32> to vector<16x32xf32>
    %354 = arith.subf %335, %353 : vector<16x32xf32>
    %cst_166 = arith.constant 9.99999996E-13 : f32
    %355 = vector.broadcast %cst_166 : f32 to vector<16x1xf32>
    %356 = arith.addf %352, %355 : vector<16x1xf32>
    %357 = math.rsqrt %356 : vector<16x1xf32>
    %358 = vector.broadcast %357 : vector<16x1xf32> to vector<16x32xf32>
    %359 = arith.mulf %354, %358 : vector<16x32xf32>
    %360 = vector.broadcast %337 : vector<1x32xf32> to vector<16x32xf32>
    %361 = arith.mulf %359, %360 : vector<16x32xf32>
    %362 = vector.broadcast %339 : vector<1x32xf32> to vector<16x32xf32>
    %363 = arith.addf %361, %362 : vector<16x32xf32>
    %364 = vector.extract_strided_slice %363 {offsets = [0, 0], sizes = [1, 32], strides = [1, 1]} : vector<16x32xf32> to vector<1x32xf32>
    %365 = vector.extract_strided_slice %363 {offsets = [8, 0], sizes = [1, 32], strides = [1, 1]} : vector<16x32xf32> to vector<1x32xf32>
    %366 = tpu.concatenate %364, %365 in 0 : vector<1x32xf32>, vector<1x32xf32> -> vector<2x32xf32>
    %c0_167 = arith.constant 0 : index
    %c0_168 = arith.constant 0 : index
    %367 = vector.load %arg16[%c0_167, %c0_168] : memref<32x32xf32, #tpu.memory_space<vmem>>, vector<32x32xf32>
    %cst_169 = arith.constant dense<0.000000e+00> : vector<2x32xf32>
    %368 = tpu.matmul %366, %367, %cst_169 {dimension_numbers = #tpu.dot_dimension_numbers<[1], [0], [0], [1], [0, 0, 1, 1], [], []>} : vector<2x32xf32>, vector<32x32xf32>, vector<2x32xf32> -> vector<2x32xf32>
    %c0_170 = arith.constant 0 : index
    %c0_171 = arith.constant 0 : index
    %369 = vector.load %arg17[%c0_170, %c0_171] : memref<1x32xf32, #tpu.memory_space<vmem>>, vector<1x32xf32>
    %370 = vector.broadcast %369 : vector<1x32xf32> to vector<2x32xf32>
    %371 = arith.addf %368, %370 : vector<2x32xf32>
    %372 = math.tanh %371 : vector<2x32xf32>
    %c0_172 = arith.constant 0 : index
    %c0_173 = arith.constant 0 : index
    %373 = vector.load %arg18[%c0_172, %c0_173] : memref<2x32xf32, #tpu.memory_space<vmem>>, vector<2x32xf32>
    tpu.vector_store %arg18[%c0_172, %c0_173], %372 {strides = array<i32>} : memref<2x32xf32, #tpu.memory_space<vmem>>, vector<2x32xf32>,
    return
  }
}

</mosaic_0001>

<llo_original>
// kernel: bert_forward.1
$region0: #{bert_forward.1}
  #allocation0 [shape = 'u32[]', space=smem, size = 0x4, offset = 0x4, fixed_abs, tag = 'smem constant byte address 0x4 - core index']
  #allocation1 [shape = 'u32[144,128]{1,0:T(1,128)}', space=vmem, size = 0x12000, scoped, tag = 'internal scratch']
  #allocation2 [shape = 'f32[16,32]{1,0:T(8,128)}', space=vmem, size = 0x2000, scoped, tag = 'scratch operand']
  %s0 = inlined_call_operand.vmem [shape: f32[16,32], index: 0, kind: input, shape index: {}]
  %s1 = inlined_call_operand.vmem [shape: f32[16,16], index: 1, kind: input, shape index: {}]
  %s2 = inlined_call_operand.vmem [shape: f32[1,32], index: 2, kind: input, shape index: {}]
  %s3 = inlined_call_operand.vmem [shape: f32[1,32], index: 3, kind: input, shape index: {}]
  %s4 = inlined_call_operand.vmem [shape: f32[2,32,96], index: 4, kind: input, shape index: {}]
  %s5 = inlined_call_operand.vmem [shape: f32[2,1,96], index: 5, kind: input, shape index: {}]
  %s6 = inlined_call_operand.vmem [shape: f32[2,32,32], index: 6, kind: input, shape index: {}]
  %s7 = inlined_call_operand.vmem [shape: f32[2,1,32], index: 7, kind: input, shape index: {}]
  %s8 = inlined_call_operand.vmem [shape: f32[2,1,32], index: 8, kind: input, shape index: {}]
  %s9 = inlined_call_operand.vmem [shape: f32[2,1,32], index: 9, kind: input, shape index: {}]
  %s10 = inlined_call_operand.vmem [shape: f32[2,32,64], index: 10, kind: input, shape index: {}]
  %s11 = inlined_call_operand.vmem [shape: f32[2,1,64], index: 11, kind: input, shape index: {}]
  %s12 = inlined_call_operand.vmem [shape: f32[2,64,32], index: 12, kind: input, shape index: {}]
  %s13 = inlined_call_operand.vmem [shape: f32[2,1,32], index: 13, kind: input, shape index: {}]
  %s14 = inlined_call_operand.vmem [shape: f32[2,1,32], index: 14, kind: input, shape index: {}]
  %s15 = inlined_call_operand.vmem [shape: f32[2,1,32], index: 15, kind: input, shape index: {}]
  %s16 = inlined_call_operand.vmem [shape: f32[32,32], index: 16, kind: input, shape index: {}]
  %s17 = inlined_call_operand.vmem [shape: f32[1,32], index: 17, kind: input, shape index: {}]
  %s18 = inlined_call_operand.hbm [shape: f32[2,32], index: 18, kind: output, shape index: {}]
  %s19 = sld [smem:[#allocation0]]
  $region82: #{bert_forward.1} parent=0
    _
  %s21 = ssub.s32 1, %s19
  %s22 = scalar_select 0, %s21, %s19
  $region1: #{bert_forward.1} parent=0
    #allocation3 [shape = 'u8[1024]{0}', space=vmem, size = 0x400, scoped, tag = 'output window, operand 0, single buffered']
    #allocation4 [shape = 's32[1]{0}', space=sflag, size = 0x4, scoped, tag = 'scoped memory for bert_forward.1']
    %23 = vsyncpa [#allocation4], 0
    // Predicated region
    $region2: #{bert_forward.1} parent=1 // pred_check
      _
    $region3: #{bert_forward.1} parent=1 // pred_check_branch
      %25 = sbr.rel (0) target = $region5
    $region4: #{bert_forward.1} parent=1 // pred_region
      _
    $region5: #{bert_forward.1} parent=1 // pred_fallthru
      _
    // Predicated region
    $region6: #{bert_forward.1} parent=1 // pred_check
      _
    $region7: #{bert_forward.1} parent=1 // pred_check_branch
      %27 = sbr.rel (0) target = $region9
    $region8: #{bert_forward.1} parent=1 // pred_region
      _
    $region9: #{bert_forward.1} parent=1 // pred_fallthru
      _
    // Predicated region
    $region10: #{bert_forward.1} parent=1 // pred_check
      _
    $region11: #{bert_forward.1} parent=1 // pred_check_branch
      %29 = sbr.rel (0) target = $region13
    $region12: #{bert_forward.1} parent=1 // pred_region
      _
    $region13: #{bert_forward.1} parent=1 // pred_fallthru
      _
    // Predicated region
    $region14: #{bert_forward.1} parent=1 // pred_check
      _
    $region15: #{bert_forward.1} parent=1 // pred_check_branch
      %31 = sbr.rel (0) target = $region17
    $region16: #{bert_forward.1} parent=1 // pred_region
      _
    $region17: #{bert_forward.1} parent=1 // pred_fallthru
      _
    // Predicated region
    $region18: #{bert_forward.1} parent=1 // pred_check
      _
    $region19: #{bert_forward.1} parent=1 // pred_check_branch
      %33 = sbr.rel (0) target = $region21
    $region20: #{bert_forward.1} parent=1 // pred_region
      _
    $region21: #{bert_forward.1} parent=1 // pred_fallthru
      _
    // Predicated region
    $region22: #{bert_forward.1} parent=1 // pred_check
      _
    $region23: #{bert_forward.1} parent=1 // pred_check_branch
      %35 = sbr.rel (0) target = $region25
    $region24: #{bert_forward.1} parent=1 // pred_region
      _
    $region25: #{bert_forward.1} parent=1 // pred_fallthru
      _
    // Predicated region
    $region26: #{bert_forward.1} parent=1 // pred_check
      _
    $region27: #{bert_forward.1} parent=1 // pred_check_branch
      %37 = sbr.rel (0) target = $region29
    $region28: #{bert_forward.1} parent=1 // pred_region
      _
    $region29: #{bert_forward.1} parent=1 // pred_fallthru
      _
    // Predicated region
    $region30: #{bert_forward.1} parent=1 // pred_check
      _
    $region31: #{bert_forward.1} parent=1 // pred_check_branch
      %39 = sbr.rel (0) target = $region33
    $region32: #{bert_forward.1} parent=1 // pred_region
      _
    $region33: #{bert_forward.1} parent=1 // pred_fallthru
      _
    // Predicated region
    $region34: #{bert_forward.1} parent=1 // pred_check
      _
    $region35: #{bert_forward.1} parent=1 // pred_check_branch
      %41 = sbr.rel (0) target = $region37
    $region36: #{bert_forward.1} parent=1 // pred_region
      _
    $region37: #{bert_forward.1} parent=1 // pred_fallthru
      _
    // Predicated region
    $region38: #{bert_forward.1} parent=1 // pred_check
      _
    $region39: #{bert_forward.1} parent=1 // pred_check_branch
      %43 = sbr.rel (0) target = $region41
    $region40: #{bert_forward.1} parent=1 // pred_region
      _
    $region41: #{bert_forward.1} parent=1 // pred_fallthru
      _
    // Predicated region
    $region42: #{bert_forward.1} parent=1 // pred_check
      _
    $region43: #{bert_forward.1} parent=1 // pred_check_branch
      %45 = sbr.rel (0) target = $region45
    $region44: #{bert_forward.1} parent=1 // pred_region
      _
    $region45: #{bert_forward.1} parent=1 // pred_fallthru
      _
    // Predicated region
    $region46: #{bert_forward.1} parent=1 // pred_check
      _
    $region47: #{bert_forward.1} parent=1 // pred_check_branch
      %47 = sbr.rel (0) target = $region49
    $region48: #{bert_forward.1} parent=1 // pred_region
      _
    $region49: #{bert_forward.1} parent=1 // pred_fallthru
      _
    // Predicated region
    $region50: #{bert_forward.1} parent=1 // pred_check
      _
    $region51: #{bert_forward.1} parent=1 // pred_check_branch
      %49 = sbr.rel (0) target = $region53
    $region52: #{bert_forward.1} parent=1 // pred_region
      _
    $region53: #{bert_forward.1} parent=1 // pred_fallthru
      _
    // Predicated region
    $region54: #{bert_forward.1} parent=1 // pred_check
      _
    $region55: #{bert_forward.1} parent=1 // pred_check_branch
      %51 = sbr.rel (0) target = $region57
    $region56: #{bert_forward.1} parent=1 // pred_region
      _
    $region57: #{bert_forward.1} parent=1 // pred_fallthru
      _
    // Predicated region
    $region58: #{bert_forward.1} parent=1 // pred_check
      _
    $region59: #{bert_forward.1} parent=1 // pred_check_branch
      %53 = sbr.rel (0) target = $region61
    $region60: #{bert_forward.1} parent=1 // pred_region
      _
    $region61: #{bert_forward.1} parent=1 // pred_fallthru
      _
    // Predicated region
    $region62: #{bert_forward.1} parent=1 // pred_check
      _
    $region63: #{bert_forward.1} parent=1 // pred_check_branch
      %55 = sbr.rel (0) target = $region65
    $region64: #{bert_forward.1} parent=1 // pred_region
      _
    $region65: #{bert_forward.1} parent=1 // pred_fallthru
      _
    // Predicated region
    $region66: #{bert_forward.1} parent=1 // pred_check
      _
    $region67: #{bert_forward.1} parent=1 // pred_check_branch
      %57 = sbr.rel (0) target = $region69
    $region68: #{bert_forward.1} parent=1 // pred_region
      _
    $region69: #{bert_forward.1} parent=1 // pred_fallthru
      _
    // Predicated region
    $region70: #{bert_forward.1} parent=1 // pred_check
      _
    $region71: #{bert_forward.1} parent=1 // pred_check_branch
      %59 = sbr.rel (0) target = $region73
    $region72: #{bert_forward.1} parent=1 // pred_region
      _
    $region73: #{bert_forward.1} parent=1 // pred_fallthru
      _
    %v60 = vld [vmem:[%s1] sm:$0xff]
    %v61 = vld [vmem:[%s1 + $0x8] sm:$0xff]
    %v62 = vld [vmem:[%s0] sm:$0xff]
    %v63 = vld [vmem:[%s0 + $0x8] sm:$0xff]
    %v64 = vld [vmem:[%s2] sm:$0x1]
    %v65 = vld [vmem:[%s3] sm:$0x1]
    %vm66 = vcmask 261120
    %v67 = vsel %vm66, %v62, 0.0
    %68 = vadd.xlane.f32.xlu0 %v67
    %v69 = vpop.xlane.xlu0 %68
    %v70 = vsel %vm66, %v63, 0.0
    %71 = vadd.xlane.f32.xlu0 %v70
    %v72 = vpop.xlane.xlu0 %71
    %v73 = vrcp.pop 32.0
    %v74 = vmul.f32 %v69, %v73
    %v75 = vmul.f32 %v72, %v73
    %v76 = vsub.f32 %v62, %v74
    %v77 = vsub.f32 %v63, %v75
    %v78 = vmul.f32 %v76, %v76
    %v79 = vmul.f32 %v77, %v77
    %v80 = vsel %vm66, %v78, 0.0
    %81 = vadd.xlane.f32.xlu0 %v80
    %v82 = vpop.xlane.xlu0 %81
    %v83 = vsel %vm66, %v79, 0.0
    %84 = vadd.xlane.f32.xlu0 %v83
    %v85 = vpop.xlane.xlu0 %84
    %v86 = vmul.f32 %v82, %v73
    %v87 = vmul.f32 %v85, %v73
    %v88 = vadd.f32 %v86, 1e-12
    %v89 = vadd.f32 %v87, 1e-12
    %v90 = vrsqrt.pop %v88
    %v91 = vrsqrt.pop %v89
    %v92 = vmul.f32 %v76, %v90
    %v93 = vmul.f32 %v77, %v91
    %v95 = vlaneseq
    %v96 = vshrl.u32 %v95, 7
    %v97 = vsub.s32 0, %v96
    %v98 = vrot.slane %v64, %v97
    %v100 = vmul.f32 %v92, %v98
    %v101 = vmul.f32 %v93, %v98
    %v103 = vlaneseq
    %v104 = vshrl.u32 %v103, 7
    %v105 = vsub.s32 0, %v104
    %v106 = vrot.slane %v65, %v105
    %v108 = vadd.f32 %v100, %v106
    %v109 = vadd.f32 %v101, %v106
    %v110 = vld [vmem:[%s4] sm:$0xff]
    %v111 = vld [vmem:[%s4 + $0x8] sm:$0xff]
    %v112 = vld [vmem:[%s4 + $0x10] sm:$0xff]
    %v113 = vld [vmem:[%s4 + $0x18] sm:$0xff]
    %v114 = vld [vmem:[%s5] sm:$0x1]
    %v116 = vlaneseq
    %v117 = vshrl.u32 %v116, 7
    %v118 = vsub.s32 0, %v117
    %v119 = vrot.slane %v114, %v118
    %v122 = vsel %vm66, %v108, 0
    %v125 = vsel %vm66, %v109, 0
    %127 = vmatprep.subr.mxu0 0.0
    %128 = vmatpush1.msra.mxu0 %v110
    %129 = vmatprep.subr.mxu0 0.0
    %130 = vmatpush1.msra.mxu0 %v111
    %131 = vmatprep.subr.mxu0 0.0
    %132 = vmatpush1.msra.mxu0 %v112
    %133 = vmatprep.subr.mxu0 0.0
    %134 = vmatpush1.msra.mxu0 %v113
    %135 = vmatprep.subr.mxu0 0.0
    %136 = vmatpush1.msra.mxu0 0.0
    %137 = vmatprep.subr.mxu0 0.0
    %138 = vmatpush1.msra.mxu0 0.0
    %139 = vmatprep.subr.mxu0 0.0
    %140 = vmatpush1.msra.mxu0 0.0
    %141 = vmatprep.subr.mxu0 0.0
    %142 = vmatpush1.msra.mxu0 0.0
    %143 = vmatprep.subr.mxu0 0.0
    %144 = vmatpush1.msra.mxu0 0.0
    %145 = vmatprep.subr.mxu0 0.0
    %146 = vmatpush1.msra.mxu0 0.0
    %147 = vmatprep.subr.mxu0 0.0
    %148 = vmatpush1.msra.mxu0 0.0
    %149 = vmatprep.subr.mxu0 0.0
    %150 = vmatpush1.msra.mxu0 0.0
    %151 = vmatprep.subr.mxu0 0.0
    %152 = vmatpush1.msra.mxu0 0.0
    %153 = vmatprep.subr.mxu0 0.0
    %154 = vmatpush1.msra.mxu0 0.0
    %155 = vmatprep.subr.mxu0 0.0
    %156 = vmatpush1.msra.mxu0 0.0
    %157 = vmatprep.subr.mxu0 0.0
    %158 = vmatpush1.msra.mxu0 0.0
    %159 = vmatprep.subr.mxu0 0.0
    %160 = vmatpush1.msra.mxu0 0.0
    %161 = vmatprep.subr.mxu0 0.0
    %162 = vmatpush1.msra.mxu0 0.0
    %163 = vmatprep.subr.mxu0 0.0
    %164 = vmatpush1.msra.mxu0 0.0
    %165 = vmatprep.subr.mxu0 0.0
    %166 = vmatpush1.msra.mxu0 0.0
    %167 = vmatprep.subr.mxu0 0.0
    %168 = vmatpush1.msra.mxu0 0.0
    %169 = vmatprep.subr.mxu0 0.0
    %170 = vmatpush1.msra.mxu0 0.0
    %171 = vmatprep.subr.mxu0 0.0
    %172 = vmatpush1.msra.mxu0 0.0
    %173 = vmatprep.subr.mxu0 0.0
    %174 = vmatpush1.msra.mxu0 0.0
    %175 = vmatprep.subr.mxu0 0.0
    %176 = vmatpush1.msra.mxu0 0.0
    %177 = vmatprep.subr.mxu0 0.0
    %178 = vmatpush1.msra.mxu0 0.0
    %179 = vmatprep.subr.mxu0 0.0
    %180 = vmatpush1.msra.mxu0 0.0
    %181 = vmatprep.subr.mxu0 0.0
    %182 = vmatpush1.msra.mxu0 0.0
    %183 = vmatprep.subr.mxu0 0.0
    %184 = vmatpush1.msra.mxu0 0.0
    %185 = vmatprep.subr.mxu0 0.0
    %186 = vmatpush1.msra.mxu0 0.0
    %187 = vmatprep.subr.mxu0 0.0
    %188 = vmatpush1.msra.mxu0 0.0
    %189 = vmatprep.subr.mxu0 0.0
    %190 = vmatpush1.msra.mxu0 0.0
    %191 = vmatprep.mubr.f32.mxu0 0.0
    %192 = vmatmul.mubr.f32.gmra.mrb[0].mxu0 %v122
    %v193 = vpop.f32.mrb[0].mxu0
    %v194 = vadd.f32 %v119, %v193
    %v195 = vpop.f32.mrb[0].mxu0
    %196 = vmatprep.mubr.f32.mxu0 0.0
    %197 = vmatmul.mubr.f32.gmra.mrb[0].mxu0 %v125
    %v198 = vpop.f32.mrb[0].mxu0
    %v199 = vadd.f32 %v119, %v198
    %v200 = vpop.f32.mrb[0].mxu0
    %201 = vdwg.mxu0
    %204 = vrot.lane.b32.xlu0 %v194, 96
    %v205 = vpop.permute.xlu0 %204
    %206 = vrot.lane.b32.xlu0 %v199, 96
    %v207 = vpop.permute.xlu0 %206
    %vm208 = vcmask 64512
    %v209 = vsel %vm208, %v194, 0
    %v211 = vsel %vm208, %v199, 0
    %v213 = vsel %vm208, %v205, 0
    %v215 = vsel %vm208, %v207, 0
    %217 = vmatprep.subr.mxu0 0.0
    %218 = vmatpush1.xpose.msra.mxu0 %v213
    %219 = vmatprep.subr.mxu0 0.0
    %220 = vmatpush1.xpose.msra.mxu0 %v215
    %221 = vmatprep.subr.mxu0 0.0
    %222 = vmatpush1.xpose.msra.mxu0 0.0
    %223 = vmatprep.subr.mxu0 0.0
    %224 = vmatpush1.xpose.msra.mxu0 0.0
    %225 = vmatprep.subr.mxu0 0.0
    %226 = vmatpush1.xpose.msra.mxu0 0.0
    %227 = vmatprep.subr.mxu0 0.0
    %228 = vmatpush1.xpose.msra.mxu0 0.0
    %229 = vmatprep.subr.mxu0 0.0
    %230 = vmatpush1.xpose.msra.mxu0 0.0
    %231 = vmatprep.subr.mxu0 0.0
    %232 = vmatpush1.xpose.msra.mxu0 0.0
    %233 = vmatprep.subr.mxu0 0.0
    %234 = vmatpush1.xpose.msra.mxu0 0.0
    %235 = vmatprep.subr.mxu0 0.0
    %236 = vmatpush1.xpose.msra.mxu0 0.0
    %237 = vmatprep.subr.mxu0 0.0
    %238 = vmatpush1.xpose.msra.mxu0 0.0
    %239 = vmatprep.subr.mxu0 0.0
    %240 = vmatpush1.xpose.msra.mxu0 0.0
    %241 = vmatprep.subr.mxu0 0.0
    %242 = vmatpush1.xpose.msra.mxu0 0.0
    %243 = vmatprep.subr.mxu0 0.0
    %244 = vmatpush1.xpose.msra.mxu0 0.0
    %245 = vmatprep.subr.mxu0 0.0
    %246 = vmatpush1.xpose.msra.mxu0 0.0
    %247 = vmatprep.subr.mxu0 0.0
    %248 = vmatpush1.xpose.msra.mxu0 0.0
    %249 = vmatprep.subr.mxu0 0.0
    %250 = vmatpush1.xpose.msra.mxu0 0.0
    %251 = vmatprep.subr.mxu0 0.0
    %252 = vmatpush1.xpose.msra.mxu0 0.0
    %253 = vmatprep.subr.mxu0 0.0
    %254 = vmatpush1.xpose.msra.mxu0 0.0
    %255 = vmatprep.subr.mxu0 0.0
    %256 = vmatpush1.xpose.msra.mxu0 0.0
    %257 = vmatprep.subr.mxu0 0.0
    %258 = vmatpush1.xpose.msra.mxu0 0.0
    %259 = vmatprep.subr.mxu0 0.0
    %260 = vmatpush1.xpose.msra.mxu0 0.0
    %261 = vmatprep.subr.mxu0 0.0
    %262 = vmatpush1.xpose.msra.mxu0 0.0
    %263 = vmatprep.subr.mxu0 0.0
    %264 = vmatpush1.xpose.msra.mxu0 0.0
    %265 = vmatprep.subr.mxu0 0.0
    %266 = vmatpush1.xpose.msra.mxu0 0.0
    %267 = vmatprep.subr.mxu0 0.0
    %268 = vmatpush1.xpose.msra.mxu0 0.0
    %269 = vmatprep.subr.mxu0 0.0
    %270 = vmatpush1.xpose.msra.mxu0 0.0
    %271 = vmatprep.subr.mxu0 0.0
    %272 = vmatpush1.xpose.msra.mxu0 0.0
    %273 = vmatprep.subr.mxu0 0.0
    %274 = vmatpush1.xpose.msra.mxu0 0.0
    %275 = vmatprep.subr.mxu0 0.0
    %276 = vmatpush1.xpose.msra.mxu0 0.0
    %277 = vmatprep.subr.mxu0 0.0
    %278 = vmatpush1.xpose.msra.mxu0 0.0
    %279 = vmatprep.subr.mxu0 0.0
    %280 = vmatpush1.xpose.msra.mxu0 0.0
    %281 = vmatprep.mubr.f32.mxu0 0.0
    %282 = vmatmul.mubr.f32.gmra.mrb[0].mxu0 %v209
    %v283 = vpop.f32.mrb[0].mxu0
    %v284 = vadd.f32 %v60, %v283
    %v285 = vpop.f32.mrb[0].mxu0
    %286 = vmatprep.mubr.f32.mxu0 0.0
    %287 = vmatmul.mubr.f32.gmra.mrb[0].mxu0 %v211
    %v288 = vpop.f32.mrb[0].mxu0
    %v289 = vadd.f32 %v61, %v288
    %v290 = vpop.f32.mrb[0].mxu0
    %291 = vdwg.mxu0
    %vm292 = vcmask 130048
    %v293 = vsel %vm292, %v284, -inf
    %294 = vmax.xlane.f32.xlu0 %v293
    %v295 = vpop.xlane.xlu0 %294
    %v296 = vsel %vm292, %v289, -inf
    %297 = vmax.xlane.f32.xlu0 %v296
    %v298 = vpop.xlane.xlu0 %297
    %v299 = vsub.f32 %v284, %v295
    %v300 = vsub.f32 %v289, %v298
    %v301 = vmul.f32 %v299, 1.442695
    %v302 = vpow.pop %v301
    %v303 = vmul.f32 %v300, 1.442695
    %v304 = vpow.pop %v303
    %v305 = vsel %vm292, %v302, 0.0
    %306 = vadd.xlane.f32.xlu0 %v305
    %v307 = vpop.xlane.xlu0 %306
    %v308 = vsel %vm292, %v304, 0.0
    %309 = vadd.xlane.f32.xlu0 %v308
    %v310 = vpop.xlane.xlu0 %309
    %v311 = vrcp.pop %v307
    %v312 = vrcp.pop %v310
    %v313 = vmul.f32 %v302, %v311
    %v314 = vmul.f32 %v304, %v312
    %315 = vrot.lane.b32.xlu0 %v194, 64
    %v316 = vpop.permute.xlu0 %315
    %317 = vrot.lane.b32.xlu0 %v199, 64
    %v318 = vpop.permute.xlu0 %317
    %v322 = vsel %vm292, %v313, 0
    %v325 = vsel %vm292, %v314, 0
    %327 = vmatprep.subr.mxu0 0.0
    %328 = vmatpush1.msra.mxu0 %v316
    %329 = vmatprep.subr.mxu0 0.0
    %330 = vmatpush1.msra.mxu0 %v318
    %331 = vmatprep.subr.mxu0 0.0
    %332 = vmatpush1.msra.mxu0 0.0
    %333 = vmatprep.subr.mxu0 0.0
    %334 = vmatpush1.msra.mxu0 0.0
    %335 = vmatprep.subr.mxu0 0.0
    %336 = vmatpush1.msra.mxu0 0.0
    %337 = vmatprep.subr.mxu0 0.0
    %338 = vmatpush1.msra.mxu0 0.0
    %339 = vmatprep.subr.mxu0 0.0
    %340 = vmatpush1.msra.mxu0 0.0
    %341 = vmatprep.subr.mxu0 0.0
    %342 = vmatpush1.msra.mxu0 0.0
    %343 = vmatprep.subr.mxu0 0.0
    %344 = vmatpush1.msra.mxu0 0.0
    %345 = vmatprep.subr.mxu0 0.0
    %346 = vmatpush1.msra.mxu0 0.0
    %347 = vmatprep.subr.mxu0 0.0
    %348 = vmatpush1.msra.mxu0 0.0
    %349 = vmatprep.subr.mxu0 0.0
    %350 = vmatpush1.msra.mxu0 0.0
    %351 = vmatprep.subr.mxu0 0.0
    %352 = vmatpush1.msra.mxu0 0.0
    %353 = vmatprep.subr.mxu0 0.0
    %354 = vmatpush1.msra.mxu0 0.0
    %355 = vmatprep.subr.mxu0 0.0
    %356 = vmatpush1.msra.mxu0 0.0
    %357 = vmatprep.subr.mxu0 0.0
    %358 = vmatpush1.msra.mxu0 0.0
    %359 = vmatprep.subr.mxu0 0.0
    %360 = vmatpush1.msra.mxu0 0.0
    %361 = vmatprep.subr.mxu0 0.0
    %362 = vmatpush1.msra.mxu0 0.0
    %363 = vmatprep.subr.mxu0 0.0
    %364 = vmatpush1.msra.mxu0 0.0
    %365 = vmatprep.subr.mxu0 0.0
    %366 = vmatpush1.msra.mxu0 0.0
    %367 = vmatprep.subr.mxu0 0.0
    %368 = vmatpush1.msra.mxu0 0.0
    %369 = vmatprep.subr.mxu0 0.0
    %370 = vmatpush1.msra.mxu0 0.0
    %371 = vmatprep.subr.mxu0 0.0
    %372 = vmatpush1.msra.mxu0 0.0
    %373 = vmatprep.subr.mxu0 0.0
    %374 = vmatpush1.msra.mxu0 0.0
    %375 = vmatprep.subr.mxu0 0.0
    %376 = vmatpush1.msra.mxu0 0.0
    %377 = vmatprep.subr.mxu0 0.0
    %378 = vmatpush1.msra.mxu0 0.0
    %379 = vmatprep.subr.mxu0 0.0
    %380 = vmatpush1.msra.mxu0 0.0
    %381 = vmatprep.subr.mxu0 0.0
    %382 = vmatpush1.msra.mxu0 0.0
    %383 = vmatprep.subr.mxu0 0.0
    %384 = vmatpush1.msra.mxu0 0.0
    %385 = vmatprep.subr.mxu0 0.0
    %386 = vmatpush1.msra.mxu0 0.0
    %387 = vmatprep.subr.mxu0 0.0
    %388 = vmatpush1.msra.mxu0 0.0
    %389 = vmatprep.subr.mxu0 0.0
    %390 = vmatpush1.msra.mxu0 0.0
    %391 = vmatprep.mubr.f32.mxu0 0.0
    %392 = vmatmul.mubr.f32.gmra.mrb[0].mxu0 %v322
    %v393 = vpop.f32.mrb[0].mxu0
    %v394 = vadd.f32 0.0, %v393
    %v395 = vpop.f32.mrb[0].mxu0
    %396 = vmatprep.mubr.f32.mxu0 0.0
    %397 = vmatmul.mubr.f32.gmra.mrb[0].mxu0 %v325
    %v398 = vpop.f32.mrb[0].mxu0
    %v399 = vadd.f32 0.0, %v398
    %v400 = vpop.f32.mrb[0].mxu0
    %401 = vdwg.mxu0
    %402 = vst.msk [vmem:[#allocation2] sm:$0xff] %vm208, %v394
    %403 = vst.msk [vmem:[#allocation2 + $0x8] sm:$0xff] %vm208, %v399
    %404 = vrot.lane.b32.xlu0 %v194, 120
    %v405 = vpop.permute.xlu0 %404
    %406 = vrot.lane.b32.xlu0 %v199, 120
    %v407 = vpop.permute.xlu0 %406
    %408 = vrot.lane.b32.xlu0 %v194, 88
    %v409 = vpop.permute.xlu0 %408
    %410 = vrot.lane.b32.xlu0 %v199, 88
    %v411 = vpop.permute.xlu0 %410
    %v412 = vsel %vm208, %v405, 0
    %v414 = vsel %vm208, %v407, 0
    %v416 = vsel %vm208, %v409, 0
    %v418 = vsel %vm208, %v411, 0
    %420 = vmatprep.subr.mxu0 0.0
    %421 = vmatpush1.xpose.msra.mxu0 %v416
    %422 = vmatprep.subr.mxu0 0.0
    %423 = vmatpush1.xpose.msra.mxu0 %v418
    %424 = vmatprep.subr.mxu0 0.0
    %425 = vmatpush1.xpose.msra.mxu0 0.0
    %426 = vmatprep.subr.mxu0 0.0
    %427 = vmatpush1.xpose.msra.mxu0 0.0
    %428 = vmatprep.subr.mxu0 0.0
    %429 = vmatpush1.xpose.msra.mxu0 0.0
    %430 = vmatprep.subr.mxu0 0.0
    %431 = vmatpush1.xpose.msra.mxu0 0.0
    %432 = vmatprep.subr.mxu0 0.0
    %433 = vmatpush1.xpose.msra.mxu0 0.0
    %434 = vmatprep.subr.mxu0 0.0
    %435 = vmatpush1.xpose.msra.mxu0 0.0
    %436 = vmatprep.subr.mxu0 0.0
    %437 = vmatpush1.xpose.msra.mxu0 0.0
    %438 = vmatprep.subr.mxu0 0.0
    %439 = vmatpush1.xpose.msra.mxu0 0.0
    %440 = vmatprep.subr.mxu0 0.0
    %441 = vmatpush1.xpose.msra.mxu0 0.0
    %442 = vmatprep.subr.mxu0 0.0
    %443 = vmatpush1.xpose.msra.mxu0 0.0
    %444 = vmatprep.subr.mxu0 0.0
    %445 = vmatpush1.xpose.msra.mxu0 0.0
    %446 = vmatprep.subr.mxu0 0.0
    %447 = vmatpush1.xpose.msra.mxu0 0.0
    %448 = vmatprep.subr.mxu0 0.0
    %449 = vmatpush1.xpose.msra.mxu0 0.0
    %450 = vmatprep.subr.mxu0 0.0
    %451 = vmatpush1.xpose.msra.mxu0 0.0
    %452 = vmatprep.subr.mxu0 0.0
    %453 = vmatpush1.xpose.msra.mxu0 0.0
    %454 = vmatprep.subr.mxu0 0.0
    %455 = vmatpush1.xpose.msra.mxu0 0.0
    %456 = vmatprep.subr.mxu0 0.0
    %457 = vmatpush1.xpose.msra.mxu0 0.0
    %458 = vmatprep.subr.mxu0 0.0
    %459 = vmatpush1.xpose.msra.mxu0 0.0
    %460 = vmatprep.subr.mxu0 0.0
    %461 = vmatpush1.xpose.msra.mxu0 0.0
    %462 = vmatprep.subr.mxu0 0.0
    %463 = vmatpush1.xpose.msra.mxu0 0.0
    %464 = vmatprep.subr.mxu0 0.0
    %465 = vmatpush1.xpose.msra.mxu0 0.0
    %466 = vmatprep.subr.mxu0 0.0
    %467 = vmatpush1.xpose.msra.mxu0 0.0
    %468 = vmatprep.subr.mxu0 0.0
    %469 = vmatpush1.xpose.msra.mxu0 0.0
    %470 = vmatprep.subr.mxu0 0.0
    %471 = vmatpush1.xpose.msra.mxu0 0.0
    %472 = vmatprep.subr.mxu0 0.0
    %473 = vmatpush1.xpose.msra.mxu0 0.0
    %474 = vmatprep.subr.mxu0 0.0
    %475 = vmatpush1.xpose.msra.mxu0 0.0
    %476 = vmatprep.subr.mxu0 0.0
    %477 = vmatpush1.xpose.msra.mxu0 0.0
    %478 = vmatprep.subr.mxu0 0.0
    %479 = vmatpush1.xpose.msra.mxu0 0.0
    %480 = vmatprep.subr.mxu0 0.0
    %481 = vmatpush1.xpose.msra.mxu0 0.0
    %482 = vmatprep.subr.mxu0 0.0
    %483 = vmatpush1.xpose.msra.mxu0 0.0
    %484 = vmatprep.mubr.f32.mxu0 0.0
    %485 = vmatmul.mubr.f32.gmra.mrb[0].mxu0 %v412
    %v486 = vpop.f32.mrb[0].mxu0
    %v487 = vadd.f32 %v60, %v486
    %v488 = vpop.f32.mrb[0].mxu0
    %489 = vmatprep.mubr.f32.mxu0 0.0
    %490 = vmatmul.mubr.f32.gmra.mrb[0].mxu0 %v414
    %v491 = vpop.f32.mrb[0].mxu0
    %v492 = vadd.f32 %v61, %v491
    %v493 = vpop.f32.mrb[0].mxu0
    %494 = vdwg.mxu0
    %v495 = vsel %vm292, %v487, -inf
    %496 = vmax.xlane.f32.xlu0 %v495
    %v497 = vpop.xlane.xlu0 %496
    %v498 = vsel %vm292, %v492, -inf
    %499 = vmax.xlane.f32.xlu0 %v498
    %v500 = vpop.xlane.xlu0 %499
    %v501 = vsub.f32 %v487, %v497
    %v502 = vsub.f32 %v492, %v500
    %v503 = vmul.f32 %v501, 1.442695
    %v504 = vpow.pop %v503
    %v505 = vmul.f32 %v502, 1.442695
    %v506 = vpow.pop %v505
    %v507 = vsel %vm292, %v504, 0.0
    %508 = vadd.xlane.f32.xlu0 %v507
    %v509 = vpop.xlane.xlu0 %508
    %v510 = vsel %vm292, %v506, 0.0
    %511 = vadd.xlane.f32.xlu0 %v510
    %v512 = vpop.xlane.xlu0 %511
    %v513 = vrcp.pop %v509
    %v514 = vrcp.pop %v512
    %v515 = vmul.f32 %v504, %v513
    %v516 = vmul.f32 %v506, %v514
    %517 = vrot.lane.b32.xlu0 %v194, 56
    %v518 = vpop.permute.xlu0 %517
    %519 = vrot.lane.b32.xlu0 %v199, 56
    %v520 = vpop.permute.xlu0 %519
    %v524 = vsel %vm292, %v515, 0
    %v527 = vsel %vm292, %v516, 0
    %529 = vmatprep.subr.mxu0 0.0
    %530 = vmatpush1.msra.mxu0 %v518
    %531 = vmatprep.subr.mxu0 0.0
    %532 = vmatpush1.msra.mxu0 %v520
    %533 = vmatprep.subr.mxu0 0.0
    %534 = vmatpush1.msra.mxu0 0.0
    %535 = vmatprep.subr.mxu0 0.0
    %536 = vmatpush1.msra.mxu0 0.0
    %537 = vmatprep.subr.mxu0 0.0
    %538 = vmatpush1.msra.mxu0 0.0
    %539 = vmatprep.subr.mxu0 0.0
    %540 = vmatpush1.msra.mxu0 0.0
    %541 = vmatprep.subr.mxu0 0.0
    %542 = vmatpush1.msra.mxu0 0.0
    %543 = vmatprep.subr.mxu0 0.0
    %544 = vmatpush1.msra.mxu0 0.0
    %545 = vmatprep.subr.mxu0 0.0
    %546 = vmatpush1.msra.mxu0 0.0
    %547 = vmatprep.subr.mxu0 0.0
    %548 = vmatpush1.msra.mxu0 0.0
    %549 = vmatprep.subr.mxu0 0.0
    %550 = vmatpush1.msra.mxu0 0.0
    %551 = vmatprep.subr.mxu0 0.0
    %552 = vmatpush1.msra.mxu0 0.0
    %553 = vmatprep.subr.mxu0 0.0
    %554 = vmatpush1.msra.mxu0 0.0
    %555 = vmatprep.subr.mxu0 0.0
    %556 = vmatpush1.msra.mxu0 0.0
    %557 = vmatprep.subr.mxu0 0.0
    %558 = vmatpush1.msra.mxu0 0.0
    %559 = vmatprep.subr.mxu0 0.0
    %560 = vmatpush1.msra.mxu0 0.0
    %561 = vmatprep.subr.mxu0 0.0
    %562 = vmatpush1.msra.mxu0 0.0
    %563 = vmatprep.subr.mxu0 0.0
    %564 = vmatpush1.msra.mxu0 0.0
    %565 = vmatprep.subr.mxu0 0.0
    %566 = vmatpush1.msra.mxu0 0.0
    %567 = vmatprep.subr.mxu0 0.0
    %568 = vmatpush1.msra.mxu0 0.0
    %569 = vmatprep.subr.mxu0 0.0
    %570 = vmatpush1.msra.mxu0 0.0
    %571 = vmatprep.subr.mxu0 0.0
    %572 = vmatpush1.msra.mxu0 0.0
    %573 = vmatprep.subr.mxu0 0.0
    %574 = vmatpush1.msra.mxu0 0.0
    %575 = vmatprep.subr.mxu0 0.0
    %576 = vmatpush1.msra.mxu0 0.0
    %577 = vmatprep.subr.mxu0 0.0
    %578 = vmatpush1.msra.mxu0 0.0
    %579 = vmatprep.subr.mxu0 0.0
    %580 = vmatpush1.msra.mxu0 0.0
    %581 = vmatprep.subr.mxu0 0.0
    %582 = vmatpush1.msra.mxu0 0.0
    %583 = vmatprep.subr.mxu0 0.0
    %584 = vmatpush1.msra.mxu0 0.0
    %585 = vmatprep.subr.mxu0 0.0
    %586 = vmatpush1.msra.mxu0 0.0
    %587 = vmatprep.subr.mxu0 0.0
    %588 = vmatpush1.msra.mxu0 0.0
    %589 = vmatprep.subr.mxu0 0.0
    %590 = vmatpush1.msra.mxu0 0.0
    %591 = vmatprep.subr.mxu0 0.0
    %592 = vmatpush1.msra.mxu0 0.0
    %593 = vmatprep.mubr.f32.mxu0 0.0
    %594 = vmatmul.mubr.f32.gmra.mrb[0].mxu0 %v524
    %v595 = vpop.f32.mrb[0].mxu0
    %v596 = vadd.f32 0.0, %v595
    %v597 = vpop.f32.mrb[0].mxu0
    %598 = vmatprep.mubr.f32.mxu0 0.0
    %599 = vmatmul.mubr.f32.gmra.mrb[0].mxu0 %v527
    %v600 = vpop.f32.mrb[0].mxu0
    %v601 = vadd.f32 0.0, %v600
    %v602 = vpop.f32.mrb[0].mxu0
    %603 = vdwg.mxu0
    %606 = vrot.lane.b32.xlu0 %v596, 8
    %v607 = vpop.permute.xlu0 %606
    %608 = vrot.lane.b32.xlu0 %v601, 8
    %v609 = vpop.permute.xlu0 %608
    %vm612 = vcmask 130112
    %613 = vst.msk [vmem:[#allocation2] sm:$0xff] %vm612, %v607
    %614 = vst.msk [vmem:[#allocation2 + $0x8] sm:$0xff] %vm612, %v609
    %615 = vrot.lane.b32.xlu0 %v194, 112
    %v616 = vpop.permute.xlu0 %615
    %617 = vrot.lane.b32.xlu0 %v199, 112
    %v618 = vpop.permute.xlu0 %617
    %619 = vrot.lane.b32.xlu0 %v194, 80
    %v620 = vpop.permute.xlu0 %619
    %621 = vrot.lane.b32.xlu0 %v199, 80
    %v622 = vpop.permute.xlu0 %621
    %v623 = vsel %vm208, %v616, 0
    %v625 = vsel %vm208, %v618, 0
    %v627 = vsel %vm208, %v620, 0
    %v629 = vsel %vm208, %v622, 0
    %631 = vmatprep.subr.mxu0 0.0
    %632 = vmatpush1.xpose.msra.mxu0 %v627
    %633 = vmatprep.subr.mxu0 0.0
    %634 = vmatpush1.xpose.msra.mxu0 %v629
    %635 = vmatprep.subr.mxu0 0.0
    %636 = vmatpush1.xpose.msra.mxu0 0.0
    %637 = vmatprep.subr.mxu0 0.0
    %638 = vmatpush1.xpose.msra.mxu0 0.0
    %639 = vmatprep.subr.mxu0 0.0
    %640 = vmatpush1.xpose.msra.mxu0 0.0
    %641 = vmatprep.subr.mxu0 0.0
    %642 = vmatpush1.xpose.msra.mxu0 0.0
    %643 = vmatprep.subr.mxu0 0.0
    %644 = vmatpush1.xpose.msra.mxu0 0.0
    %645 = vmatprep.subr.mxu0 0.0
    %646 = vmatpush1.xpose.msra.mxu0 0.0
    %647 = vmatprep.subr.mxu0 0.0
    %648 = vmatpush1.xpose.msra.mxu0 0.0
    %649 = vmatprep.subr.mxu0 0.0
    %650 = vmatpush1.xpose.msra.mxu0 0.0
    %651 = vmatprep.subr.mxu0 0.0
    %652 = vmatpush1.xpose.msra.mxu0 0.0
    %653 = vmatprep.subr.mxu0 0.0
    %654 = vmatpush1.xpose.msra.mxu0 0.0
    %655 = vmatprep.subr.mxu0 0.0
    %656 = vmatpush1.xpose.msra.mxu0 0.0
    %657 = vmatprep.subr.mxu0 0.0
    %658 = vmatpush1.xpose.msra.mxu0 0.0
    %659 = vmatprep.subr.mxu0 0.0
    %660 = vmatpush1.xpose.msra.mxu0 0.0
    %661 = vmatprep.subr.mxu0 0.0
    %662 = vmatpush1.xpose.msra.mxu0 0.0
    %663 = vmatprep.subr.mxu0 0.0
    %664 = vmatpush1.xpose.msra.mxu0 0.0
    %665 = vmatprep.subr.mxu0 0.0
    %666 = vmatpush1.xpose.msra.mxu0 0.0
    %667 = vmatprep.subr.mxu0 0.0
    %668 = vmatpush1.xpose.msra.mxu0 0.0
    %669 = vmatprep.subr.mxu0 0.0
    %670 = vmatpush1.xpose.msra.mxu0 0.0
    %671 = vmatprep.subr.mxu0 0.0
    %672 = vmatpush1.xpose.msra.mxu0 0.0
    %673 = vmatprep.subr.mxu0 0.0
    %674 = vmatpush1.xpose.msra.mxu0 0.0
    %675 = vmatprep.subr.mxu0 0.0
    %676 = vmatpush1.xpose.msra.mxu0 0.0
    %677 = vmatprep.subr.mxu0 0.0
    %678 = vmatpush1.xpose.msra.mxu0 0.0
    %679 = vmatprep.subr.mxu0 0.0
    %680 = vmatpush1.xpose.msra.mxu0 0.0
    %681 = vmatprep.subr.mxu0 0.0
    %682 = vmatpush1.xpose.msra.mxu0 0.0
    %683 = vmatprep.subr.mxu0 0.0
    %684 = vmatpush1.xpose.msra.mxu0 0.0
    %685 = vmatprep.subr.mxu0 0.0
    %686 = vmatpush1.xpose.msra.mxu0 0.0
    %687 = vmatprep.subr.mxu0 0.0
    %688 = vmatpush1.xpose.msra.mxu0 0.0
    %689 = vmatprep.subr.mxu0 0.0
    %690 = vmatpush1.xpose.msra.mxu0 0.0
    %691 = vmatprep.subr.mxu0 0.0
    %692 = vmatpush1.xpose.msra.mxu0 0.0
    %693 = vmatprep.subr.mxu0 0.0
    %694 = vmatpush1.xpose.msra.mxu0 0.0
    %695 = vmatprep.mubr.f32.mxu0 0.0
    %696 = vmatmul.mubr.f32.gmra.mrb[0].mxu0 %v623
    %v697 = vpop.f32.mrb[0].mxu0
    %v698 = vadd.f32 %v60, %v697
    %v699 = vpop.f32.mrb[0].mxu0
    %700 = vmatprep.mubr.f32.mxu0 0.0
    %701 = vmatmul.mubr.f32.gmra.mrb[0].mxu0 %v625
    %v702 = vpop.f32.mrb[0].mxu0
    %v703 = vadd.f32 %v61, %v702
    %v704 = vpop.f32.mrb[0].mxu0
    %705 = vdwg.mxu0
    %v706 = vsel %vm292, %v698, -inf
    %707 = vmax.xlane.f32.xlu0 %v706
    %v708 = vpop.xlane.xlu0 %707
    %v709 = vsel %vm292, %v703, -inf
    %710 = vmax.xlane.f32.xlu0 %v709
    %v711 = vpop.xlane.xlu0 %710
    %v712 = vsub.f32 %v698, %v708
    %v713 = vsub.f32 %v703, %v711
    %v714 = vmul.f32 %v712, 1.442695
    %v715 = vpow.pop %v714
    %v716 = vmul.f32 %v713, 1.442695
    %v717 = vpow.pop %v716
    %v718 = vsel %vm292, %v715, 0.0
    %719 = vadd.xlane.f32.xlu0 %v718
    %v720 = vpop.xlane.xlu0 %719
    %v721 = vsel %vm292, %v717, 0.0
    %722 = vadd.xlane.f32.xlu0 %v721
    %v723 = vpop.xlane.xlu0 %722
    %v724 = vrcp.pop %v720
    %v725 = vrcp.pop %v723
    %v726 = vmul.f32 %v715, %v724
    %v727 = vmul.f32 %v717, %v725
    %728 = vrot.lane.b32.xlu0 %v194, 48
    %v729 = vpop.permute.xlu0 %728
    %730 = vrot.lane.b32.xlu0 %v199, 48
    %v731 = vpop.permute.xlu0 %730
    %v735 = vsel %vm292, %v726, 0
    %v738 = vsel %vm292, %v727, 0
    %740 = vmatprep.subr.mxu0 0.0
    %741 = vmatpush1.msra.mxu0 %v729
    %742 = vmatprep.subr.mxu0 0.0
    %743 = vmatpush1.msra.mxu0 %v731
    %744 = vmatprep.subr.mxu0 0.0
    %745 = vmatpush1.msra.mxu0 0.0
    %746 = vmatprep.subr.mxu0 0.0
    %747 = vmatpush1.msra.mxu0 0.0
    %748 = vmatprep.subr.mxu0 0.0
    %749 = vmatpush1.msra.mxu0 0.0
    %750 = vmatprep.subr.mxu0 0.0
    %751 = vmatpush1.msra.mxu0 0.0
    %752 = vmatprep.subr.mxu0 0.0
    %753 = vmatpush1.msra.mxu0 0.0
    %754 = vmatprep.subr.mxu0 0.0
    %755 = vmatpush1.msra.mxu0 0.0
    %756 = vmatprep.subr.mxu0 0.0
    %757 = vmatpush1.msra.mxu0 0.0
    %758 = vmatprep.subr.mxu0 0.0
    %759 = vmatpush1.msra.mxu0 0.0
    %760 = vmatprep.subr.mxu0 0.0
    %761 = vmatpush1.msra.mxu0 0.0
    %762 = vmatprep.subr.mxu0 0.0
    %763 = vmatpush1.msra.mxu0 0.0
    %764 = vmatprep.subr.mxu0 0.0
    %765 = vmatpush1.msra.mxu0 0.0
    %766 = vmatprep.subr.mxu0 0.0
    %767 = vmatpush1.msra.mxu0 0.0
    %768 = vmatprep.subr.mxu0 0.0
    %769 = vmatpush1.msra.mxu0 0.0
    %770 = vmatprep.subr.mxu0 0.0
    %771 = vmatpush1.msra.mxu0 0.0
    %772 = vmatprep.subr.mxu0 0.0
    %773 = vmatpush1.msra.mxu0 0.0
    %774 = vmatprep.subr.mxu0 0.0
    %775 = vmatpush1.msra.mxu0 0.0
    %776 = vmatprep.subr.mxu0 0.0
    %777 = vmatpush1.msra.mxu0 0.0
    %778 = vmatprep.subr.mxu0 0.0
    %779 = vmatpush1.msra.mxu0 0.0
    %780 = vmatprep.subr.mxu0 0.0
    %781 = vmatpush1.msra.mxu0 0.0
    %782 = vmatprep.subr.mxu0 0.0
    %783 = vmatpush1.msra.mxu0 0.0
    %784 = vmatprep.subr.mxu0 0.0
    %785 = vmatpush1.msra.mxu0 0.0
    %786 = vmatprep.subr.mxu0 0.0
    %787 = vmatpush1.msra.mxu0 0.0
    %788 = vmatprep.subr.mxu0 0.0
    %789 = vmatpush1.msra.mxu0 0.0
    %790 = vmatprep.subr.mxu0 0.0
    %791 = vmatpush1.msra.mxu0 0.0
    %792 = vmatprep.subr.mxu0 0.0
    %793 = vmatpush1.msra.mxu0 0.0
    %794 = vmatprep.subr.mxu0 0.0
    %795 = vmatpush1.msra.mxu0 0.0
    %796 = vmatprep.subr.mxu0 0.0
    %797 = vmatpush1.msra.mxu0 0.0
    %798 = vmatprep.subr.mxu0 0.0
    %799 = vmatpush1.msra.mxu0 0.0
    %800 = vmatprep.subr.mxu0 0.0
    %801 = vmatpush1.msra.mxu0 0.0
    %802 = vmatprep.subr.mxu0 0.0
    %803 = vmatpush1.msra.mxu0 0.0
    %804 = vmatprep.mubr.f32.mxu0 0.0
    %805 = vmatmul.mubr.f32.gmra.mrb[0].mxu0 %v735
    %v806 = vpop.f32.mrb[0].mxu0
    %v807 = vadd.f32 0.0, %v806
    %v808 = vpop.f32.mrb[0].mxu0
    %809 = vmatprep.mubr.f32.mxu0 0.0
    %810 = vmatmul.mubr.f32.gmra.mrb[0].mxu0 %v738
    %v811 = vpop.f32.mrb[0].mxu0
    %v812 = vadd.f32 0.0, %v811
    %v813 = vpop.f32.mrb[0].mxu0
    %814 = vdwg.mxu0
    %817 = vrot.lane.b32.xlu0 %v807, 16
    %v818 = vpop.permute.xlu0 %817
    %819 = vrot.lane.b32.xlu0 %v812, 16
    %v820 = vpop.permute.xlu0 %819
    %vm823 = vcmask 195712
    %824 = vst.msk [vmem:[#allocation2] sm:$0xff] %vm823, %v818
    %825 = vst.msk [vmem:[#allocation2 + $0x8] sm:$0xff] %vm823, %v820
    %826 = vrot.lane.b32.xlu0 %v194, 104
    %v827 = vpop.permute.xlu0 %826
    %828 = vrot.lane.b32.xlu0 %v199, 104
    %v829 = vpop.permute.xlu0 %828
    %830 = vrot.lane.b32.xlu0 %v194, 72
    %v831 = vpop.permute.xlu0 %830
    %832 = vrot.lane.b32.xlu0 %v199, 72
    %v833 = vpop.permute.xlu0 %832
    %v834 = vsel %vm208, %v827, 0
    %v836 = vsel %vm208, %v829, 0
    %v838 = vsel %vm208, %v831, 0
    %v840 = vsel %vm208, %v833, 0
    %842 = vmatprep.subr.mxu0 0.0
    %843 = vmatpush1.xpose.msra.mxu0 %v838
    %844 = vmatprep.subr.mxu0 0.0
    %845 = vmatpush1.xpose.msra.mxu0 %v840
    %846 = vmatprep.subr.mxu0 0.0
    %847 = vmatpush1.xpose.msra.mxu0 0.0
    %848 = vmatprep.subr.mxu0 0.0
    %849 = vmatpush1.xpose.msra.mxu0 0.0
    %850 = vmatprep.subr.mxu0 0.0
    %851 = vmatpush1.xpose.msra.mxu0 0.0
    %852 = vmatprep.subr.mxu0 0.0
    %853 = vmatpush1.xpose.msra.mxu0 0.0
    %854 = vmatprep.subr.mxu0 0.0
    %855 = vmatpush1.xpose.msra.mxu0 0.0
    %856 = vmatprep.subr.mxu0 0.0
    %857 = vmatpush1.xpose.msra.mxu0 0.0
    %858 = vmatprep.subr.mxu0 0.0
    %859 = vmatpush1.xpose.msra.mxu0 0.0
    %860 = vmatprep.subr.mxu0 0.0
    %861 = vmatpush1.xpose.msra.mxu0 0.0
    %862 = vmatprep.subr.mxu0 0.0
    %863 = vmatpush1.xpose.msra.mxu0 0.0
    %864 = vmatprep.subr.mxu0 0.0
    %865 = vmatpush1.xpose.msra.mxu0 0.0
    %866 = vmatprep.subr.mxu0 0.0
    %867 = vmatpush1.xpose.msra.mxu0 0.0
    %868 = vmatprep.subr.mxu0 0.0
    %869 = vmatpush1.xpose.msra.mxu0 0.0
    %870 = vmatprep.subr.mxu0 0.0
    %871 = vmatpush1.xpose.msra.mxu0 0.0
    %872 = vmatprep.subr.mxu0 0.0
    %873 = vmatpush1.xpose.msra.mxu0 0.0
    %874 = vmatprep.subr.mxu0 0.0
    %875 = vmatpush1.xpose.msra.mxu0 0.0
    %876 = vmatprep.subr.mxu0 0.0
    %877 = vmatpush1.xpose.msra.mxu0 0.0
    %878 = vmatprep.subr.mxu0 0.0
    %879 = vmatpush1.xpose.msra.mxu0 0.0
    %880 = vmatprep.subr.mxu0 0.0
    %881 = vmatpush1.xpose.msra.mxu0 0.0
    %882 = vmatprep.subr.mxu0 0.0
    %883 = vmatpush1.xpose.msra.mxu0 0.0
    %884 = vmatprep.subr.mxu0 0.0
    %885 = vmatpush1.xpose.msra.mxu0 0.0
    %886 = vmatprep.subr.mxu0 0.0
    %887 = vmatpush1.xpose.msra.mxu0 0.0
    %888 = vmatprep.subr.mxu0 0.0
    %889 = vmatpush1.xpose.msra.mxu0 0.0
    %890 = vmatprep.subr.mxu0 0.0
    %891 = vmatpush1.xpose.msra.mxu0 0.0
    %892 = vmatprep.subr.mxu0 0.0
    %893 = vmatpush1.xpose.msra.mxu0 0.0
    %894 = vmatprep.subr.mxu0 0.0
    %895 = vmatpush1.xpose.msra.mxu0 0.0
    %896 = vmatprep.subr.mxu0 0.0
    %897 = vmatpush1.xpose.msra.mxu0 0.0
    %898 = vmatprep.subr.mxu0 0.0
    %899 = vmatpush1.xpose.msra.mxu0 0.0
    %900 = vmatprep.subr.mxu0 0.0
    %901 = vmatpush1.xpose.msra.mxu0 0.0
    %902 = vmatprep.subr.mxu0 0.0
    %903 = vmatpush1.xpose.msra.mxu0 0.0
    %904 = vmatprep.subr.mxu0 0.0
    %905 = vmatpush1.xpose.msra.mxu0 0.0
    %906 = vmatprep.mubr.f32.mxu0 0.0
    %907 = vmatmul.mubr.f32.gmra.mrb[0].mxu0 %v834
    %v908 = vpop.f32.mrb[0].mxu0
    %v909 = vadd.f32 %v60, %v908
    %v910 = vpop.f32.mrb[0].mxu0
    %911 = vmatprep.mubr.f32.mxu0 0.0
    %912 = vmatmul.mubr.f32.gmra.mrb[0].mxu0 %v836
    %v913 = vpop.f32.mrb[0].mxu0
    %v914 = vadd.f32 %v61, %v913
    %v915 = vpop.f32.mrb[0].mxu0
    %916 = vdwg.mxu0
    %v917 = vsel %vm292, %v909, -inf
    %918 = vmax.xlane.f32.xlu0 %v917
    %v919 = vpop.xlane.xlu0 %918
    %v920 = vsel %vm292, %v914, -inf
    %921 = vmax.xlane.f32.xlu0 %v920
    %v922 = vpop.xlane.xlu0 %921
    %v923 = vsub.f32 %v909, %v919
    %v924 = vsub.f32 %v914, %v922
    %v925 = vmul.f32 %v923, 1.442695
    %v926 = vpow.pop %v925
    %v927 = vmul.f32 %v924, 1.442695
    %v928 = vpow.pop %v927
    %v929 = vsel %vm292, %v926, 0.0
    %930 = vadd.xlane.f32.xlu0 %v929
    %v931 = vpop.xlane.xlu0 %930
    %v932 = vsel %vm292, %v928, 0.0
    %933 = vadd.xlane.f32.xlu0 %v932
    %v934 = vpop.xlane.xlu0 %933
    %v935 = vrcp.pop %v931
    %v936 = vrcp.pop %v934
    %v937 = vmul.f32 %v926, %v935
    %v938 = vmul.f32 %v928, %v936
    %939 = vrot.lane.b32.xlu0 %v194, 40
    %v940 = vpop.permute.xlu0 %939
    %941 = vrot.lane.b32.xlu0 %v199, 40
    %v942 = vpop.permute.xlu0 %941
    %v946 = vsel %vm292, %v937, 0
    %v949 = vsel %vm292, %v938, 0
    %951 = vmatprep.subr.mxu0 0.0
    %952 = vmatpush1.msra.mxu0 %v940
    %953 = vmatprep.subr.mxu0 0.0
    %954 = vmatpush1.msra.mxu0 %v942
    %955 = vmatprep.subr.mxu0 0.0
    %956 = vmatpush1.msra.mxu0 0.0
    %957 = vmatprep.subr.mxu0 0.0
    %958 = vmatpush1.msra.mxu0 0.0
    %959 = vmatprep.subr.mxu0 0.0
    %960 = vmatpush1.msra.mxu0 0.0
    %961 = vmatprep.subr.mxu0 0.0
    %962 = vmatpush1.msra.mxu0 0.0
    %963 = vmatprep.subr.mxu0 0.0
    %964 = vmatpush1.msra.mxu0 0.0
    %965 = vmatprep.subr.mxu0 0.0
    %966 = vmatpush1.msra.mxu0 0.0
    %967 = vmatprep.subr.mxu0 0.0
    %968 = vmatpush1.msra.mxu0 0.0
    %969 = vmatprep.subr.mxu0 0.0
    %970 = vmatpush1.msra.mxu0 0.0
    %971 = vmatprep.subr.mxu0 0.0
    %972 = vmatpush1.msra.mxu0 0.0
    %973 = vmatprep.subr.mxu0 0.0
    %974 = vmatpush1.msra.mxu0 0.0
    %975 = vmatprep.subr.mxu0 0.0
    %976 = vmatpush1.msra.mxu0 0.0
    %977 = vmatprep.subr.mxu0 0.0
    %978 = vmatpush1.msra.mxu0 0.0
    %979 = vmatprep.subr.mxu0 0.0
    %980 = vmatpush1.msra.mxu0 0.0
    %981 = vmatprep.subr.mxu0 0.0
    %982 = vmatpush1.msra.mxu0 0.0
    %983 = vmatprep.subr.mxu0 0.0
    %984 = vmatpush1.msra.mxu0 0.0
    %985 = vmatprep.subr.mxu0 0.0
    %986 = vmatpush1.msra.mxu0 0.0
    %987 = vmatprep.subr.mxu0 0.0
    %988 = vmatpush1.msra.mxu0 0.0
    %989 = vmatprep.subr.mxu0 0.0
    %990 = vmatpush1.msra.mxu0 0.0
    %991 = vmatprep.subr.mxu0 0.0
    %992 = vmatpush1.msra.mxu0 0.0
    %993 = vmatprep.subr.mxu0 0.0
    %994 = vmatpush1.msra.mxu0 0.0
    %995 = vmatprep.subr.mxu0 0.0
    %996 = vmatpush1.msra.mxu0 0.0
    %997 = vmatprep.subr.mxu0 0.0
    %998 = vmatpush1.msra.mxu0 0.0
    %999 = vmatprep.subr.mxu0 0.0
    %1000 = vmatpush1.msra.mxu0 0.0
    %1001 = vmatprep.subr.mxu0 0.0
    %1002 = vmatpush1.msra.mxu0 0.0
    %1003 = vmatprep.subr.mxu0 0.0
    %1004 = vmatpush1.msra.mxu0 0.0
    %1005 = vmatprep.subr.mxu0 0.0
    %1006 = vmatpush1.msra.mxu0 0.0
    %1007 = vmatprep.subr.mxu0 0.0
    %1008 = vmatpush1.msra.mxu0 0.0
    %1009 = vmatprep.subr.mxu0 0.0
    %1010 = vmatpush1.msra.mxu0 0.0
    %1011 = vmatprep.subr.mxu0 0.0
    %1012 = vmatpush1.msra.mxu0 0.0
    %1013 = vmatprep.subr.mxu0 0.0
    %1014 = vmatpush1.msra.mxu0 0.0
    %1015 = vmatprep.mubr.f32.mxu0 0.0
    %1016 = vmatmul.mubr.f32.gmra.mrb[0].mxu0 %v946
    %v1017 = vpop.f32.mrb[0].mxu0
    %v1018 = vadd.f32 0.0, %v1017
    %v1019 = vpop.f32.mrb[0].mxu0
    %1020 = vmatprep.mubr.f32.mxu0 0.0
    %1021 = vmatmul.mubr.f32.gmra.mrb[0].mxu0 %v949
    %v1022 = vpop.f32.mrb[0].mxu0
    %v1023 = vadd.f32 0.0, %v1022
    %v1024 = vpop.f32.mrb[0].mxu0
    %1025 = vdwg.mxu0
    %1028 = vrot.lane.b32.xlu0 %v1018, 24
    %v1029 = vpop.permute.xlu0 %1028
    %1030 = vrot.lane.b32.xlu0 %v1023, 24
    %v1031 = vpop.permute.xlu0 %1030
    %vm1034 = vcmask 261312
    %1035 = vst.msk [vmem:[#allocation2] sm:$0xff] %vm1034, %v1029
    %1036 = vst.msk [vmem:[#allocation2 + $0x8] sm:$0xff] %vm1034, %v1031
    %v1037 = vld [vmem:[#allocation2] sm:$0xff]
    %v1038 = vld [vmem:[#allocation2 + $0x8] sm:$0xff]
    %v1039 = vld [vmem:[%s6] sm:$0xff]
    %v1040 = vld [vmem:[%s6 + $0x8] sm:$0xff]
    %v1041 = vld [vmem:[%s6 + $0x10] sm:$0xff]
    %v1042 = vld [vmem:[%s6 + $0x18] sm:$0xff]
    %v1043 = vld [vmem:[%s7] sm:$0x1]
    %v1045 = vlaneseq
    %v1046 = vshrl.u32 %v1045, 7
    %v1047 = vsub.s32 0, %v1046
    %v1048 = vrot.slane %v1043, %v1047
    %v1051 = vsel %vm66, %v1037, 0
    %v1054 = vsel %vm66, %v1038, 0
    %1056 = vmatprep.subr.mxu0 0.0
    %1057 = vmatpush1.msra.mxu0 %v1039
    %1058 = vmatprep.subr.mxu0 0.0
    %1059 = vmatpush1.msra.mxu0 %v1040
    %1060 = vmatprep.subr.mxu0 0.0
    %1061 = vmatpush1.msra.mxu0 %v1041
    %1062 = vmatprep.subr.mxu0 0.0
    %1063 = vmatpush1.msra.mxu0 %v1042
    %1064 = vmatprep.subr.mxu0 0.0
    %1065 = vmatpush1.msra.mxu0 0.0
    %1066 = vmatprep.subr.mxu0 0.0
    %1067 = vmatpush1.msra.mxu0 0.0
    %1068 = vmatprep.subr.mxu0 0.0
    %1069 = vmatpush1.msra.mxu0 0.0
    %1070 = vmatprep.subr.mxu0 0.0
    %1071 = vmatpush1.msra.mxu0 0.0
    %1072 = vmatprep.subr.mxu0 0.0
    %1073 = vmatpush1.msra.mxu0 0.0
    %1074 = vmatprep.subr.mxu0 0.0
    %1075 = vmatpush1.msra.mxu0 0.0
    %1076 = vmatprep.subr.mxu0 0.0
    %1077 = vmatpush1.msra.mxu0 0.0
    %1078 = vmatprep.subr.mxu0 0.0
    %1079 = vmatpush1.msra.mxu0 0.0
    %1080 = vmatprep.subr.mxu0 0.0
    %1081 = vmatpush1.msra.mxu0 0.0
    %1082 = vmatprep.subr.mxu0 0.0
    %1083 = vmatpush1.msra.mxu0 0.0
    %1084 = vmatprep.subr.mxu0 0.0
    %1085 = vmatpush1.msra.mxu0 0.0
    %1086 = vmatprep.subr.mxu0 0.0
    %1087 = vmatpush1.msra.mxu0 0.0
    %1088 = vmatprep.subr.mxu0 0.0
    %1089 = vmatpush1.msra.mxu0 0.0
    %1090 = vmatprep.subr.mxu0 0.0
    %1091 = vmatpush1.msra.mxu0 0.0
    %1092 = vmatprep.subr.mxu0 0.0
    %1093 = vmatpush1.msra.mxu0 0.0
    %1094 = vmatprep.subr.mxu0 0.0
    %1095 = vmatpush1.msra.mxu0 0.0
    %1096 = vmatprep.subr.mxu0 0.0
    %1097 = vmatpush1.msra.mxu0 0.0
    %1098 = vmatprep.subr.mxu0 0.0
    %1099 = vmatpush1.msra.mxu0 0.0
    %1100 = vmatprep.subr.mxu0 0.0
    %1101 = vmatpush1.msra.mxu0 0.0
    %1102 = vmatprep.subr.mxu0 0.0
    %1103 = vmatpush1.msra.mxu0 0.0
    %1104 = vmatprep.subr.mxu0 0.0
    %1105 = vmatpush1.msra.mxu0 0.0
    %1106 = vmatprep.subr.mxu0 0.0
    %1107 = vmatpush1.msra.mxu0 0.0
    %1108 = vmatprep.subr.mxu0 0.0
    %1109 = vmatpush1.msra.mxu0 0.0
    %1110 = vmatprep.subr.mxu0 0.0
    %1111 = vmatpush1.msra.mxu0 0.0
    %1112 = vmatprep.subr.mxu0 0.0
    %1113 = vmatpush1.msra.mxu0 0.0
    %1114 = vmatprep.subr.mxu0 0.0
    %1115 = vmatpush1.msra.mxu0 0.0
    %1116 = vmatprep.subr.mxu0 0.0
    %1117 = vmatpush1.msra.mxu0 0.0
    %1118 = vmatprep.subr.mxu0 0.0
    %1119 = vmatpush1.msra.mxu0 0.0
    %1120 = vmatprep.mubr.f32.mxu0 0.0
    %1121 = vmatmul.mubr.f32.gmra.mrb[0].mxu0 %v1051
    %v1122 = vpop.f32.mrb[0].mxu0
    %v1123 = vadd.f32 %v1048, %v1122
    %v1124 = vpop.f32.mrb[0].mxu0
    %1125 = vmatprep.mubr.f32.mxu0 0.0
    %1126 = vmatmul.mubr.f32.gmra.mrb[0].mxu0 %v1054
    %v1127 = vpop.f32.mrb[0].mxu0
    %v1128 = vadd.f32 %v1048, %v1127
    %v1129 = vpop.f32.mrb[0].mxu0
    %1130 = vdwg.mxu0
    %v1131 = vadd.f32 %v1123, %v108
    %v1132 = vadd.f32 %v1128, %v109
    %v1133 = vld [vmem:[%s8] sm:$0x1]
    %v1134 = vld [vmem:[%s9] sm:$0x1]
    %v1135 = vsel %vm66, %v1131, 0.0
    %1136 = vadd.xlane.f32.xlu0 %v1135
    %v1137 = vpop.xlane.xlu0 %1136
    %v1138 = vsel %vm66, %v1132, 0.0
    %1139 = vadd.xlane.f32.xlu0 %v1138
    %v1140 = vpop.xlane.xlu0 %1139
    %v1141 = vmul.f32 %v1137, %v73
    %v1142 = vmul.f32 %v1140, %v73
    %v1143 = vsub.f32 %v1131, %v1141
    %v1144 = vsub.f32 %v1132, %v1142
    %v1145 = vmul.f32 %v1143, %v1143
    %v1146 = vmul.f32 %v1144, %v1144
    %v1147 = vsel %vm66, %v1145, 0.0
    %1148 = vadd.xlane.f32.xlu0 %v1147
    %v1149 = vpop.xlane.xlu0 %1148
    %v1150 = vsel %vm66, %v1146, 0.0
    %1151 = vadd.xlane.f32.xlu0 %v1150
    %v1152 = vpop.xlane.xlu0 %1151
    %v1153 = vmul.f32 %v1149, %v73
    %v1154 = vmul.f32 %v1152, %v73
    %v1155 = vadd.f32 %v1153, 1e-12
    %v1156 = vadd.f32 %v1154, 1e-12
    %v1157 = vrsqrt.pop %v1155
    %v1158 = vrsqrt.pop %v1156
    %v1159 = vmul.f32 %v1143, %v1157
    %v1160 = vmul.f32 %v1144, %v1158
    %v1162 = vlaneseq
    %v1163 = vshrl.u32 %v1162, 7
    %v1164 = vsub.s32 0, %v1163
    %v1165 = vrot.slane %v1133, %v1164
    %v1167 = vmul.f32 %v1159, %v1165
    %v1168 = vmul.f32 %v1160, %v1165
    %v1170 = vlaneseq
    %v1171 = vshrl.u32 %v1170, 7
    %v1172 = vsub.s32 0, %v1171
    %v1173 = vrot.slane %v1134, %v1172
    %v1175 = vadd.f32 %v1167, %v1173
    %v1176 = vadd.f32 %v1168, %v1173
    %v1177 = vld [vmem:[%s10] sm:$0xff]
    %v1178 = vld [vmem:[%s10 + $0x8] sm:$0xff]
    %v1179 = vld [vmem:[%s10 + $0x10] sm:$0xff]
    %v1180 = vld [vmem:[%s10 + $0x18] sm:$0xff]
    %v1181 = vld [vmem:[%s11] sm:$0x1]
    %v1183 = vlaneseq
    %v1184 = vshrl.u32 %v1183, 7
    %v1185 = vsub.s32 0, %v1184
    %v1186 = vrot.slane %v1181, %v1185
    %v1189 = vsel %vm66, %v1175, 0
    %v1192 = vsel %vm66, %v1176, 0
    %1194 = vmatprep.subr.mxu0 0.0
    %1195 = vmatpush1.msra.mxu0 %v1177
    %1196 = vmatprep.subr.mxu0 0.0
    %1197 = vmatpush1.msra.mxu0 %v1178
    %1198 = vmatprep.subr.mxu0 0.0
    %1199 = vmatpush1.msra.mxu0 %v1179
    %1200 = vmatprep.subr.mxu0 0.0
    %1201 = vmatpush1.msra.mxu0 %v1180
    %1202 = vmatprep.subr.mxu0 0.0
    %1203 = vmatpush1.msra.mxu0 0.0
    %1204 = vmatprep.subr.mxu0 0.0
    %1205 = vmatpush1.msra.mxu0 0.0
    %1206 = vmatprep.subr.mxu0 0.0
    %1207 = vmatpush1.msra.mxu0 0.0
    %1208 = vmatprep.subr.mxu0 0.0
    %1209 = vmatpush1.msra.mxu0 0.0
    %1210 = vmatprep.subr.mxu0 0.0
    %1211 = vmatpush1.msra.mxu0 0.0
    %1212 = vmatprep.subr.mxu0 0.0
    %1213 = vmatpush1.msra.mxu0 0.0
    %1214 = vmatprep.subr.mxu0 0.0
    %1215 = vmatpush1.msra.mxu0 0.0
    %1216 = vmatprep.subr.mxu0 0.0
    %1217 = vmatpush1.msra.mxu0 0.0
    %1218 = vmatprep.subr.mxu0 0.0
    %1219 = vmatpush1.msra.mxu0 0.0
    %1220 = vmatprep.subr.mxu0 0.0
    %1221 = vmatpush1.msra.mxu0 0.0
    %1222 = vmatprep.subr.mxu0 0.0
    %1223 = vmatpush1.msra.mxu0 0.0
    %1224 = vmatprep.subr.mxu0 0.0
    %1225 = vmatpush1.msra.mxu0 0.0
    %1226 = vmatprep.subr.mxu0 0.0
    %1227 = vmatpush1.msra.mxu0 0.0
    %1228 = vmatprep.subr.mxu0 0.0
    %1229 = vmatpush1.msra.mxu0 0.0
    %1230 = vmatprep.subr.mxu0 0.0
    %1231 = vmatpush1.msra.mxu0 0.0
    %1232 = vmatprep.subr.mxu0 0.0
    %1233 = vmatpush1.msra.mxu0 0.0
    %1234 = vmatprep.subr.mxu0 0.0
    %1235 = vmatpush1.msra.mxu0 0.0
    %1236 = vmatprep.subr.mxu0 0.0
    %1237 = vmatpush1.msra.mxu0 0.0
    %1238 = vmatprep.subr.mxu0 0.0
    %1239 = vmatpush1.msra.mxu0 0.0
    %1240 = vmatprep.subr.mxu0 0.0
    %1241 = vmatpush1.msra.mxu0 0.0
    %1242 = vmatprep.subr.mxu0 0.0
    %1243 = vmatpush1.msra.mxu0 0.0
    %1244 = vmatprep.subr.mxu0 0.0
    %1245 = vmatpush1.msra.mxu0 0.0
    %1246 = vmatprep.subr.mxu0 0.0
    %1247 = vmatpush1.msra.mxu0 0.0
    %1248 = vmatprep.subr.mxu0 0.0
    %1249 = vmatpush1.msra.mxu0 0.0
    %1250 = vmatprep.subr.mxu0 0.0
    %1251 = vmatpush1.msra.mxu0 0.0
    %1252 = vmatprep.subr.mxu0 0.0
    %1253 = vmatpush1.msra.mxu0 0.0
    %1254 = vmatprep.subr.mxu0 0.0
    %1255 = vmatpush1.msra.mxu0 0.0
    %1256 = vmatprep.subr.mxu0 0.0
    %1257 = vmatpush1.msra.mxu0 0.0
    %1258 = vmatprep.mubr.f32.mxu0 0.0
    %1259 = vmatmul.mubr.f32.gmra.mrb[0].mxu0 %v1189
    %v1260 = vpop.f32.mrb[0].mxu0
    %v1261 = vadd.f32 %v1186, %v1260
    %v1262 = vpop.f32.mrb[0].mxu0
    %1263 = vmatprep.mubr.f32.mxu0 0.0
    %1264 = vmatmul.mubr.f32.gmra.mrb[0].mxu0 %v1192
    %v1265 = vpop.f32.mrb[0].mxu0
    %v1266 = vadd.f32 %v1186, %v1265
    %v1267 = vpop.f32.mrb[0].mxu0
    %1268 = vdwg.mxu0
    %v1269 = vmul.f32 %v1261, 0.5
    %v1270 = vmul.f32 %v1266, 0.5
    %v1271 = vmul.f32 %v1261, 0.044715
    %v1272 = vmul.f32 %v1266, 0.044715
    %v1273 = vmul.f32 %v1271, %v1261
    %v1274 = vmul.f32 %v1272, %v1266
    %v1275 = vmul.f32 %v1273, %v1261
    %v1276 = vmul.f32 %v1274, %v1266
    %v1277 = vadd.f32 %v1261, %v1275
    %v1278 = vadd.f32 %v1266, %v1276
    %v1279 = vmul.f32 %v1277, 0.7978846
    %v1280 = vmul.f32 %v1278, 0.7978846
    %v1281 = vtanh.pop %v1279
    %v1282 = vtanh.pop %v1280
    %v1283 = vadd.f32 %v1281, 1.0
    %v1284 = vadd.f32 %v1282, 1.0
    %v1285 = vmul.f32 %v1269, %v1283
    %v1286 = vmul.f32 %v1270, %v1284
    %v1287 = vld [vmem:[%s12] sm:$0xff]
    %v1288 = vld [vmem:[%s12 + $0x8] sm:$0xff]
    %v1289 = vld [vmem:[%s12 + $0x10] sm:$0xff]
    %v1290 = vld [vmem:[%s12 + $0x18] sm:$0xff]
    %v1291 = vld [vmem:[%s12 + $0x20] sm:$0xff]
    %v1292 = vld [vmem:[%s12 + $0x28] sm:$0xff]
    %v1293 = vld [vmem:[%s12 + $0x30] sm:$0xff]
    %v1294 = vld [vmem:[%s12 + $0x38] sm:$0xff]
    %v1295 = vld [vmem:[%s13] sm:$0x1]
    %v1297 = vlaneseq
    %v1298 = vshrl.u32 %v1297, 7
    %v1299 = vsub.s32 0, %v1298
    %v1300 = vrot.slane %v1295, %v1299
    %vm1302 = vcmask 523264
    %v1304 = vsel %vm1302, %v1285, 0
    %v1307 = vsel %vm1302, %v1286, 0
    %1309 = vmatprep.subr.mxu0 0.0
    %1310 = vmatpush1.msra.mxu0 %v1287
    %1311 = vmatprep.subr.mxu0 0.0
    %1312 = vmatpush1.msra.mxu0 %v1288
    %1313 = vmatprep.subr.mxu0 0.0
    %1314 = vmatpush1.msra.mxu0 %v1289
    %1315 = vmatprep.subr.mxu0 0.0
    %1316 = vmatpush1.msra.mxu0 %v1290
    %1317 = vmatprep.subr.mxu0 0.0
    %1318 = vmatpush1.msra.mxu0 %v1291
    %1319 = vmatprep.subr.mxu0 0.0
    %1320 = vmatpush1.msra.mxu0 %v1292
    %1321 = vmatprep.subr.mxu0 0.0
    %1322 = vmatpush1.msra.mxu0 %v1293
    %1323 = vmatprep.subr.mxu0 0.0
    %1324 = vmatpush1.msra.mxu0 %v1294
    %1325 = vmatprep.subr.mxu0 0.0
    %1326 = vmatpush1.msra.mxu0 0.0
    %1327 = vmatprep.subr.mxu0 0.0
    %1328 = vmatpush1.msra.mxu0 0.0
    %1329 = vmatprep.subr.mxu0 0.0
    %1330 = vmatpush1.msra.mxu0 0.0
    %1331 = vmatprep.subr.mxu0 0.0
    %1332 = vmatpush1.msra.mxu0 0.0
    %1333 = vmatprep.subr.mxu0 0.0
    %1334 = vmatpush1.msra.mxu0 0.0
    %1335 = vmatprep.subr.mxu0 0.0
    %1336 = vmatpush1.msra.mxu0 0.0
    %1337 = vmatprep.subr.mxu0 0.0
    %1338 = vmatpush1.msra.mxu0 0.0
    %1339 = vmatprep.subr.mxu0 0.0
    %1340 = vmatpush1.msra.mxu0 0.0
    %1341 = vmatprep.subr.mxu0 0.0
    %1342 = vmatpush1.msra.mxu0 0.0
    %1343 = vmatprep.subr.mxu0 0.0
    %1344 = vmatpush1.msra.mxu0 0.0
    %1345 = vmatprep.subr.mxu0 0.0
    %1346 = vmatpush1.msra.mxu0 0.0
    %1347 = vmatprep.subr.mxu0 0.0
    %1348 = vmatpush1.msra.mxu0 0.0
    %1349 = vmatprep.subr.mxu0 0.0
    %1350 = vmatpush1.msra.mxu0 0.0
    %1351 = vmatprep.subr.mxu0 0.0
    %1352 = vmatpush1.msra.mxu0 0.0
    %1353 = vmatprep.subr.mxu0 0.0
    %1354 = vmatpush1.msra.mxu0 0.0
    %1355 = vmatprep.subr.mxu0 0.0
    %1356 = vmatpush1.msra.mxu0 0.0
    %1357 = vmatprep.subr.mxu0 0.0
    %1358 = vmatpush1.msra.mxu0 0.0
    %1359 = vmatprep.subr.mxu0 0.0
    %1360 = vmatpush1.msra.mxu0 0.0
    %1361 = vmatprep.subr.mxu0 0.0
    %1362 = vmatpush1.msra.mxu0 0.0
    %1363 = vmatprep.subr.mxu0 0.0
    %1364 = vmatpush1.msra.mxu0 0.0
    %1365 = vmatprep.subr.mxu0 0.0
    %1366 = vmatpush1.msra.mxu0 0.0
    %1367 = vmatprep.subr.mxu0 0.0
    %1368 = vmatpush1.msra.mxu0 0.0
    %1369 = vmatprep.subr.mxu0 0.0
    %1370 = vmatpush1.msra.mxu0 0.0
    %1371 = vmatprep.subr.mxu0 0.0
    %1372 = vmatpush1.msra.mxu0 0.0
    %1373 = vmatprep.mubr.f32.mxu0 0.0
    %1374 = vmatmul.mubr.f32.gmra.mrb[0].mxu0 %v1304
    %v1375 = vpop.f32.mrb[0].mxu0
    %v1376 = vadd.f32 %v1300, %v1375
    %v1377 = vpop.f32.mrb[0].mxu0
    %1378 = vmatprep.mubr.f32.mxu0 0.0
    %1379 = vmatmul.mubr.f32.gmra.mrb[0].mxu0 %v1307
    %v1380 = vpop.f32.mrb[0].mxu0
    %v1381 = vadd.f32 %v1300, %v1380
    %v1382 = vpop.f32.mrb[0].mxu0
    %1383 = vdwg.mxu0
    %v1384 = vadd.f32 %v1376, %v1175
    %v1385 = vadd.f32 %v1381, %v1176
    %v1386 = vld [vmem:[%s14] sm:$0x1]
    %v1387 = vld [vmem:[%s15] sm:$0x1]
    %v1388 = vsel %vm66, %v1384, 0.0
    %1389 = vadd.xlane.f32.xlu0 %v1388
    %v1390 = vpop.xlane.xlu0 %1389
    %v1391 = vsel %vm66, %v1385, 0.0
    %1392 = vadd.xlane.f32.xlu0 %v1391
    %v1393 = vpop.xlane.xlu0 %1392
    %v1394 = vmul.f32 %v1390, %v73
    %v1395 = vmul.f32 %v1393, %v73
    %v1396 = vsub.f32 %v1384, %v1394
    %v1397 = vsub.f32 %v1385, %v1395
    %v1398 = vmul.f32 %v1396, %v1396
    %v1399 = vmul.f32 %v1397, %v1397
    %v1400 = vsel %vm66, %v1398, 0.0
    %1401 = vadd.xlane.f32.xlu0 %v1400
    %v1402 = vpop.xlane.xlu0 %1401
    %v1403 = vsel %vm66, %v1399, 0.0
    %1404 = vadd.xlane.f32.xlu0 %v1403
    %v1405 = vpop.xlane.xlu0 %1404
    %v1406 = vmul.f32 %v1402, %v73
    %v1407 = vmul.f32 %v1405, %v73
    %v1408 = vadd.f32 %v1406, 1e-12
    %v1409 = vadd.f32 %v1407, 1e-12
    %v1410 = vrsqrt.pop %v1408
    %v1411 = vrsqrt.pop %v1409
    %v1412 = vmul.f32 %v1396, %v1410
    %v1413 = vmul.f32 %v1397, %v1411
    %v1415 = vlaneseq
    %v1416 = vshrl.u32 %v1415, 7
    %v1417 = vsub.s32 0, %v1416
    %v1418 = vrot.slane %v1386, %v1417
    %v1420 = vmul.f32 %v1412, %v1418
    %v1421 = vmul.f32 %v1413, %v1418
    %v1423 = vlaneseq
    %v1424 = vshrl.u32 %v1423, 7
    %v1425 = vsub.s32 0, %v1424
    %v1426 = vrot.slane %v1387, %v1425
    %v1428 = vadd.f32 %v1420, %v1426
    %v1429 = vadd.f32 %v1421, %v1426
    %s1430 = scalar_lea.vmem %s4, 32
    %v1431 = vld [vmem:[%s1430] sm:$0xff]
    %v1432 = vld [vmem:[%s1430 + $0x8] sm:$0xff]
    %v1433 = vld [vmem:[%s1430 + $0x10] sm:$0xff]
    %v1434 = vld [vmem:[%s1430 + $0x18] sm:$0xff]
    %s1435 = scalar_lea.vmem %s5, 1
    %v1436 = vld [vmem:[%s1435] sm:$0x1]
    %v1438 = vlaneseq
    %v1439 = vshrl.u32 %v1438, 7
    %v1440 = vsub.s32 0, %v1439
    %v1441 = vrot.slane %v1436, %v1440
    %v1444 = vsel %vm66, %v1428, 0
    %v1447 = vsel %vm66, %v1429, 0
    %1449 = vmatprep.subr.mxu0 0.0
    %1450 = vmatpush1.msra.mxu0 %v1431
    %1451 = vmatprep.subr.mxu0 0.0
    %1452 = vmatpush1.msra.mxu0 %v1432
    %1453 = vmatprep.subr.mxu0 0.0
    %1454 = vmatpush1.msra.mxu0 %v1433
    %1455 = vmatprep.subr.mxu0 0.0
    %1456 = vmatpush1.msra.mxu0 %v1434
    %1457 = vmatprep.subr.mxu0 0.0
    %1458 = vmatpush1.msra.mxu0 0.0
    %1459 = vmatprep.subr.mxu0 0.0
    %1460 = vmatpush1.msra.mxu0 0.0
    %1461 = vmatprep.subr.mxu0 0.0
    %1462 = vmatpush1.msra.mxu0 0.0
    %1463 = vmatprep.subr.mxu0 0.0
    %1464 = vmatpush1.msra.mxu0 0.0
    %1465 = vmatprep.subr.mxu0 0.0
    %1466 = vmatpush1.msra.mxu0 0.0
    %1467 = vmatprep.subr.mxu0 0.0
    %1468 = vmatpush1.msra.mxu0 0.0
    %1469 = vmatprep.subr.mxu0 0.0
    %1470 = vmatpush1.msra.mxu0 0.0
    %1471 = vmatprep.subr.mxu0 0.0
    %1472 = vmatpush1.msra.mxu0 0.0
    %1473 = vmatprep.subr.mxu0 0.0
    %1474 = vmatpush1.msra.mxu0 0.0
    %1475 = vmatprep.subr.mxu0 0.0
    %1476 = vmatpush1.msra.mxu0 0.0
    %1477 = vmatprep.subr.mxu0 0.0
    %1478 = vmatpush1.msra.mxu0 0.0
    %1479 = vmatprep.subr.mxu0 0.0
    %1480 = vmatpush1.msra.mxu0 0.0
    %1481 = vmatprep.subr.mxu0 0.0
    %1482 = vmatpush1.msra.mxu0 0.0
    %1483 = vmatprep.subr.mxu0 0.0
    %1484 = vmatpush1.msra.mxu0 0.0
    %1485 = vmatprep.subr.mxu0 0.0
    %1486 = vmatpush1.msra.mxu0 0.0
    %1487 = vmatprep.subr.mxu0 0.0
    %1488 = vmatpush1.msra.mxu0 0.0
    %1489 = vmatprep.subr.mxu0 0.0
    %1490 = vmatpush1.msra.mxu0 0.0
    %1491 = vmatprep.subr.mxu0 0.0
    %1492 = vmatpush1.msra.mxu0 0.0
    %1493 = vmatprep.subr.mxu0 0.0
    %1494 = vmatpush1.msra.mxu0 0.0
    %1495 = vmatprep.subr.mxu0 0.0
    %1496 = vmatpush1.msra.mxu0 0.0
    %1497 = vmatprep.subr.mxu0 0.0
    %1498 = vmatpush1.msra.mxu0 0.0
    %1499 = vmatprep.subr.mxu0 0.0
    %1500 = vmatpush1.msra.mxu0 0.0
    %1501 = vmatprep.subr.mxu0 0.0
    %1502 = vmatpush1.msra.mxu0 0.0
    %1503 = vmatprep.subr.mxu0 0.0
    %1504 = vmatpush1.msra.mxu0 0.0
    %1505 = vmatprep.subr.mxu0 0.0
    %1506 = vmatpush1.msra.mxu0 0.0
    %1507 = vmatprep.subr.mxu0 0.0
    %1508 = vmatpush1.msra.mxu0 0.0
    %1509 = vmatprep.subr.mxu0 0.0
    %1510 = vmatpush1.msra.mxu0 0.0
    %1511 = vmatprep.subr.mxu0 0.0
    %1512 = vmatpush1.msra.mxu0 0.0
    %1513 = vmatprep.mubr.f32.mxu0 0.0
    %1514 = vmatmul.mubr.f32.gmra.mrb[0].mxu0 %v1444
    %v1515 = vpop.f32.mrb[0].mxu0
    %v1516 = vadd.f32 %v1441, %v1515
    %v1517 = vpop.f32.mrb[0].mxu0
    %1518 = vmatprep.mubr.f32.mxu0 0.0
    %1519 = vmatmul.mubr.f32.gmra.mrb[0].mxu0 %v1447
    %v1520 = vpop.f32.mrb[0].mxu0
    %v1521 = vadd.f32 %v1441, %v1520
    %v1522 = vpop.f32.mrb[0].mxu0
    %1523 = vdwg.mxu0
    %1526 = vrot.lane.b32.xlu0 %v1516, 96
    %v1527 = vpop.permute.xlu0 %1526
    %1528 = vrot.lane.b32.xlu0 %v1521, 96
    %v1529 = vpop.permute.xlu0 %1528
    %v1530 = vsel %vm208, %v1516, 0
    %v1532 = vsel %vm208, %v1521, 0
    %v1534 = vsel %vm208, %v1527, 0
    %v1536 = vsel %vm208, %v1529, 0
    %1538 = vmatprep.subr.mxu0 0.0
    %1539 = vmatpush1.xpose.msra.mxu0 %v1534
    %1540 = vmatprep.subr.mxu0 0.0
    %1541 = vmatpush1.xpose.msra.mxu0 %v1536
    %1542 = vmatprep.subr.mxu0 0.0
    %1543 = vmatpush1.xpose.msra.mxu0 0.0
    %1544 = vmatprep.subr.mxu0 0.0
    %1545 = vmatpush1.xpose.msra.mxu0 0.0
    %1546 = vmatprep.subr.mxu0 0.0
    %1547 = vmatpush1.xpose.msra.mxu0 0.0
    %1548 = vmatprep.subr.mxu0 0.0
    %1549 = vmatpush1.xpose.msra.mxu0 0.0
    %1550 = vmatprep.subr.mxu0 0.0
    %1551 = vmatpush1.xpose.msra.mxu0 0.0
    %1552 = vmatprep.subr.mxu0 0.0
    %1553 = vmatpush1.xpose.msra.mxu0 0.0
    %1554 = vmatprep.subr.mxu0 0.0
    %1555 = vmatpush1.xpose.msra.mxu0 0.0
    %1556 = vmatprep.subr.mxu0 0.0
    %1557 = vmatpush1.xpose.msra.mxu0 0.0
    %1558 = vmatprep.subr.mxu0 0.0
    %1559 = vmatpush1.xpose.msra.mxu0 0.0
    %1560 = vmatprep.subr.mxu0 0.0
    %1561 = vmatpush1.xpose.msra.mxu0 0.0
    %1562 = vmatprep.subr.mxu0 0.0
    %1563 = vmatpush1.xpose.msra.mxu0 0.0
    %1564 = vmatprep.subr.mxu0 0.0
    %1565 = vmatpush1.xpose.msra.mxu0 0.0
    %1566 = vmatprep.subr.mxu0 0.0
    %1567 = vmatpush1.xpose.msra.mxu0 0.0
    %1568 = vmatprep.subr.mxu0 0.0
    %1569 = vmatpush1.xpose.msra.mxu0 0.0
    %1570 = vmatprep.subr.mxu0 0.0
    %1571 = vmatpush1.xpose.msra.mxu0 0.0
    %1572 = vmatprep.subr.mxu0 0.0
    %1573 = vmatpush1.xpose.msra.mxu0 0.0
    %1574 = vmatprep.subr.mxu0 0.0
    %1575 = vmatpush1.xpose.msra.mxu0 0.0
    %1576 = vmatprep.subr.mxu0 0.0
    %1577 = vmatpush1.xpose.msra.mxu0 0.0
    %1578 = vmatprep.subr.mxu0 0.0
    %1579 = vmatpush1.xpose.msra.mxu0 0.0
    %1580 = vmatprep.subr.mxu0 0.0
    %1581 = vmatpush1.xpose.msra.mxu0 0.0
    %1582 = vmatprep.subr.mxu0 0.0
    %1583 = vmatpush1.xpose.msra.mxu0 0.0
    %1584 = vmatprep.subr.mxu0 0.0
    %1585 = vmatpush1.xpose.msra.mxu0 0.0
    %1586 = vmatprep.subr.mxu0 0.0
    %1587 = vmatpush1.xpose.msra.mxu0 0.0
    %1588 = vmatprep.subr.mxu0 0.0
    %1589 = vmatpush1.xpose.msra.mxu0 0.0
    %1590 = vmatprep.subr.mxu0 0.0
    %1591 = vmatpush1.xpose.msra.mxu0 0.0
    %1592 = vmatprep.subr.mxu0 0.0
    %1593 = vmatpush1.xpose.msra.mxu0 0.0
    %1594 = vmatprep.subr.mxu0 0.0
    %1595 = vmatpush1.xpose.msra.mxu0 0.0
    %1596 = vmatprep.subr.mxu0 0.0
    %1597 = vmatpush1.xpose.msra.mxu0 0.0
    %1598 = vmatprep.subr.mxu0 0.0
    %1599 = vmatpush1.xpose.msra.mxu0 0.0
    %1600 = vmatprep.subr.mxu0 0.0
    %1601 = vmatpush1.xpose.msra.mxu0 0.0
    %1602 = vmatprep.mubr.f32.mxu0 0.0
    %1603 = vmatmul.mubr.f32.gmra.mrb[0].mxu0 %v1530
    %v1604 = vpop.f32.mrb[0].mxu0
    %v1605 = vadd.f32 %v60, %v1604
    %v1606 = vpop.f32.mrb[0].mxu0
    %1607 = vmatprep.mubr.f32.mxu0 0.0
    %1608 = vmatmul.mubr.f32.gmra.mrb[0].mxu0 %v1532
    %v1609 = vpop.f32.mrb[0].mxu0
    %v1610 = vadd.f32 %v61, %v1609
    %v1611 = vpop.f32.mrb[0].mxu0
    %1612 = vdwg.mxu0
    %v1613 = vsel %vm292, %v1605, -inf
    %1614 = vmax.xlane.f32.xlu0 %v1613
    %v1615 = vpop.xlane.xlu0 %1614
    %v1616 = vsel %vm292, %v1610, -inf
    %1617 = vmax.xlane.f32.xlu0 %v1616
    %v1618 = vpop.xlane.xlu0 %1617
    %v1619 = vsub.f32 %v1605, %v1615
    %v1620 = vsub.f32 %v1610, %v1618
    %v1621 = vmul.f32 %v1619, 1.442695
    %v1622 = vpow.pop %v1621
    %v1623 = vmul.f32 %v1620, 1.442695
    %v1624 = vpow.pop %v1623
    %v1625 = vsel %vm292, %v1622, 0.0
    %1626 = vadd.xlane.f32.xlu0 %v1625
    %v1627 = vpop.xlane.xlu0 %1626
    %v1628 = vsel %vm292, %v1624, 0.0
    %1629 = vadd.xlane.f32.xlu0 %v1628
    %v1630 = vpop.xlane.xlu0 %1629
    %v1631 = vrcp.pop %v1627
    %v1632 = vrcp.pop %v1630
    %v1633 = vmul.f32 %v1622, %v1631
    %v1634 = vmul.f32 %v1624, %v1632
    %1635 = vrot.lane.b32.xlu0 %v1516, 64
    %v1636 = vpop.permute.xlu0 %1635
    %1637 = vrot.lane.b32.xlu0 %v1521, 64
    %v1638 = vpop.permute.xlu0 %1637
    %v1642 = vsel %vm292, %v1633, 0
    %v1645 = vsel %vm292, %v1634, 0
    %1647 = vmatprep.subr.mxu0 0.0
    %1648 = vmatpush1.msra.mxu0 %v1636
    %1649 = vmatprep.subr.mxu0 0.0
    %1650 = vmatpush1.msra.mxu0 %v1638
    %1651 = vmatprep.subr.mxu0 0.0
    %1652 = vmatpush1.msra.mxu0 0.0
    %1653 = vmatprep.subr.mxu0 0.0
    %1654 = vmatpush1.msra.mxu0 0.0
    %1655 = vmatprep.subr.mxu0 0.0
    %1656 = vmatpush1.msra.mxu0 0.0
    %1657 = vmatprep.subr.mxu0 0.0
    %1658 = vmatpush1.msra.mxu0 0.0
    %1659 = vmatprep.subr.mxu0 0.0
    %1660 = vmatpush1.msra.mxu0 0.0
    %1661 = vmatprep.subr.mxu0 0.0
    %1662 = vmatpush1.msra.mxu0 0.0
    %1663 = vmatprep.subr.mxu0 0.0
    %1664 = vmatpush1.msra.mxu0 0.0
    %1665 = vmatprep.subr.mxu0 0.0
    %1666 = vmatpush1.msra.mxu0 0.0
    %1667 = vmatprep.subr.mxu0 0.0
    %1668 = vmatpush1.msra.mxu0 0.0
    %1669 = vmatprep.subr.mxu0 0.0
    %1670 = vmatpush1.msra.mxu0 0.0
    %1671 = vmatprep.subr.mxu0 0.0
    %1672 = vmatpush1.msra.mxu0 0.0
    %1673 = vmatprep.subr.mxu0 0.0
    %1674 = vmatpush1.msra.mxu0 0.0
    %1675 = vmatprep.subr.mxu0 0.0
    %1676 = vmatpush1.msra.mxu0 0.0
    %1677 = vmatprep.subr.mxu0 0.0
    %1678 = vmatpush1.msra.mxu0 0.0
    %1679 = vmatprep.subr.mxu0 0.0
    %1680 = vmatpush1.msra.mxu0 0.0
    %1681 = vmatprep.subr.mxu0 0.0
    %1682 = vmatpush1.msra.mxu0 0.0
    %1683 = vmatprep.subr.mxu0 0.0
    %1684 = vmatpush1.msra.mxu0 0.0
    %1685 = vmatprep.subr.mxu0 0.0
    %1686 = vmatpush1.msra.mxu0 0.0
    %1687 = vmatprep.subr.mxu0 0.0
    %1688 = vmatpush1.msra.mxu0 0.0
    %1689 = vmatprep.subr.mxu0 0.0
    %1690 = vmatpush1.msra.mxu0 0.0
    %1691 = vmatprep.subr.mxu0 0.0
    %1692 = vmatpush1.msra.mxu0 0.0
    %1693 = vmatprep.subr.mxu0 0.0
    %1694 = vmatpush1.msra.mxu0 0.0
    %1695 = vmatprep.subr.mxu0 0.0
    %1696 = vmatpush1.msra.mxu0 0.0
    %1697 = vmatprep.subr.mxu0 0.0
    %1698 = vmatpush1.msra.mxu0 0.0
    %1699 = vmatprep.subr.mxu0 0.0
    %1700 = vmatpush1.msra.mxu0 0.0
    %1701 = vmatprep.subr.mxu0 0.0
    %1702 = vmatpush1.msra.mxu0 0.0
    %1703 = vmatprep.subr.mxu0 0.0
    %1704 = vmatpush1.msra.mxu0 0.0
    %1705 = vmatprep.subr.mxu0 0.0
    %1706 = vmatpush1.msra.mxu0 0.0
    %1707 = vmatprep.subr.mxu0 0.0
    %1708 = vmatpush1.msra.mxu0 0.0
    %1709 = vmatprep.subr.mxu0 0.0
    %1710 = vmatpush1.msra.mxu0 0.0
    %1711 = vmatprep.mubr.f32.mxu0 0.0
    %1712 = vmatmul.mubr.f32.gmra.mrb[0].mxu0 %v1642
    %v1713 = vpop.f32.mrb[0].mxu0
    %v1714 = vadd.f32 0.0, %v1713
    %v1715 = vpop.f32.mrb[0].mxu0
    %1716 = vmatprep.mubr.f32.mxu0 0.0
    %1717 = vmatmul.mubr.f32.gmra.mrb[0].mxu0 %v1645
    %v1718 = vpop.f32.mrb[0].mxu0
    %v1719 = vadd.f32 0.0, %v1718
    %v1720 = vpop.f32.mrb[0].mxu0
    %1721 = vdwg.mxu0
    %1722 = vst.msk [vmem:[#allocation2] sm:$0xff] %vm208, %v1714
    %1723 = vst.msk [vmem:[#allocation2 + $0x8] sm:$0xff] %vm208, %v1719
    %1724 = vrot.lane.b32.xlu0 %v1516, 120
    %v1725 = vpop.permute.xlu0 %1724
    %1726 = vrot.lane.b32.xlu0 %v1521, 120
    %v1727 = vpop.permute.xlu0 %1726
    %1728 = vrot.lane.b32.xlu0 %v1516, 88
    %v1729 = vpop.permute.xlu0 %1728
    %1730 = vrot.lane.b32.xlu0 %v1521, 88
    %v1731 = vpop.permute.xlu0 %1730
    %v1732 = vsel %vm208, %v1725, 0
    %v1734 = vsel %vm208, %v1727, 0
    %v1736 = vsel %vm208, %v1729, 0
    %v1738 = vsel %vm208, %v1731, 0
    %1740 = vmatprep.subr.mxu0 0.0
    %1741 = vmatpush1.xpose.msra.mxu0 %v1736
    %1742 = vmatprep.subr.mxu0 0.0
    %1743 = vmatpush1.xpose.msra.mxu0 %v1738
    %1744 = vmatprep.subr.mxu0 0.0
    %1745 = vmatpush1.xpose.msra.mxu0 0.0
    %1746 = vmatprep.subr.mxu0 0.0
    %1747 = vmatpush1.xpose.msra.mxu0 0.0
    %1748 = vmatprep.subr.mxu0 0.0
    %1749 = vmatpush1.xpose.msra.mxu0 0.0
    %1750 = vmatprep.subr.mxu0 0.0
    %1751 = vmatpush1.xpose.msra.mxu0 0.0
    %1752 = vmatprep.subr.mxu0 0.0
    %1753 = vmatpush1.xpose.msra.mxu0 0.0
    %1754 = vmatprep.subr.mxu0 0.0
    %1755 = vmatpush1.xpose.msra.mxu0 0.0
    %1756 = vmatprep.subr.mxu0 0.0
    %1757 = vmatpush1.xpose.msra.mxu0 0.0
    %1758 = vmatprep.subr.mxu0 0.0
    %1759 = vmatpush1.xpose.msra.mxu0 0.0
    %1760 = vmatprep.subr.mxu0 0.0
    %1761 = vmatpush1.xpose.msra.mxu0 0.0
    %1762 = vmatprep.subr.mxu0 0.0
    %1763 = vmatpush1.xpose.msra.mxu0 0.0
    %1764 = vmatprep.subr.mxu0 0.0
    %1765 = vmatpush1.xpose.msra.mxu0 0.0
    %1766 = vmatprep.subr.mxu0 0.0
    %1767 = vmatpush1.xpose.msra.mxu0 0.0
    %1768 = vmatprep.subr.mxu0 0.0
    %1769 = vmatpush1.xpose.msra.mxu0 0.0
    %1770 = vmatprep.subr.mxu0 0.0
    %1771 = vmatpush1.xpose.msra.mxu0 0.0
    %1772 = vmatprep.subr.mxu0 0.0
    %1773 = vmatpush1.xpose.msra.mxu0 0.0
    %1774 = vmatprep.subr.mxu0 0.0
    %1775 = vmatpush1.xpose.msra.mxu0 0.0
    %1776 = vmatprep.subr.mxu0 0.0
    %1777 = vmatpush1.xpose.msra.mxu0 0.0
    %1778 = vmatprep.subr.mxu0 0.0
    %1779 = vmatpush1.xpose.msra.mxu0 0.0
    %1780 = vmatprep.subr.mxu0 0.0
    %1781 = vmatpush1.xpose.msra.mxu0 0.0
    %1782 = vmatprep.subr.mxu0 0.0
    %1783 = vmatpush1.xpose.msra.mxu0 0.0
    %1784 = vmatprep.subr.mxu0 0.0
    %1785 = vmatpush1.xpose.msra.mxu0 0.0
    %1786 = vmatprep.subr.mxu0 0.0
    %1787 = vmatpush1.xpose.msra.mxu0 0.0
    %1788 = vmatprep.subr.mxu0 0.0
    %1789 = vmatpush1.xpose.msra.mxu0 0.0
    %1790 = vmatprep.subr.mxu0 0.0
    %1791 = vmatpush1.xpose.msra.mxu0 0.0
    %1792 = vmatprep.subr.mxu0 0.0
    %1793 = vmatpush1.xpose.msra.mxu0 0.0
    %1794 = vmatprep.subr.mxu0 0.0
    %1795 = vmatpush1.xpose.msra.mxu0 0.0
    %1796 = vmatprep.subr.mxu0 0.0
    %1797 = vmatpush1.xpose.msra.mxu0 0.0
    %1798 = vmatprep.subr.mxu0 0.0
    %1799 = vmatpush1.xpose.msra.mxu0 0.0
    %1800 = vmatprep.subr.mxu0 0.0
    %1801 = vmatpush1.xpose.msra.mxu0 0.0
    %1802 = vmatprep.subr.mxu0 0.0
    %1803 = vmatpush1.xpose.msra.mxu0 0.0
    %1804 = vmatprep.mubr.f32.mxu0 0.0
    %1805 = vmatmul.mubr.f32.gmra.mrb[0].mxu0 %v1732
    %v1806 = vpop.f32.mrb[0].mxu0
    %v1807 = vadd.f32 %v60, %v1806
    %v1808 = vpop.f32.mrb[0].mxu0
    %1809 = vmatprep.mubr.f32.mxu0 0.0
    %1810 = vmatmul.mubr.f32.gmra.mrb[0].mxu0 %v1734
    %v1811 = vpop.f32.mrb[0].mxu0
    %v1812 = vadd.f32 %v61, %v1811
    %v1813 = vpop.f32.mrb[0].mxu0
    %1814 = vdwg.mxu0
    %v1815 = vsel %vm292, %v1807, -inf
    %1816 = vmax.xlane.f32.xlu0 %v1815
    %v1817 = vpop.xlane.xlu0 %1816
    %v1818 = vsel %vm292, %v1812, -inf
    %1819 = vmax.xlane.f32.xlu0 %v1818
    %v1820 = vpop.xlane.xlu0 %1819
    %v1821 = vsub.f32 %v1807, %v1817
    %v1822 = vsub.f32 %v1812, %v1820
    %v1823 = vmul.f32 %v1821, 1.442695
    %v1824 = vpow.pop %v1823
    %v1825 = vmul.f32 %v1822, 1.442695
    %v1826 = vpow.pop %v1825
    %v1827 = vsel %vm292, %v1824, 0.0
    %1828 = vadd.xlane.f32.xlu0 %v1827
    %v1829 = vpop.xlane.xlu0 %1828
    %v1830 = vsel %vm292, %v1826, 0.0
    %1831 = vadd.xlane.f32.xlu0 %v1830
    %v1832 = vpop.xlane.xlu0 %1831
    %v1833 = vrcp.pop %v1829
    %v1834 = vrcp.pop %v1832
    %v1835 = vmul.f32 %v1824, %v1833
    %v1836 = vmul.f32 %v1826, %v1834
    %1837 = vrot.lane.b32.xlu0 %v1516, 56
    %v1838 = vpop.permute.xlu0 %1837
    %1839 = vrot.lane.b32.xlu0 %v1521, 56
    %v1840 = vpop.permute.xlu0 %1839
    %v1844 = vsel %vm292, %v1835, 0
    %v1847 = vsel %vm292, %v1836, 0
    %1849 = vmatprep.subr.mxu0 0.0
    %1850 = vmatpush1.msra.mxu0 %v1838
    %1851 = vmatprep.subr.mxu0 0.0
    %1852 = vmatpush1.msra.mxu0 %v1840
    %1853 = vmatprep.subr.mxu0 0.0
    %1854 = vmatpush1.msra.mxu0 0.0
    %1855 = vmatprep.subr.mxu0 0.0
    %1856 = vmatpush1.msra.mxu0 0.0
    %1857 = vmatprep.subr.mxu0 0.0
    %1858 = vmatpush1.msra.mxu0 0.0
    %1859 = vmatprep.subr.mxu0 0.0
    %1860 = vmatpush1.msra.mxu0 0.0
    %1861 = vmatprep.subr.mxu0 0.0
    %1862 = vmatpush1.msra.mxu0 0.0
    %1863 = vmatprep.subr.mxu0 0.0
    %1864 = vmatpush1.msra.mxu0 0.0
    %1865 = vmatprep.subr.mxu0 0.0
    %1866 = vmatpush1.msra.mxu0 0.0
    %1867 = vmatprep.subr.mxu0 0.0
    %1868 = vmatpush1.msra.mxu0 0.0
    %1869 = vmatprep.subr.mxu0 0.0
    %1870 = vmatpush1.msra.mxu0 0.0
    %1871 = vmatprep.subr.mxu0 0.0
    %1872 = vmatpush1.msra.mxu0 0.0
    %1873 = vmatprep.subr.mxu0 0.0
    %1874 = vmatpush1.msra.mxu0 0.0
    %1875 = vmatprep.subr.mxu0 0.0
    %1876 = vmatpush1.msra.mxu0 0.0
    %1877 = vmatprep.subr.mxu0 0.0
    %1878 = vmatpush1.msra.mxu0 0.0
    %1879 = vmatprep.subr.mxu0 0.0
    %1880 = vmatpush1.msra.mxu0 0.0
    %1881 = vmatprep.subr.mxu0 0.0
    %1882 = vmatpush1.msra.mxu0 0.0
    %1883 = vmatprep.subr.mxu0 0.0
    %1884 = vmatpush1.msra.mxu0 0.0
    %1885 = vmatprep.subr.mxu0 0.0
    %1886 = vmatpush1.msra.mxu0 0.0
    %1887 = vmatprep.subr.mxu0 0.0
    %1888 = vmatpush1.msra.mxu0 0.0
    %1889 = vmatprep.subr.mxu0 0.0
    %1890 = vmatpush1.msra.mxu0 0.0
    %1891 = vmatprep.subr.mxu0 0.0
    %1892 = vmatpush1.msra.mxu0 0.0
    %1893 = vmatprep.subr.mxu0 0.0
    %1894 = vmatpush1.msra.mxu0 0.0
    %1895 = vmatprep.subr.mxu0 0.0
    %1896 = vmatpush1.msra.mxu0 0.0
    %1897 = vmatprep.subr.mxu0 0.0
    %1898 = vmatpush1.msra.mxu0 0.0
    %1899 = vmatprep.subr.mxu0 0.0
    %1900 = vmatpush1.msra.mxu0 0.0
    %1901 = vmatprep.subr.mxu0 0.0
    %1902 = vmatpush1.msra.mxu0 0.0
    %1903 = vmatprep.subr.mxu0 0.0
    %1904 = vmatpush1.msra.mxu0 0.0
    %1905 = vmatprep.subr.mxu0 0.0
    %1906 = vmatpush1.msra.mxu0 0.0
    %1907 = vmatprep.subr.mxu0 0.0
    %1908 = vmatpush1.msra.mxu0 0.0
    %1909 = vmatprep.subr.mxu0 0.0
    %1910 = vmatpush1.msra.mxu0 0.0
    %1911 = vmatprep.subr.mxu0 0.0
    %1912 = vmatpush1.msra.mxu0 0.0
    %1913 = vmatprep.mubr.f32.mxu0 0.0
    %1914 = vmatmul.mubr.f32.gmra.mrb[0].mxu0 %v1844
    %v1915 = vpop.f32.mrb[0].mxu0
    %v1916 = vadd.f32 0.0, %v1915
    %v1917 = vpop.f32.mrb[0].mxu0
    %1918 = vmatprep.mubr.f32.mxu0 0.0
    %1919 = vmatmul.mubr.f32.gmra.mrb[0].mxu0 %v1847
    %v1920 = vpop.f32.mrb[0].mxu0
    %v1921 = vadd.f32 0.0, %v1920
    %v1922 = vpop.f32.mrb[0].mxu0
    %1923 = vdwg.mxu0
    %1926 = vrot.lane.b32.xlu0 %v1916, 8
    %v1927 = vpop.permute.xlu0 %1926
    %1928 = vrot.lane.b32.xlu0 %v1921, 8
    %v1929 = vpop.permute.xlu0 %1928
    %1932 = vst.msk [vmem:[#allocation2] sm:$0xff] %vm612, %v1927
    %1933 = vst.msk [vmem:[#allocation2 + $0x8] sm:$0xff] %vm612, %v1929
    %1934 = vrot.lane.b32.xlu0 %v1516, 112
    %v1935 = vpop.permute.xlu0 %1934
    %1936 = vrot.lane.b32.xlu0 %v1521, 112
    %v1937 = vpop.permute.xlu0 %1936
    %1938 = vrot.lane.b32.xlu0 %v1516, 80
    %v1939 = vpop.permute.xlu0 %1938
    %1940 = vrot.lane.b32.xlu0 %v1521, 80
    %v1941 = vpop.permute.xlu0 %1940
    %v1942 = vsel %vm208, %v1935, 0
    %v1944 = vsel %vm208, %v1937, 0
    %v1946 = vsel %vm208, %v1939, 0
    %v1948 = vsel %vm208, %v1941, 0
    %1950 = vmatprep.subr.mxu0 0.0
    %1951 = vmatpush1.xpose.msra.mxu0 %v1946
    %1952 = vmatprep.subr.mxu0 0.0
    %1953 = vmatpush1.xpose.msra.mxu0 %v1948
    %1954 = vmatprep.subr.mxu0 0.0
    %1955 = vmatpush1.xpose.msra.mxu0 0.0
    %1956 = vmatprep.subr.mxu0 0.0
    %1957 = vmatpush1.xpose.msra.mxu0 0.0
    %1958 = vmatprep.subr.mxu0 0.0
    %1959 = vmatpush1.xpose.msra.mxu0 0.0
    %1960 = vmatprep.subr.mxu0 0.0
    %1961 = vmatpush1.xpose.msra.mxu0 0.0
    %1962 = vmatprep.subr.mxu0 0.0
    %1963 = vmatpush1.xpose.msra.mxu0 0.0
    %1964 = vmatprep.subr.mxu0 0.0
    %1965 = vmatpush1.xpose.msra.mxu0 0.0
    %1966 = vmatprep.subr.mxu0 0.0
    %1967 = vmatpush1.xpose.msra.mxu0 0.0
    %1968 = vmatprep.subr.mxu0 0.0
    %1969 = vmatpush1.xpose.msra.mxu0 0.0
    %1970 = vmatprep.subr.mxu0 0.0
    %1971 = vmatpush1.xpose.msra.mxu0 0.0
    %1972 = vmatprep.subr.mxu0 0.0
    %1973 = vmatpush1.xpose.msra.mxu0 0.0
    %1974 = vmatprep.subr.mxu0 0.0
    %1975 = vmatpush1.xpose.msra.mxu0 0.0
    %1976 = vmatprep.subr.mxu0 0.0
    %1977 = vmatpush1.xpose.msra.mxu0 0.0
    %1978 = vmatprep.subr.mxu0 0.0
    %1979 = vmatpush1.xpose.msra.mxu0 0.0
    %1980 = vmatprep.subr.mxu0 0.0
    %1981 = vmatpush1.xpose.msra.mxu0 0.0
    %1982 = vmatprep.subr.mxu0 0.0
    %1983 = vmatpush1.xpose.msra.mxu0 0.0
    %1984 = vmatprep.subr.mxu0 0.0
    %1985 = vmatpush1.xpose.msra.mxu0 0.0
    %1986 = vmatprep.subr.mxu0 0.0
    %1987 = vmatpush1.xpose.msra.mxu0 0.0
    %1988 = vmatprep.subr.mxu0 0.0
    %1989 = vmatpush1.xpose.msra.mxu0 0.0
    %1990 = vmatprep.subr.mxu0 0.0
    %1991 = vmatpush1.xpose.msra.mxu0 0.0
    %1992 = vmatprep.subr.mxu0 0.0
    %1993 = vmatpush1.xpose.msra.mxu0 0.0
    %1994 = vmatprep.subr.mxu0 0.0
    %1995 = vmatpush1.xpose.msra.mxu0 0.0
    %1996 = vmatprep.subr.mxu0 0.0
    %1997 = vmatpush1.xpose.msra.mxu0 0.0
    %1998 = vmatprep.subr.mxu0 0.0
    %1999 = vmatpush1.xpose.msra.mxu0 0.0
    %2000 = vmatprep.subr.mxu0 0.0
    %2001 = vmatpush1.xpose.msra.mxu0 0.0
    %2002 = vmatprep.subr.mxu0 0.0
    %2003 = vmatpush1.xpose.msra.mxu0 0.0
    %2004 = vmatprep.subr.mxu0 0.0
    %2005 = vmatpush1.xpose.msra.mxu0 0.0
    %2006 = vmatprep.subr.mxu0 0.0
    %2007 = vmatpush1.xpose.msra.mxu0 0.0
    %2008 = vmatprep.subr.mxu0 0.0
    %2009 = vmatpush1.xpose.msra.mxu0 0.0
    %2010 = vmatprep.subr.mxu0 0.0
    %2011 = vmatpush1.xpose.msra.mxu0 0.0
    %2012 = vmatprep.subr.mxu0 0.0
    %2013 = vmatpush1.xpose.msra.mxu0 0.0
    %2014 = vmatprep.mubr.f32.mxu0 0.0
    %2015 = vmatmul.mubr.f32.gmra.mrb[0].mxu0 %v1942
    %v2016 = vpop.f32.mrb[0].mxu0
    %v2017 = vadd.f32 %v60, %v2016
    %v2018 = vpop.f32.mrb[0].mxu0
    %2019 = vmatprep.mubr.f32.mxu0 0.0
    %2020 = vmatmul.mubr.f32.gmra.mrb[0].mxu0 %v1944
    %v2021 = vpop.f32.mrb[0].mxu0
    %v2022 = vadd.f32 %v61, %v2021
    %v2023 = vpop.f32.mrb[0].mxu0
    %2024 = vdwg.mxu0
    %v2025 = vsel %vm292, %v2017, -inf
    %2026 = vmax.xlane.f32.xlu0 %v2025
    %v2027 = vpop.xlane.xlu0 %2026
    %v2028 = vsel %vm292, %v2022, -inf
    %2029 = vmax.xlane.f32.xlu0 %v2028
    %v2030 = vpop.xlane.xlu0 %2029
    %v2031 = vsub.f32 %v2017, %v2027
    %v2032 = vsub.f32 %v2022, %v2030
    %v2033 = vmul.f32 %v2031, 1.442695
    %v2034 = vpow.pop %v2033
    %v2035 = vmul.f32 %v2032, 1.442695
    %v2036 = vpow.pop %v2035
    %v2037 = vsel %vm292, %v2034, 0.0
    %2038 = vadd.xlane.f32.xlu0 %v2037
    %v2039 = vpop.xlane.xlu0 %2038
    %v2040 = vsel %vm292, %v2036, 0.0
    %2041 = vadd.xlane.f32.xlu0 %v2040
    %v2042 = vpop.xlane.xlu0 %2041
    %v2043 = vrcp.pop %v2039
    %v2044 = vrcp.pop %v2042
    %v2045 = vmul.f32 %v2034, %v2043
    %v2046 = vmul.f32 %v2036, %v2044
    %2047 = vrot.lane.b32.xlu0 %v1516, 48
    %v2048 = vpop.permute.xlu0 %2047
    %2049 = vrot.lane.b32.xlu0 %v1521, 48
    %v2050 = vpop.permute.xlu0 %2049
    %v2054 = vsel %vm292, %v2045, 0
    %v2057 = vsel %vm292, %v2046, 0
    %2059 = vmatprep.subr.mxu0 0.0
    %2060 = vmatpush1.msra.mxu0 %v2048
    %2061 = vmatprep.subr.mxu0 0.0
    %2062 = vmatpush1.msra.mxu0 %v2050
    %2063 = vmatprep.subr.mxu0 0.0
    %2064 = vmatpush1.msra.mxu0 0.0
    %2065 = vmatprep.subr.mxu0 0.0
    %2066 = vmatpush1.msra.mxu0 0.0
    %2067 = vmatprep.subr.mxu0 0.0
    %2068 = vmatpush1.msra.mxu0 0.0
    %2069 = vmatprep.subr.mxu0 0.0
    %2070 = vmatpush1.msra.mxu0 0.0
    %2071 = vmatprep.subr.mxu0 0.0
    %2072 = vmatpush1.msra.mxu0 0.0
    %2073 = vmatprep.subr.mxu0 0.0
    %2074 = vmatpush1.msra.mxu0 0.0
    %2075 = vmatprep.subr.mxu0 0.0
    %2076 = vmatpush1.msra.mxu0 0.0
    %2077 = vmatprep.subr.mxu0 0.0
    %2078 = vmatpush1.msra.mxu0 0.0
    %2079 = vmatprep.subr.mxu0 0.0
    %2080 = vmatpush1.msra.mxu0 0.0
    %2081 = vmatprep.subr.mxu0 0.0
    %2082 = vmatpush1.msra.mxu0 0.0
    %2083 = vmatprep.subr.mxu0 0.0
    %2084 = vmatpush1.msra.mxu0 0.0
    %2085 = vmatprep.subr.mxu0 0.0
    %2086 = vmatpush1.msra.mxu0 0.0
    %2087 = vmatprep.subr.mxu0 0.0
    %2088 = vmatpush1.msra.mxu0 0.0
    %2089 = vmatprep.subr.mxu0 0.0
    %2090 = vmatpush1.msra.mxu0 0.0
    %2091 = vmatprep.subr.mxu0 0.0
    %2092 = vmatpush1.msra.mxu0 0.0
    %2093 = vmatprep.subr.mxu0 0.0
    %2094 = vmatpush1.msra.mxu0 0.0
    %2095 = vmatprep.subr.mxu0 0.0
    %2096 = vmatpush1.msra.mxu0 0.0
    %2097 = vmatprep.subr.mxu0 0.0
    %2098 = vmatpush1.msra.mxu0 0.0
    %2099 = vmatprep.subr.mxu0 0.0
    %2100 = vmatpush1.msra.mxu0 0.0
    %2101 = vmatprep.subr.mxu0 0.0
    %2102 = vmatpush1.msra.mxu0 0.0
    %2103 = vmatprep.subr.mxu0 0.0
    %2104 = vmatpush1.msra.mxu0 0.0
    %2105 = vmatprep.subr.mxu0 0.0
    %2106 = vmatpush1.msra.mxu0 0.0
    %2107 = vmatprep.subr.mxu0 0.0
    %2108 = vmatpush1.msra.mxu0 0.0
    %2109 = vmatprep.subr.mxu0 0.0
    %2110 = vmatpush1.msra.mxu0 0.0
    %2111 = vmatprep.subr.mxu0 0.0
    %2112 = vmatpush1.msra.mxu0 0.0
    %2113 = vmatprep.subr.mxu0 0.0
    %2114 = vmatpush1.msra.mxu0 0.0
    %2115 = vmatprep.subr.mxu0 0.0
    %2116 = vmatpush1.msra.mxu0 0.0
    %2117 = vmatprep.subr.mxu0 0.0
    %2118 = vmatpush1.msra.mxu0 0.0
    %2119 = vmatprep.subr.mxu0 0.0
    %2120 = vmatpush1.msra.mxu0 0.0
    %2121 = vmatprep.subr.mxu0 0.0
    %2122 = vmatpush1.msra.mxu0 0.0
    %2123 = vmatprep.mubr.f32.mxu0 0.0
    %2124 = vmatmul.mubr.f32.gmra.mrb[0].mxu0 %v2054
    %v2125 = vpop.f32.mrb[0].mxu0
    %v2126 = vadd.f32 0.0, %v2125
    %v2127 = vpop.f32.mrb[0].mxu0
    %2128 = vmatprep.mubr.f32.mxu0 0.0
    %2129 = vmatmul.mubr.f32.gmra.mrb[0].mxu0 %v2057
    %v2130 = vpop.f32.mrb[0].mxu0
    %v2131 = vadd.f32 0.0, %v2130
    %v2132 = vpop.f32.mrb[0].mxu0
    %2133 = vdwg.mxu0
    %2136 = vrot.lane.b32.xlu0 %v2126, 16
    %v2137 = vpop.permute.xlu0 %2136
    %2138 = vrot.lane.b32.xlu0 %v2131, 16
    %v2139 = vpop.permute.xlu0 %2138
    %2142 = vst.msk [vmem:[#allocation2] sm:$0xff] %vm823, %v2137
    %2143 = vst.msk [vmem:[#allocation2 + $0x8] sm:$0xff] %vm823, %v2139
    %2144 = vrot.lane.b32.xlu0 %v1516, 104
    %v2145 = vpop.permute.xlu0 %2144
    %2146 = vrot.lane.b32.xlu0 %v1521, 104
    %v2147 = vpop.permute.xlu0 %2146
    %2148 = vrot.lane.b32.xlu0 %v1516, 72
    %v2149 = vpop.permute.xlu0 %2148
    %2150 = vrot.lane.b32.xlu0 %v1521, 72
    %v2151 = vpop.permute.xlu0 %2150
    %v2152 = vsel %vm208, %v2145, 0
    %v2154 = vsel %vm208, %v2147, 0
    %v2156 = vsel %vm208, %v2149, 0
    %v2158 = vsel %vm208, %v2151, 0
    %2160 = vmatprep.subr.mxu0 0.0
    %2161 = vmatpush1.xpose.msra.mxu0 %v2156
    %2162 = vmatprep.subr.mxu0 0.0
    %2163 = vmatpush1.xpose.msra.mxu0 %v2158
    %2164 = vmatprep.subr.mxu0 0.0
    %2165 = vmatpush1.xpose.msra.mxu0 0.0
    %2166 = vmatprep.subr.mxu0 0.0
    %2167 = vmatpush1.xpose.msra.mxu0 0.0
    %2168 = vmatprep.subr.mxu0 0.0
    %2169 = vmatpush1.xpose.msra.mxu0 0.0
    %2170 = vmatprep.subr.mxu0 0.0
    %2171 = vmatpush1.xpose.msra.mxu0 0.0
    %2172 = vmatprep.subr.mxu0 0.0
    %2173 = vmatpush1.xpose.msra.mxu0 0.0
    %2174 = vmatprep.subr.mxu0 0.0
    %2175 = vmatpush1.xpose.msra.mxu0 0.0
    %2176 = vmatprep.subr.mxu0 0.0
    %2177 = vmatpush1.xpose.msra.mxu0 0.0
    %2178 = vmatprep.subr.mxu0 0.0
    %2179 = vmatpush1.xpose.msra.mxu0 0.0
    %2180 = vmatprep.subr.mxu0 0.0
    %2181 = vmatpush1.xpose.msra.mxu0 0.0
    %2182 = vmatprep.subr.mxu0 0.0
    %2183 = vmatpush1.xpose.msra.mxu0 0.0
    %2184 = vmatprep.subr.mxu0 0.0
    %2185 = vmatpush1.xpose.msra.mxu0 0.0
    %2186 = vmatprep.subr.mxu0 0.0
    %2187 = vmatpush1.xpose.msra.mxu0 0.0
    %2188 = vmatprep.subr.mxu0 0.0
    %2189 = vmatpush1.xpose.msra.mxu0 0.0
    %2190 = vmatprep.subr.mxu0 0.0
    %2191 = vmatpush1.xpose.msra.mxu0 0.0
    %2192 = vmatprep.subr.mxu0 0.0
    %2193 = vmatpush1.xpose.msra.mxu0 0.0
    %2194 = vmatprep.subr.mxu0 0.0
    %2195 = vmatpush1.xpose.msra.mxu0 0.0
    %2196 = vmatprep.subr.mxu0 0.0
    %2197 = vmatpush1.xpose.msra.mxu0 0.0
    %2198 = vmatprep.subr.mxu0 0.0
    %2199 = vmatpush1.xpose.msra.mxu0 0.0
    %2200 = vmatprep.subr.mxu0 0.0
    %2201 = vmatpush1.xpose.msra.mxu0 0.0
    %2202 = vmatprep.subr.mxu0 0.0
    %2203 = vmatpush1.xpose.msra.mxu0 0.0
    %2204 = vmatprep.subr.mxu0 0.0
    %2205 = vmatpush1.xpose.msra.mxu0 0.0
    %2206 = vmatprep.subr.mxu0 0.0
    %2207 = vmatpush1.xpose.msra.mxu0 0.0
    %2208 = vmatprep.subr.mxu0 0.0
    %2209 = vmatpush1.xpose.msra.mxu0 0.0
    %2210 = vmatprep.subr.mxu0 0.0
    %2211 = vmatpush1.xpose.msra.mxu0 0.0
    %2212 = vmatprep.subr.mxu0 0.0
    %2213 = vmatpush1.xpose.msra.mxu0 0.0
    %2214 = vmatprep.subr.mxu0 0.0
    %2215 = vmatpush1.xpose.msra.mxu0 0.0
    %2216 = vmatprep.subr.mxu0 0.0
    %2217 = vmatpush1.xpose.msra.mxu0 0.0
    %2218 = vmatprep.subr.mxu0 0.0
    %2219 = vmatpush1.xpose.msra.mxu0 0.0
    %2220 = vmatprep.subr.mxu0 0.0
    %2221 = vmatpush1.xpose.msra.mxu0 0.0
    %2222 = vmatprep.subr.mxu0 0.0
    %2223 = vmatpush1.xpose.msra.mxu0 0.0
    %2224 = vmatprep.mubr.f32.mxu0 0.0
    %2225 = vmatmul.mubr.f32.gmra.mrb[0].mxu0 %v2152
    %v2226 = vpop.f32.mrb[0].mxu0
    %v2227 = vadd.f32 %v60, %v2226
    %v2228 = vpop.f32.mrb[0].mxu0
    %2229 = vmatprep.mubr.f32.mxu0 0.0
    %2230 = vmatmul.mubr.f32.gmra.mrb[0].mxu0 %v2154
    %v2231 = vpop.f32.mrb[0].mxu0
    %v2232 = vadd.f32 %v61, %v2231
    %v2233 = vpop.f32.mrb[0].mxu0
    %2234 = vdwg.mxu0
    %v2235 = vsel %vm292, %v2227, -inf
    %2236 = vmax.xlane.f32.xlu0 %v2235
    %v2237 = vpop.xlane.xlu0 %2236
    %v2238 = vsel %vm292, %v2232, -inf
    %2239 = vmax.xlane.f32.xlu0 %v2238
    %v2240 = vpop.xlane.xlu0 %2239
    %v2241 = vsub.f32 %v2227, %v2237
    %v2242 = vsub.f32 %v2232, %v2240
    %v2243 = vmul.f32 %v2241, 1.442695
    %v2244 = vpow.pop %v2243
    %v2245 = vmul.f32 %v2242, 1.442695
    %v2246 = vpow.pop %v2245
    %v2247 = vsel %vm292, %v2244, 0.0
    %2248 = vadd.xlane.f32.xlu0 %v2247
    %v2249 = vpop.xlane.xlu0 %2248
    %v2250 = vsel %vm292, %v2246, 0.0
    %2251 = vadd.xlane.f32.xlu0 %v2250
    %v2252 = vpop.xlane.xlu0 %2251
    %v2253 = vrcp.pop %v2249
    %v2254 = vrcp.pop %v2252
    %v2255 = vmul.f32 %v2244, %v2253
    %v2256 = vmul.f32 %v2246, %v2254
    %2257 = vrot.lane.b32.xlu0 %v1516, 40
    %v2258 = vpop.permute.xlu0 %2257
    %2259 = vrot.lane.b32.xlu0 %v1521, 40
    %v2260 = vpop.permute.xlu0 %2259
    %v2264 = vsel %vm292, %v2255, 0
    %v2267 = vsel %vm292, %v2256, 0
    %2269 = vmatprep.subr.mxu0 0.0
    %2270 = vmatpush1.msra.mxu0 %v2258
    %2271 = vmatprep.subr.mxu0 0.0
    %2272 = vmatpush1.msra.mxu0 %v2260
    %2273 = vmatprep.subr.mxu0 0.0
    %2274 = vmatpush1.msra.mxu0 0.0
    %2275 = vmatprep.subr.mxu0 0.0
    %2276 = vmatpush1.msra.mxu0 0.0
    %2277 = vmatprep.subr.mxu0 0.0
    %2278 = vmatpush1.msra.mxu0 0.0
    %2279 = vmatprep.subr.mxu0 0.0
    %2280 = vmatpush1.msra.mxu0 0.0
    %2281 = vmatprep.subr.mxu0 0.0
    %2282 = vmatpush1.msra.mxu0 0.0
    %2283 = vmatprep.subr.mxu0 0.0
    %2284 = vmatpush1.msra.mxu0 0.0
    %2285 = vmatprep.subr.mxu0 0.0
    %2286 = vmatpush1.msra.mxu0 0.0
    %2287 = vmatprep.subr.mxu0 0.0
    %2288 = vmatpush1.msra.mxu0 0.0
    %2289 = vmatprep.subr.mxu0 0.0
    %2290 = vmatpush1.msra.mxu0 0.0
    %2291 = vmatprep.subr.mxu0 0.0
    %2292 = vmatpush1.msra.mxu0 0.0
    %2293 = vmatprep.subr.mxu0 0.0
    %2294 = vmatpush1.msra.mxu0 0.0
    %2295 = vmatprep.subr.mxu0 0.0
    %2296 = vmatpush1.msra.mxu0 0.0
    %2297 = vmatprep.subr.mxu0 0.0
    %2298 = vmatpush1.msra.mxu0 0.0
    %2299 = vmatprep.subr.mxu0 0.0
    %2300 = vmatpush1.msra.mxu0 0.0
    %2301 = vmatprep.subr.mxu0 0.0
    %2302 = vmatpush1.msra.mxu0 0.0
    %2303 = vmatprep.subr.mxu0 0.0
    %2304 = vmatpush1.msra.mxu0 0.0
    %2305 = vmatprep.subr.mxu0 0.0
    %2306 = vmatpush1.msra.mxu0 0.0
    %2307 = vmatprep.subr.mxu0 0.0
    %2308 = vmatpush1.msra.mxu0 0.0
    %2309 = vmatprep.subr.mxu0 0.0
    %2310 = vmatpush1.msra.mxu0 0.0
    %2311 = vmatprep.subr.mxu0 0.0
    %2312 = vmatpush1.msra.mxu0 0.0
    %2313 = vmatprep.subr.mxu0 0.0
    %2314 = vmatpush1.msra.mxu0 0.0
    %2315 = vmatprep.subr.mxu0 0.0
    %2316 = vmatpush1.msra.mxu0 0.0
    %2317 = vmatprep.subr.mxu0 0.0
    %2318 = vmatpush1.msra.mxu0 0.0
    %2319 = vmatprep.subr.mxu0 0.0
    %2320 = vmatpush1.msra.mxu0 0.0
    %2321 = vmatprep.subr.mxu0 0.0
    %2322 = vmatpush1.msra.mxu0 0.0
    %2323 = vmatprep.subr.mxu0 0.0
    %2324 = vmatpush1.msra.mxu0 0.0
    %2325 = vmatprep.subr.mxu0 0.0
    %2326 = vmatpush1.msra.mxu0 0.0
    %2327 = vmatprep.subr.mxu0 0.0
    %2328 = vmatpush1.msra.mxu0 0.0
    %2329 = vmatprep.subr.mxu0 0.0
    %2330 = vmatpush1.msra.mxu0 0.0
    %2331 = vmatprep.subr.mxu0 0.0
    %2332 = vmatpush1.msra.mxu0 0.0
    %2333 = vmatprep.mubr.f32.mxu0 0.0
    %2334 = vmatmul.mubr.f32.gmra.mrb[0].mxu0 %v2264
    %v2335 = vpop.f32.mrb[0].mxu0
    %v2336 = vadd.f32 0.0, %v2335
    %v2337 = vpop.f32.mrb[0].mxu0
    %2338 = vmatprep.mubr.f32.mxu0 0.0
    %2339 = vmatmul.mubr.f32.gmra.mrb[0].mxu0 %v2267
    %v2340 = vpop.f32.mrb[0].mxu0
    %v2341 = vadd.f32 0.0, %v2340
    %v2342 = vpop.f32.mrb[0].mxu0
    %2343 = vdwg.mxu0
    %2346 = vrot.lane.b32.xlu0 %v2336, 24
    %v2347 = vpop.permute.xlu0 %2346
    %2348 = vrot.lane.b32.xlu0 %v2341, 24
    %v2349 = vpop.permute.xlu0 %2348
    %2352 = vst.msk [vmem:[#allocation2] sm:$0xff] %vm1034, %v2347
    %2353 = vst.msk [vmem:[#allocation2 + $0x8] sm:$0xff] %vm1034, %v2349
    %v2354 = vld [vmem:[#allocation2] sm:$0xff]
    %v2355 = vld [vmem:[#allocation2 + $0x8] sm:$0xff]
    %s2356 = scalar_lea.vmem %s6, 32
    %v2357 = vld [vmem:[%s2356] sm:$0xff]
    %v2358 = vld [vmem:[%s2356 + $0x8] sm:$0xff]
    %v2359 = vld [vmem:[%s2356 + $0x10] sm:$0xff]
    %v2360 = vld [vmem:[%s2356 + $0x18] sm:$0xff]
    %s2361 = scalar_lea.vmem %s7, 1
    %v2362 = vld [vmem:[%s2361] sm:$0x1]
    %v2364 = vlaneseq
    %v2365 = vshrl.u32 %v2364, 7
    %v2366 = vsub.s32 0, %v2365
    %v2367 = vrot.slane %v2362, %v2366
    %v2370 = vsel %vm66, %v2354, 0
    %v2373 = vsel %vm66, %v2355, 0
    %2375 = vmatprep.subr.mxu0 0.0
    %2376 = vmatpush1.msra.mxu0 %v2357
    %2377 = vmatprep.subr.mxu0 0.0
    %2378 = vmatpush1.msra.mxu0 %v2358
    %2379 = vmatprep.subr.mxu0 0.0
    %2380 = vmatpush1.msra.mxu0 %v2359
    %2381 = vmatprep.subr.mxu0 0.0
    %2382 = vmatpush1.msra.mxu0 %v2360
    %2383 = vmatprep.subr.mxu0 0.0
    %2384 = vmatpush1.msra.mxu0 0.0
    %2385 = vmatprep.subr.mxu0 0.0
    %2386 = vmatpush1.msra.mxu0 0.0
    %2387 = vmatprep.subr.mxu0 0.0
    %2388 = vmatpush1.msra.mxu0 0.0
    %2389 = vmatprep.subr.mxu0 0.0
    %2390 = vmatpush1.msra.mxu0 0.0
    %2391 = vmatprep.subr.mxu0 0.0
    %2392 = vmatpush1.msra.mxu0 0.0
    %2393 = vmatprep.subr.mxu0 0.0
    %2394 = vmatpush1.msra.mxu0 0.0
    %2395 = vmatprep.subr.mxu0 0.0
    %2396 = vmatpush1.msra.mxu0 0.0
    %2397 = vmatprep.subr.mxu0 0.0
    %2398 = vmatpush1.msra.mxu0 0.0
    %2399 = vmatprep.subr.mxu0 0.0
    %2400 = vmatpush1.msra.mxu0 0.0
    %2401 = vmatprep.subr.mxu0 0.0
    %2402 = vmatpush1.msra.mxu0 0.0
    %2403 = vmatprep.subr.mxu0 0.0
    %2404 = vmatpush1.msra.mxu0 0.0
    %2405 = vmatprep.subr.mxu0 0.0
    %2406 = vmatpush1.msra.mxu0 0.0
    %2407 = vmatprep.subr.mxu0 0.0
    %2408 = vmatpush1.msra.mxu0 0.0
    %2409 = vmatprep.subr.mxu0 0.0
    %2410 = vmatpush1.msra.mxu0 0.0
    %2411 = vmatprep.subr.mxu0 0.0
    %2412 = vmatpush1.msra.mxu0 0.0
    %2413 = vmatprep.subr.mxu0 0.0
    %2414 = vmatpush1.msra.mxu0 0.0
    %2415 = vmatprep.subr.mxu0 0.0
    %2416 = vmatpush1.msra.mxu0 0.0
    %2417 = vmatprep.subr.mxu0 0.0
    %2418 = vmatpush1.msra.mxu0 0.0
    %2419 = vmatprep.subr.mxu0 0.0
    %2420 = vmatpush1.msra.mxu0 0.0
    %2421 = vmatprep.subr.mxu0 0.0
    %2422 = vmatpush1.msra.mxu0 0.0
    %2423 = vmatprep.subr.mxu0 0.0
    %2424 = vmatpush1.msra.mxu0 0.0
    %2425 = vmatprep.subr.mxu0 0.0
    %2426 = vmatpush1.msra.mxu0 0.0
    %2427 = vmatprep.subr.mxu0 0.0
    %2428 = vmatpush1.msra.mxu0 0.0
    %2429 = vmatprep.subr.mxu0 0.0
    %2430 = vmatpush1.msra.mxu0 0.0
    %2431 = vmatprep.subr.mxu0 0.0
    %2432 = vmatpush1.msra.mxu0 0.0
    %2433 = vmatprep.subr.mxu0 0.0
    %2434 = vmatpush1.msra.mxu0 0.0
    %2435 = vmatprep.subr.mxu0 0.0
    %2436 = vmatpush1.msra.mxu0 0.0
    %2437 = vmatprep.subr.mxu0 0.0
    %2438 = vmatpush1.msra.mxu0 0.0
    %2439 = vmatprep.mubr.f32.mxu0 0.0
    %2440 = vmatmul.mubr.f32.gmra.mrb[0].mxu0 %v2370
    %v2441 = vpop.f32.mrb[0].mxu0
    %v2442 = vadd.f32 %v2367, %v2441
    %v2443 = vpop.f32.mrb[0].mxu0
    %2444 = vmatprep.mubr.f32.mxu0 0.0
    %2445 = vmatmul.mubr.f32.gmra.mrb[0].mxu0 %v2373
    %v2446 = vpop.f32.mrb[0].mxu0
    %v2447 = vadd.f32 %v2367, %v2446
    %v2448 = vpop.f32.mrb[0].mxu0
    %2449 = vdwg.mxu0
    %v2450 = vadd.f32 %v2442, %v1428
    %v2451 = vadd.f32 %v2447, %v1429
    %s2452 = scalar_lea.vmem %s8, 1
    %v2453 = vld [vmem:[%s2452] sm:$0x1]
    %s2454 = scalar_lea.vmem %s9, 1
    %v2455 = vld [vmem:[%s2454] sm:$0x1]
    %v2456 = vsel %vm66, %v2450, 0.0
    %2457 = vadd.xlane.f32.xlu0 %v2456
    %v2458 = vpop.xlane.xlu0 %2457
    %v2459 = vsel %vm66, %v2451, 0.0
    %2460 = vadd.xlane.f32.xlu0 %v2459
    %v2461 = vpop.xlane.xlu0 %2460
    %v2462 = vmul.f32 %v2458, %v73
    %v2463 = vmul.f32 %v2461, %v73
    %v2464 = vsub.f32 %v2450, %v2462
    %v2465 = vsub.f32 %v2451, %v2463
    %v2466 = vmul.f32 %v2464, %v2464
    %v2467 = vmul.f32 %v2465, %v2465
    %v2468 = vsel %vm66, %v2466, 0.0
    %2469 = vadd.xlane.f32.xlu0 %v2468
    %v2470 = vpop.xlane.xlu0 %2469
    %v2471 = vsel %vm66, %v2467, 0.0
    %2472 = vadd.xlane.f32.xlu0 %v2471
    %v2473 = vpop.xlane.xlu0 %2472
    %v2474 = vmul.f32 %v2470, %v73
    %v2475 = vmul.f32 %v2473, %v73
    %v2476 = vadd.f32 %v2474, 1e-12
    %v2477 = vadd.f32 %v2475, 1e-12
    %v2478 = vrsqrt.pop %v2476
    %v2479 = vrsqrt.pop %v2477
    %v2480 = vmul.f32 %v2464, %v2478
    %v2481 = vmul.f32 %v2465, %v2479
    %v2483 = vlaneseq
    %v2484 = vshrl.u32 %v2483, 7
    %v2485 = vsub.s32 0, %v2484
    %v2486 = vrot.slane %v2453, %v2485
    %v2488 = vmul.f32 %v2480, %v2486
    %v2489 = vmul.f32 %v2481, %v2486
    %v2491 = vlaneseq
    %v2492 = vshrl.u32 %v2491, 7
    %v2493 = vsub.s32 0, %v2492
    %v2494 = vrot.slane %v2455, %v2493
    %v2496 = vadd.f32 %v2488, %v2494
    %v2497 = vadd.f32 %v2489, %v2494
    %s2498 = scalar_lea.vmem %s10, 32
    %v2499 = vld [vmem:[%s2498] sm:$0xff]
    %v2500 = vld [vmem:[%s2498 + $0x8] sm:$0xff]
    %v2501 = vld [vmem:[%s2498 + $0x10] sm:$0xff]
    %v2502 = vld [vmem:[%s2498 + $0x18] sm:$0xff]
    %s2503 = scalar_lea.vmem %s11, 1
    %v2504 = vld [vmem:[%s2503] sm:$0x1]
    %v2506 = vlaneseq
    %v2507 = vshrl.u32 %v2506, 7
    %v2508 = vsub.s32 0, %v2507
    %v2509 = vrot.slane %v2504, %v2508
    %v2512 = vsel %vm66, %v2496, 0
    %v2515 = vsel %vm66, %v2497, 0
    %2517 = vmatprep.subr.mxu0 0.0
    %2518 = vmatpush1.msra.mxu0 %v2499
    %2519 = vmatprep.subr.mxu0 0.0
    %2520 = vmatpush1.msra.mxu0 %v2500
    %2521 = vmatprep.subr.mxu0 0.0
    %2522 = vmatpush1.msra.mxu0 %v2501
    %2523 = vmatprep.subr.mxu0 0.0
    %2524 = vmatpush1.msra.mxu0 %v2502
    %2525 = vmatprep.subr.mxu0 0.0
    %2526 = vmatpush1.msra.mxu0 0.0
    %2527 = vmatprep.subr.mxu0 0.0
    %2528 = vmatpush1.msra.mxu0 0.0
    %2529 = vmatprep.subr.mxu0 0.0
    %2530 = vmatpush1.msra.mxu0 0.0
    %2531 = vmatprep.subr.mxu0 0.0
    %2532 = vmatpush1.msra.mxu0 0.0
    %2533 = vmatprep.subr.mxu0 0.0
    %2534 = vmatpush1.msra.mxu0 0.0
    %2535 = vmatprep.subr.mxu0 0.0
    %2536 = vmatpush1.msra.mxu0 0.0
    %2537 = vmatprep.subr.mxu0 0.0
    %2538 = vmatpush1.msra.mxu0 0.0
    %2539 = vmatprep.subr.mxu0 0.0
    %2540 = vmatpush1.msra.mxu0 0.0
    %2541 = vmatprep.subr.mxu0 0.0
    %2542 = vmatpush1.msra.mxu0 0.0
    %2543 = vmatprep.subr.mxu0 0.0
    %2544 = vmatpush1.msra.mxu0 0.0
    %2545 = vmatprep.subr.mxu0 0.0
    %2546 = vmatpush1.msra.mxu0 0.0
    %2547 = vmatprep.subr.mxu0 0.0
    %2548 = vmatpush1.msra.mxu0 0.0
    %2549 = vmatprep.subr.mxu0 0.0
    %2550 = vmatpush1.msra.mxu0 0.0
    %2551 = vmatprep.subr.mxu0 0.0
    %2552 = vmatpush1.msra.mxu0 0.0
    %2553 = vmatprep.subr.mxu0 0.0
    %2554 = vmatpush1.msra.mxu0 0.0
    %2555 = vmatprep.subr.mxu0 0.0
    %2556 = vmatpush1.msra.mxu0 0.0
    %2557 = vmatprep.subr.mxu0 0.0
    %2558 = vmatpush1.msra.mxu0 0.0
    %2559 = vmatprep.subr.mxu0 0.0
    %2560 = vmatpush1.msra.mxu0 0.0
    %2561 = vmatprep.subr.mxu0 0.0
    %2562 = vmatpush1.msra.mxu0 0.0
    %2563 = vmatprep.subr.mxu0 0.0
    %2564 = vmatpush1.msra.mxu0 0.0
    %2565 = vmatprep.subr.mxu0 0.0
    %2566 = vmatpush1.msra.mxu0 0.0
    %2567 = vmatprep.subr.mxu0 0.0
    %2568 = vmatpush1.msra.mxu0 0.0
    %2569 = vmatprep.subr.mxu0 0.0
    %2570 = vmatpush1.msra.mxu0 0.0
    %2571 = vmatprep.subr.mxu0 0.0
    %2572 = vmatpush1.msra.mxu0 0.0
    %2573 = vmatprep.subr.mxu0 0.0
    %2574 = vmatpush1.msra.mxu0 0.0
    %2575 = vmatprep.subr.mxu0 0.0
    %2576 = vmatpush1.msra.mxu0 0.0
    %2577 = vmatprep.subr.mxu0 0.0
    %2578 = vmatpush1.msra.mxu0 0.0
    %2579 = vmatprep.subr.mxu0 0.0
    %2580 = vmatpush1.msra.mxu0 0.0
    %2581 = vmatprep.mubr.f32.mxu0 0.0
    %2582 = vmatmul.mubr.f32.gmra.mrb[0].mxu0 %v2512
    %v2583 = vpop.f32.mrb[0].mxu0
    %v2584 = vadd.f32 %v2509, %v2583
    %v2585 = vpop.f32.mrb[0].mxu0
    %2586 = vmatprep.mubr.f32.mxu0 0.0
    %2587 = vmatmul.mubr.f32.gmra.mrb[0].mxu0 %v2515
    %v2588 = vpop.f32.mrb[0].mxu0
    %v2589 = vadd.f32 %v2509, %v2588
    %v2590 = vpop.f32.mrb[0].mxu0
    %2591 = vdwg.mxu0
    %v2592 = vmul.f32 %v2584, 0.5
    %v2593 = vmul.f32 %v2589, 0.5
    %v2594 = vmul.f32 %v2584, 0.044715
    %v2595 = vmul.f32 %v2589, 0.044715
    %v2596 = vmul.f32 %v2594, %v2584
    %v2597 = vmul.f32 %v2595, %v2589
    %v2598 = vmul.f32 %v2596, %v2584
    %v2599 = vmul.f32 %v2597, %v2589
    %v2600 = vadd.f32 %v2584, %v2598
    %v2601 = vadd.f32 %v2589, %v2599
    %v2602 = vmul.f32 %v2600, 0.7978846
    %v2603 = vmul.f32 %v2601, 0.7978846
    %v2604 = vtanh.pop %v2602
    %v2605 = vtanh.pop %v2603
    %v2606 = vadd.f32 %v2604, 1.0
    %v2607 = vadd.f32 %v2605, 1.0
    %v2608 = vmul.f32 %v2592, %v2606
    %v2609 = vmul.f32 %v2593, %v2607
    %s2610 = scalar_lea.vmem %s12, 64
    %v2611 = vld [vmem:[%s2610] sm:$0xff]
    %v2612 = vld [vmem:[%s2610 + $0x8] sm:$0xff]
    %v2613 = vld [vmem:[%s2610 + $0x10] sm:$0xff]
    %v2614 = vld [vmem:[%s2610 + $0x18] sm:$0xff]
    %v2615 = vld [vmem:[%s2610 + $0x20] sm:$0xff]
    %v2616 = vld [vmem:[%s2610 + $0x28] sm:$0xff]
    %v2617 = vld [vmem:[%s2610 + $0x30] sm:$0xff]
    %v2618 = vld [vmem:[%s2610 + $0x38] sm:$0xff]
    %s2619 = scalar_lea.vmem %s13, 1
    %v2620 = vld [vmem:[%s2619] sm:$0x1]
    %v2622 = vlaneseq
    %v2623 = vshrl.u32 %v2622, 7
    %v2624 = vsub.s32 0, %v2623
    %v2625 = vrot.slane %v2620, %v2624
    %v2628 = vsel %vm1302, %v2608, 0
    %v2631 = vsel %vm1302, %v2609, 0
    %2633 = vmatprep.subr.mxu0 0.0
    %2634 = vmatpush1.msra.mxu0 %v2611
    %2635 = vmatprep.subr.mxu0 0.0
    %2636 = vmatpush1.msra.mxu0 %v2612
    %2637 = vmatprep.subr.mxu0 0.0
    %2638 = vmatpush1.msra.mxu0 %v2613
    %2639 = vmatprep.subr.mxu0 0.0
    %2640 = vmatpush1.msra.mxu0 %v2614
    %2641 = vmatprep.subr.mxu0 0.0
    %2642 = vmatpush1.msra.mxu0 %v2615
    %2643 = vmatprep.subr.mxu0 0.0
    %2644 = vmatpush1.msra.mxu0 %v2616
    %2645 = vmatprep.subr.mxu0 0.0
    %2646 = vmatpush1.msra.mxu0 %v2617
    %2647 = vmatprep.subr.mxu0 0.0
    %2648 = vmatpush1.msra.mxu0 %v2618
    %2649 = vmatprep.subr.mxu0 0.0
    %2650 = vmatpush1.msra.mxu0 0.0
    %2651 = vmatprep.subr.mxu0 0.0
    %2652 = vmatpush1.msra.mxu0 0.0
    %2653 = vmatprep.subr.mxu0 0.0
    %2654 = vmatpush1.msra.mxu0 0.0
    %2655 = vmatprep.subr.mxu0 0.0
    %2656 = vmatpush1.msra.mxu0 0.0
    %2657 = vmatprep.subr.mxu0 0.0
    %2658 = vmatpush1.msra.mxu0 0.0
    %2659 = vmatprep.subr.mxu0 0.0
    %2660 = vmatpush1.msra.mxu0 0.0
    %2661 = vmatprep.subr.mxu0 0.0
    %2662 = vmatpush1.msra.mxu0 0.0
    %2663 = vmatprep.subr.mxu0 0.0
    %2664 = vmatpush1.msra.mxu0 0.0
    %2665 = vmatprep.subr.mxu0 0.0
    %2666 = vmatpush1.msra.mxu0 0.0
    %2667 = vmatprep.subr.mxu0 0.0
    %2668 = vmatpush1.msra.mxu0 0.0
    %2669 = vmatprep.subr.mxu0 0.0
    %2670 = vmatpush1.msra.mxu0 0.0
    %2671 = vmatprep.subr.mxu0 0.0
    %2672 = vmatpush1.msra.mxu0 0.0
    %2673 = vmatprep.subr.mxu0 0.0
    %2674 = vmatpush1.msra.mxu0 0.0
    %2675 = vmatprep.subr.mxu0 0.0
    %2676 = vmatpush1.msra.mxu0 0.0
    %2677 = vmatprep.subr.mxu0 0.0
    %2678 = vmatpush1.msra.mxu0 0.0
    %2679 = vmatprep.subr.mxu0 0.0
    %2680 = vmatpush1.msra.mxu0 0.0
    %2681 = vmatprep.subr.mxu0 0.0
    %2682 = vmatpush1.msra.mxu0 0.0
    %2683 = vmatprep.subr.mxu0 0.0
    %2684 = vmatpush1.msra.mxu0 0.0
    %2685 = vmatprep.subr.mxu0 0.0
    %2686 = vmatpush1.msra.mxu0 0.0
    %2687 = vmatprep.subr.mxu0 0.0
    %2688 = vmatpush1.msra.mxu0 0.0
    %2689 = vmatprep.subr.mxu0 0.0
    %2690 = vmatpush1.msra.mxu0 0.0
    %2691 = vmatprep.subr.mxu0 0.0
    %2692 = vmatpush1.msra.mxu0 0.0
    %2693 = vmatprep.subr.mxu0 0.0
    %2694 = vmatpush1.msra.mxu0 0.0
    %2695 = vmatprep.subr.mxu0 0.0
    %2696 = vmatpush1.msra.mxu0 0.0
    %2697 = vmatprep.mubr.f32.mxu0 0.0
    %2698 = vmatmul.mubr.f32.gmra.mrb[0].mxu0 %v2628
    %v2699 = vpop.f32.mrb[0].mxu0
    %v2700 = vadd.f32 %v2625, %v2699
    %v2701 = vpop.f32.mrb[0].mxu0
    %2702 = vmatprep.mubr.f32.mxu0 0.0
    %2703 = vmatmul.mubr.f32.gmra.mrb[0].mxu0 %v2631
    %v2704 = vpop.f32.mrb[0].mxu0
    %v2705 = vadd.f32 %v2625, %v2704
    %v2706 = vpop.f32.mrb[0].mxu0
    %2707 = vdwg.mxu0
    %v2708 = vadd.f32 %v2700, %v2496
    %v2709 = vadd.f32 %v2705, %v2497
    %s2710 = scalar_lea.vmem %s14, 1
    %v2711 = vld [vmem:[%s2710] sm:$0x1]
    %s2712 = scalar_lea.vmem %s15, 1
    %v2713 = vld [vmem:[%s2712] sm:$0x1]
    %v2714 = vsel %vm66, %v2708, 0.0
    %2715 = vadd.xlane.f32.xlu0 %v2714
    %v2716 = vpop.xlane.xlu0 %2715
    %v2717 = vsel %vm66, %v2709, 0.0
    %2718 = vadd.xlane.f32.xlu0 %v2717
    %v2719 = vpop.xlane.xlu0 %2718
    %v2720 = vmul.f32 %v2716, %v73
    %v2721 = vmul.f32 %v2719, %v73
    %v2722 = vsub.f32 %v2708, %v2720
    %v2723 = vsub.f32 %v2709, %v2721
    %v2724 = vmul.f32 %v2722, %v2722
    %v2725 = vmul.f32 %v2723, %v2723
    %v2726 = vsel %vm66, %v2724, 0.0
    %2727 = vadd.xlane.f32.xlu0 %v2726
    %v2728 = vpop.xlane.xlu0 %2727
    %v2729 = vsel %vm66, %v2725, 0.0
    %2730 = vadd.xlane.f32.xlu0 %v2729
    %v2731 = vpop.xlane.xlu0 %2730
    %v2732 = vmul.f32 %v2728, %v73
    %v2733 = vmul.f32 %v2731, %v73
    %v2734 = vadd.f32 %v2732, 1e-12
    %v2735 = vadd.f32 %v2733, 1e-12
    %v2736 = vrsqrt.pop %v2734
    %v2737 = vrsqrt.pop %v2735
    %v2738 = vmul.f32 %v2722, %v2736
    %v2739 = vmul.f32 %v2723, %v2737
    %v2741 = vlaneseq
    %v2742 = vshrl.u32 %v2741, 7
    %v2743 = vsub.s32 0, %v2742
    %v2744 = vrot.slane %v2711, %v2743
    %v2746 = vmul.f32 %v2738, %v2744
    %v2747 = vmul.f32 %v2739, %v2744
    %v2749 = vlaneseq
    %v2750 = vshrl.u32 %v2749, 7
    %v2751 = vsub.s32 0, %v2750
    %v2752 = vrot.slane %v2713, %v2751
    %v2754 = vadd.f32 %v2746, %v2752
    %v2755 = vadd.f32 %v2747, %v2752
    %v2757 = vrot.slane %v2755, 7
    %vm2759 = vcmask 1040384
    %v2760 = vsel %vm2759, %v2754, %v2757
    %v2761 = vld [vmem:[%s16] sm:$0xff]
    %v2762 = vld [vmem:[%s16 + $0x8] sm:$0xff]
    %v2763 = vld [vmem:[%s16 + $0x10] sm:$0xff]
    %v2764 = vld [vmem:[%s16 + $0x18] sm:$0xff]
    %v2765 = vld [vmem:[%s17] sm:$0x1]
    %v2767 = vlaneseq
    %v2768 = vshrl.u32 %v2767, 7
    %v2769 = vsub.s32 0, %v2768
    %v2770 = vrot.slane %v2765, %v2769
    %v2773 = vsel %vm66, %v2760, 0
    %2775 = vmatprep.subr.mxu0 0.0
    %2776 = vmatpush1.msra.mxu0 %v2761
    %2777 = vmatprep.subr.mxu0 0.0
    %2778 = vmatpush1.msra.mxu0 %v2762
    %2779 = vmatprep.subr.mxu0 0.0
    %2780 = vmatpush1.msra.mxu0 %v2763
    %2781 = vmatprep.subr.mxu0 0.0
    %2782 = vmatpush1.msra.mxu0 %v2764
    %2783 = vmatprep.subr.mxu0 0.0
    %2784 = vmatpush1.msra.mxu0 0.0
    %2785 = vmatprep.subr.mxu0 0.0
    %2786 = vmatpush1.msra.mxu0 0.0
    %2787 = vmatprep.subr.mxu0 0.0
    %2788 = vmatpush1.msra.mxu0 0.0
    %2789 = vmatprep.subr.mxu0 0.0
    %2790 = vmatpush1.msra.mxu0 0.0
    %2791 = vmatprep.subr.mxu0 0.0
    %2792 = vmatpush1.msra.mxu0 0.0
    %2793 = vmatprep.subr.mxu0 0.0
    %2794 = vmatpush1.msra.mxu0 0.0
    %2795 = vmatprep.subr.mxu0 0.0
    %2796 = vmatpush1.msra.mxu0 0.0
    %2797 = vmatprep.subr.mxu0 0.0
    %2798 = vmatpush1.msra.mxu0 0.0
    %2799 = vmatprep.subr.mxu0 0.0
    %2800 = vmatpush1.msra.mxu0 0.0
    %2801 = vmatprep.subr.mxu0 0.0
    %2802 = vmatpush1.msra.mxu0 0.0
    %2803 = vmatprep.subr.mxu0 0.0
    %2804 = vmatpush1.msra.mxu0 0.0
    %2805 = vmatprep.subr.mxu0 0.0
    %2806 = vmatpush1.msra.mxu0 0.0
    %2807 = vmatprep.subr.mxu0 0.0
    %2808 = vmatpush1.msra.mxu0 0.0
    %2809 = vmatprep.subr.mxu0 0.0
    %2810 = vmatpush1.msra.mxu0 0.0
    %2811 = vmatprep.subr.mxu0 0.0
    %2812 = vmatpush1.msra.mxu0 0.0
    %2813 = vmatprep.subr.mxu0 0.0
    %2814 = vmatpush1.msra.mxu0 0.0
    %2815 = vmatprep.subr.mxu0 0.0
    %2816 = vmatpush1.msra.mxu0 0.0
    %2817 = vmatprep.subr.mxu0 0.0
    %2818 = vmatpush1.msra.mxu0 0.0
    %2819 = vmatprep.subr.mxu0 0.0
    %2820 = vmatpush1.msra.mxu0 0.0
    %2821 = vmatprep.subr.mxu0 0.0
    %2822 = vmatpush1.msra.mxu0 0.0
    %2823 = vmatprep.subr.mxu0 0.0
    %2824 = vmatpush1.msra.mxu0 0.0
    %2825 = vmatprep.subr.mxu0 0.0
    %2826 = vmatpush1.msra.mxu0 0.0
    %2827 = vmatprep.subr.mxu0 0.0
    %2828 = vmatpush1.msra.mxu0 0.0
    %2829 = vmatprep.subr.mxu0 0.0
    %2830 = vmatpush1.msra.mxu0 0.0
    %2831 = vmatprep.subr.mxu0 0.0
    %2832 = vmatpush1.msra.mxu0 0.0
    %2833 = vmatprep.subr.mxu0 0.0
    %2834 = vmatpush1.msra.mxu0 0.0
    %2835 = vmatprep.subr.mxu0 0.0
    %2836 = vmatpush1.msra.mxu0 0.0
    %2837 = vmatprep.subr.mxu0 0.0
    %2838 = vmatpush1.msra.mxu0 0.0
    %2839 = vmatprep.mubr.f32.mxu0 0.0
    %2840 = vmatmul.mubr.f32.gmra.mrb[0].mxu0 %v2773
    %v2841 = vpop.f32.mrb[0].mxu0
    %v2842 = vadd.f32 %v2770, %v2841
    %v2843 = vpop.f32.mrb[0].mxu0
    %2844 = vdwg.mxu0
    %v2845 = vtanh.pop %v2842
    %vm2846 = vcmask 254976
    %2847 = vst.msk [vmem:[#allocation3] sm:$0x3] %vm2846, %v2845
    // Predicated region
    $region74: #{bert_forward.1} parent=1 // pred_check
      _
    $region75: #{bert_forward.1} parent=1 // pred_check_branch
      %2849 = sbr.rel (0) target = $region77
    $region76: #{bert_forward.1} parent=1 // pred_region
      %s2851 = ssub.s32 32, 32
      %2852 = vsyncadd [#allocation4], %s2851
      %s2854 = sshll.u32 [#allocation3], 4
      %s2855 = int_to_ptr.vmem [resolvable:$true] %s2854
      %2857 = dma.vmem_to_hbm [thread:$0]  %s2855, 32, %s18, [#allocation4]
    $region77: #{bert_forward.1} parent=1 // pred_fallthru
      _
    // Predicated region
    $region78: #{bert_forward.1} parent=1 // pred_check
      _
    $region79: #{bert_forward.1} parent=1 // pred_check_branch
      %2859 = sbr.rel (0) target = $region81
    $region80: #{bert_forward.1} parent=1 // pred_region
      %2860 = dma.done [#allocation4], 32
    $region81: #{bert_forward.1} parent=1 // pred_fallthru
      _
    %2861 = vsyncpa [#allocation4], 1

</llo_original>
